<compile_context>
chip_gen: v6e
topology: v6e:2x2x1
jax: 0.10.0
libtpu: 0.0.40
codegen_flags: <defaults>
</compile_context>

<pallas_src>
import math
import jax
import jax.numpy as jnp
from jax import lax
from jax.experimental import pallas as pl
from jax.experimental.pallas import tpu as pltpu


# ----------------------------- kernel -----------------------------

def diffusion_sample_kernel(coeff_ref, x0_ref, state_ref, noise_ref, temb_h_ref,
                            w1x_ref, w1s_ref, w2_ref, b2_ref, w3_ref, b3_ref,
                            w4_ref, b4_ref,
                            out_ref,
                            bias_tab_ref):
    T = noise_ref.shape[0]

    # ---- loop-invariant work (once per kernel, not per timestep) ----
    # state projection (state never changes across timesteps); b1 and the time-MLP output
    # projected through W1t are already folded into temb_h offline.
    s_proj = jnp.dot(state_ref[...].astype(jnp.bfloat16), w1s_ref[...],
                     preferred_element_type=jnp.float32)               # (B, H) f32
    # Per-timestep first-layer bias table: (T, B, H). One add per step inside the loop.
    bias_tab_ref[...] = s_proj[None, :, :] + temb_h_ref[...]

    def mish(v):
        # mish(x) = x * tanh(softplus(x)) = x * (u^2 - 1) / (u^2 + 1), u = 1 + exp(x).
        # Clamp before exp so u^2 stays finite (avoids inf/inf -> NaN for large activations).
        u = 1.0 + jnp.exp(jnp.minimum(v, 20.0))
        u2 = u * u
        return v * (u2 - 1.0) * pl.reciprocal(u2 + 1.0, approx=True)

    def step(i, x):
        t = T - 1 - i                                   # reversed(range(n_timesteps))

        # ---- eps = model(x, t, s); weights streamed from VMEM as bf16, f32 accumulation ----
        h1 = mish(jnp.dot(x.astype(jnp.bfloat16), w1x_ref[...],
                          preferred_element_type=jnp.float32) + bias_tab_ref[t])
        h2 = mish(jnp.dot(h1.astype(jnp.bfloat16), w2_ref[...],
                          preferred_element_type=jnp.float32) + b2_ref[...])
        h3 = mish(jnp.dot(h2.astype(jnp.bfloat16), w3_ref[...],
                          preferred_element_type=jnp.float32) + b3_ref[...])
        eps = jnp.dot(h3.astype(jnp.bfloat16), w4_ref[...],
                      preferred_element_type=jnp.float32) + b4_ref[...]

        # ---- folded p_sample tail (predict_epsilon=True, clip_denoised=False) ----
        a_t   = coeff_ref[0, t]   # pmc1*sqrt_recip_acp[t] + pmc2[t]
        b_t   = coeff_ref[1, t]   # pmc1*sqrt_recipm1_acp[t]
        sigma = coeff_ref[2, t]   # (t>0) * exp(0.5*posterior_log_var[t])
        return a_t * x - b_t * eps + sigma * noise_ref[t]

    # Full unroll only for tiny T; partial unroll keeps code size / vreg live ranges bounded.
    unroll = True if T <= 16 else 4
    x = lax.fori_loop(0, T, step, x0_ref[...], unroll=unroll)

    # sample() returns softmax(action, dim=-1); exact division for the normalization.
    m = jnp.max(x, axis=-1, keepdims=True)
    e = jnp.exp(x - m)
    out_ref[...] = e / jnp.sum(e, axis=-1, keepdims=True)


# ---------------- plain-JAX glue: schedules, embeddings, parameters ----------------

def _mish_ref(v):
    return v * jnp.tanh(jax.nn.softplus(v))


def diffusion_buffers(n_timesteps):
    # linear_beta_schedule + folded p_sample coefficients.
    betas = jnp.linspace(1e-4, 2e-2, n_timesteps).astype(jnp.float32)
    alphas = 1.0 - betas
    acp = jnp.cumprod(alphas)
    acp_prev = jnp.concatenate([jnp.ones((1,), jnp.float32), acp[:-1]])
    sqrt_recip = jnp.sqrt(1.0 / acp)
    sqrt_recipm1 = jnp.sqrt(1.0 / acp - 1.0)
    post_var = betas * (1.0 - acp_prev) / (1.0 - acp)
    post_logvar = jnp.log(jnp.clip(post_var, 1e-20, None))
    pmc1 = betas * jnp.sqrt(acp_prev) / (1.0 - acp)
    pmc2 = (1.0 - acp_prev) * jnp.sqrt(alphas) / (1.0 - acp)
    # Fold: mean = pmc1*(sqrt_recip*x - sqrt_recipm1*eps) + pmc2*x = A*x - B*eps
    a_coef = pmc1 * sqrt_recip + pmc2
    b_coef = pmc1 * sqrt_recipm1
    # Fold nonzero_mask(t) * exp(0.5 * log_var) (pure function of t).
    t_idx = jnp.arange(n_timesteps, dtype=jnp.float32)
    sigma = jnp.where(t_idx == 0.0, 0.0, jnp.exp(0.5 * post_logvar))
    return jnp.stack([a_coef, b_coef, sigma], axis=0)  # (3, T), lives in SMEM


def sinusoidal_table(n_timesteps, dim):
    half = dim // 2
    freqs = jnp.exp(-math.log(10000.0) * jnp.arange(half, dtype=jnp.float32) / (half - 1))
    ts = jnp.arange(n_timesteps, dtype=jnp.float32)[:, None] * freqs[None, :]
    return jnp.concatenate([jnp.sin(ts), jnp.cos(ts)], axis=-1).astype(jnp.float32)  # (T, dim)


def fold_time_mlp(temb_table, wt1, bt1, wt2, bt2, w1t, b1):
    # Precompute (time_mlp(t) @ W1t + b1) for all timesteps -> (T, 1, H); x-independent.
    h = _mish_ref(temb_table @ wt1 + bt1)
    temb = h @ wt2 + bt2
    temb_h = temb @ w1t + b1
    return temb_h[:, None, :].astype(jnp.float32)


def init_params(key, state_dim, action_dim, hidden, t_dim):
    ks = jax.random.split(key, 8)

    def lin(k, fan_in, fan_out):
        w = jax.random.normal(k, (fan_in, fan_out), jnp.float32) / jnp.sqrt(float(fan_in))
        b = jnp.zeros((1, fan_out), jnp.float32)
        return w, b

    wt1, bt1 = lin(ks[0], t_dim, 2 * t_dim)
    wt2, bt2 = lin(ks[1], 2 * t_dim, t_dim)
    # first mid-layer split over the concat [x, t_emb, state]
    w1x, _ = lin(ks[2], action_dim, hidden)
    w1t, _ = lin(ks[3], t_dim, hidden)
    w1s, b1 = lin(ks[4], state_dim, hidden)
    w2, b2 = lin(ks[5], hidden, hidden)
    w3, b3 = lin(ks[6], hidden, hidden)
    w4, b4 = lin(ks[7], hidden, action_dim)
    return [wt1, bt1, wt2, bt2, w1x, w1t, w1s, b1, w2, b2, w3, b3, w4, b4]


def diffusion_forward(state, x_init, noise, coeffs, temb_h, kernel_params, *, block_b=None):
    B, S = state.shape
    A = x_init.shape[1]
    T, _, H = temb_h.shape

    # Batch-chunk grid: block_b should divide B (and be a multiple of 8 for large B) so
    # batched sampling spreads over both TensorCores on v7x; grid size 1 at the demo sizes.
    if block_b is None:
        block_b = B
    n_blk = pl.cdiv(B, block_b)

    smem_full = pl.BlockSpec(memory_space=pltpu.MemorySpace.SMEM)
    vmem_full = pl.BlockSpec(memory_space=pltpu.MemorySpace.VMEM)

    in_specs = [
        smem_full,                                            # coeffs (3, T) scalar table
        pl.BlockSpec((block_b, A), lambda b: (b, 0)),         # x_init (B, A)
        pl.BlockSpec((block_b, S), lambda b: (b, 0)),         # state  (B, S)
        pl.BlockSpec((T, block_b, A), lambda b: (0, b, 0)),   # noise  (T, B, A)
        vmem_full,                                            # temb_h (T, 1, H)
    ] + [vmem_full] * len(kernel_params)                      # weights / biases (resident)

    return pl.pallas_call(
        diffusion_sample_kernel,
        out_shape=jax.ShapeDtypeStruct((B, A), jnp.float32),
        grid=(n_blk,),
        in_specs=in_specs,
        out_specs=pl.BlockSpec((block_b, A), lambda b: (b, 0)),
        scratch_shapes=[pltpu.VMEM((T, block_b, H), jnp.float32)],  # per-step bias table
        compiler_params=pltpu.CompilerParams(
            dimension_semantics=("parallel",)),
    )(coeffs, x_init, state, noise, temb_h, *kernel_params)


if __name__ == "__main__":
    # batch (multiple of 8 sublanes), state_dim, action_dim, hidden, t_dim, n_timesteps
    B, S, A, H, TDIM, T = 8, 16, 8, 128, 16, 10

    key = jax.random.PRNGKey(0)
    k_state, k_x, k_noise, k_params = jax.random.split(key, 4)

    state = jax.random.normal(k_state, (B, S), jnp.float32)
    x_init = jax.random.normal(k_x, (B, A), jnp.float32)        # x_T ~ N(0, I)
    noise = jax.random.normal(k_noise, (T, B, A), jnp.float32)  # per-timestep noise table

    coeffs = diffusion_buffers(T)                               # (3, T) in SMEM
    temb_table = sinusoidal_table(T, TDIM)
    params = init_params(k_params, S, A, H, TDIM)
    wt1, bt1, wt2, bt2, w1x, w1t, w1s, b1, w2, b2, w3, b3, w4, b4 = params

    # Fold the x-independent time MLP (+ first-layer bias) at setup time.
    temb_h = fold_time_mlp(temb_table, wt1, bt1, wt2, bt2, w1t, b1)  # (T, 1, H)

    # Explicit bf16 weights for single-pass MXU; biases stay f32 (added to f32 accumulators).
    bf16 = jnp.bfloat16
    kernel_params = [w1x.astype(bf16), w1s.astype(bf16),
                     w2.astype(bf16), b2, w3.astype(bf16), b3, w4.astype(bf16), b4]

    out = diffusion_forward(state, x_init, noise, coeffs, temb_h, kernel_params)
    out = jax.block_until_ready(out)

    assert out.shape == (B, A)
    assert bool(jnp.all(jnp.isfinite(out)))
    # forward() returns softmax over actions -> rows must sum to 1
    assert bool(jnp.all(jnp.abs(jnp.sum(out, axis=-1) - 1.0) < 1e-4))
    print("KERNEL_OK")
</pallas_src>

<mosaic_0001>
module attributes {stable_mosaic.version = 11 : i64} {
  func.func @diffusion_sample_kernel(%arg0: i32, %arg1: memref<3x10xf32, #tpu.memory_space<smem>>, %arg2: memref<8x8xf32, #tpu.memory_space<vmem>>, %arg3: memref<8x16xf32, #tpu.memory_space<vmem>>, %arg4: memref<10x8x8xf32, #tpu.memory_space<vmem>>, %arg5: memref<10x1x128xf32, #tpu.memory_space<vmem>>, %arg6: memref<8x128xbf16, #tpu.memory_space<vmem>>, %arg7: memref<16x128xbf16, #tpu.memory_space<vmem>>, %arg8: memref<128x128xbf16, #tpu.memory_space<vmem>>, %arg9: memref<1x128xf32, #tpu.memory_space<vmem>>, %arg10: memref<128x128xbf16, #tpu.memory_space<vmem>>, %arg11: memref<1x128xf32, #tpu.memory_space<vmem>>, %arg12: memref<128x8xbf16, #tpu.memory_space<vmem>>, %arg13: memref<1x8xf32, #tpu.memory_space<vmem>>, %arg14: memref<8x8xf32, #tpu.memory_space<vmem>>, %arg15: memref<10x8x128xf32, #tpu.memory_space<vmem>>) attributes {dimension_semantics = [#tpu.dimension_semantics<parallel>], iteration_bounds = array<i64: 1>, scalar_prefetch = 0 : i64, scratch_operands = 1 : i64, tpu.core_type = #tpu.core_type<tc>, window_params = [{transform_indices = @transform_0, window_bounds = array<i64: 3, 10>}, {transform_indices = @transform_1, window_bounds = array<i64: 8, 8>}, {transform_indices = @transform_2, window_bounds = array<i64: 8, 16>}, {transform_indices = @transform_3, window_bounds = array<i64: 10, 8, 8>}, {pipeline_mode = #tpu.pipeline_mode<synchronous>, transform_indices = @transform_4, window_bounds = array<i64: 10, 1, 128>}, {pipeline_mode = #tpu.pipeline_mode<synchronous>, transform_indices = @transform_5, window_bounds = array<i64: 8, 128>}, {pipeline_mode = #tpu.pipeline_mode<synchronous>, transform_indices = @transform_6, window_bounds = array<i64: 16, 128>}, {pipeline_mode = #tpu.pipeline_mode<synchronous>, transform_indices = @transform_7, window_bounds = array<i64: 128, 128>}, {pipeline_mode = #tpu.pipeline_mode<synchronous>, transform_indices = @transform_8, window_bounds = array<i64: 1, 128>}, {pipeline_mode = #tpu.pipeline_mode<synchronous>, transform_indices = @transform_9, window_bounds = array<i64: 128, 128>}, {pipeline_mode = #tpu.pipeline_mode<synchronous>, transform_indices = @transform_10, window_bounds = array<i64: 1, 128>}, {pipeline_mode = #tpu.pipeline_mode<synchronous>, transform_indices = @transform_11, window_bounds = array<i64: 128, 8>}, {pipeline_mode = #tpu.pipeline_mode<synchronous>, transform_indices = @transform_12, window_bounds = array<i64: 1, 8>}, {transform_indices = @transform_13, window_bounds = array<i64: 8, 8>}]} {
    %c0 = arith.constant 0 : index
    %c0_0 = arith.constant 0 : index
    %0 = vector.load %arg3[%c0, %c0_0] : memref<8x16xf32, #tpu.memory_space<vmem>>, vector<8x16xf32>
    %1 = arith.truncf %0 : vector<8x16xf32> to vector<8x16xbf16>
    %c0_1 = arith.constant 0 : index
    %c0_2 = arith.constant 0 : index
    %2 = vector.load %arg7[%c0_1, %c0_2] : memref<16x128xbf16, #tpu.memory_space<vmem>>, vector<16x128xbf16>
    %cst = arith.constant dense<0.000000e+00> : vector<8x128xf32>
    %3 = tpu.matmul %1, %2, %cst {dimension_numbers = #tpu.dot_dimension_numbers<[1], [0], [0], [1], [0, 0, 1, 1], [], []>} : vector<8x16xbf16>, vector<16x128xbf16>, vector<8x128xf32> -> vector<8x128xf32>
    %4 = vector.shape_cast %3 : vector<8x128xf32> to vector<1x8x128xf32>
    %c0_3 = arith.constant 0 : index
    %c0_4 = arith.constant 0 : index
    %c0_5 = arith.constant 0 : index
    %5 = vector.load %arg5[%c0_3, %c0_4, %c0_5] : memref<10x1x128xf32, #tpu.memory_space<vmem>>, vector<10x1x128xf32>
    %6 = vector.broadcast %4 : vector<1x8x128xf32> to vector<10x8x128xf32>
    %7 = vector.broadcast %5 : vector<10x1x128xf32> to vector<10x8x128xf32>
    %8 = arith.addf %6, %7 : vector<10x8x128xf32>
    %c0_6 = arith.constant 0 : index
    %c0_7 = arith.constant 0 : index
    %c0_8 = arith.constant 0 : index
    %9 = vector.load %arg15[%c0_6, %c0_7, %c0_8] : memref<10x8x128xf32, #tpu.memory_space<vmem>>, vector<10x8x128xf32>
    tpu.vector_store %arg15[%c0_6, %c0_7, %c0_8], %8 {strides = array<i32>} : memref<10x8x128xf32, #tpu.memory_space<vmem>>, vector<10x8x128xf32>,
    %c0_9 = arith.constant 0 : index
    %c0_10 = arith.constant 0 : index
    %10 = vector.load %arg2[%c0_9, %c0_10] : memref<8x8xf32, #tpu.memory_space<vmem>>, vector<8x8xf32>
    %c0_i32 = arith.constant 0 : i32
    %c9_i32 = arith.constant 9 : i32
    %11 = arith.subi %c9_i32, %c0_i32 : i32
    %12 = arith.truncf %10 : vector<8x8xf32> to vector<8x8xbf16>
    %c0_11 = arith.constant 0 : index
    %c0_12 = arith.constant 0 : index
    %13 = vector.load %arg6[%c0_11, %c0_12] : memref<8x128xbf16, #tpu.memory_space<vmem>>, vector<8x128xbf16>
    %cst_13 = arith.constant dense<0.000000e+00> : vector<8x128xf32>
    %14 = tpu.matmul %12, %13, %cst_13 {dimension_numbers = #tpu.dot_dimension_numbers<[1], [0], [0], [1], [0, 0, 1, 1], [], []>} : vector<8x8xbf16>, vector<8x128xbf16>, vector<8x128xf32> -> vector<8x128xf32>
    %15 = arith.index_cast %11 : i32 to index
    %c0_14 = arith.constant 0 : index
    %c0_15 = arith.constant 0 : index
    %16 = vector.load %arg15[%15, %c0_14, %c0_15] : memref<10x8x128xf32, #tpu.memory_space<vmem>>, vector<1x8x128xf32>
    %17 = vector.shape_cast %16 : vector<1x8x128xf32> to vector<8x128xf32>
    %18 = arith.addf %14, %17 : vector<8x128xf32>
    %cst_16 = arith.constant 2.000000e+01 : f32
    %19 = vector.broadcast %cst_16 : f32 to vector<8x128xf32>
    %20 = arith.minimumf %18, %19 : vector<8x128xf32>
    %21 = math.exp %20 : vector<8x128xf32>
    %cst_17 = arith.constant 1.000000e+00 : f32
    %22 = vector.broadcast %cst_17 : f32 to vector<8x128xf32>
    %23 = arith.addf %22, %21 : vector<8x128xf32>
    %24 = arith.mulf %23, %23 : vector<8x128xf32>
    %cst_18 = arith.constant 1.000000e+00 : f32
    %25 = vector.broadcast %cst_18 : f32 to vector<8x128xf32>
    %26 = arith.subf %24, %25 : vector<8x128xf32>
    %27 = arith.mulf %18, %26 : vector<8x128xf32>
    %cst_19 = arith.constant 1.000000e+00 : f32
    %28 = vector.broadcast %cst_19 : f32 to vector<8x128xf32>
    %29 = arith.addf %24, %28 : vector<8x128xf32>
    %30 = tpu.reciprocal %29 {approx = true} : vector<8x128xf32> -> vector<8x128xf32>
    %31 = arith.mulf %27, %30 : vector<8x128xf32>
    %32 = arith.truncf %31 : vector<8x128xf32> to vector<8x128xbf16>
    %c0_20 = arith.constant 0 : index
    %c0_21 = arith.constant 0 : index
    %33 = vector.load %arg8[%c0_20, %c0_21] : memref<128x128xbf16, #tpu.memory_space<vmem>>, vector<128x128xbf16>
    %cst_22 = arith.constant dense<0.000000e+00> : vector<8x128xf32>
    %34 = tpu.matmul %32, %33, %cst_22 {dimension_numbers = #tpu.dot_dimension_numbers<[1], [0], [0], [1], [0, 0, 1, 1], [], []>} : vector<8x128xbf16>, vector<128x128xbf16>, vector<8x128xf32> -> vector<8x128xf32>
    %c0_23 = arith.constant 0 : index
    %c0_24 = arith.constant 0 : index
    %35 = vector.load %arg9[%c0_23, %c0_24] : memref<1x128xf32, #tpu.memory_space<vmem>>, vector<1x128xf32>
    %36 = vector.broadcast %35 : vector<1x128xf32> to vector<8x128xf32>
    %37 = arith.addf %34, %36 : vector<8x128xf32>
    %cst_25 = arith.constant 2.000000e+01 : f32
    %38 = vector.broadcast %cst_25 : f32 to vector<8x128xf32>
    %39 = arith.minimumf %37, %38 : vector<8x128xf32>
    %40 = math.exp %39 : vector<8x128xf32>
    %cst_26 = arith.constant 1.000000e+00 : f32
    %41 = vector.broadcast %cst_26 : f32 to vector<8x128xf32>
    %42 = arith.addf %41, %40 : vector<8x128xf32>
    %43 = arith.mulf %42, %42 : vector<8x128xf32>
    %cst_27 = arith.constant 1.000000e+00 : f32
    %44 = vector.broadcast %cst_27 : f32 to vector<8x128xf32>
    %45 = arith.subf %43, %44 : vector<8x128xf32>
    %46 = arith.mulf %37, %45 : vector<8x128xf32>
    %cst_28 = arith.constant 1.000000e+00 : f32
    %47 = vector.broadcast %cst_28 : f32 to vector<8x128xf32>
    %48 = arith.addf %43, %47 : vector<8x128xf32>
    %49 = tpu.reciprocal %48 {approx = true} : vector<8x128xf32> -> vector<8x128xf32>
    %50 = arith.mulf %46, %49 : vector<8x128xf32>
    %51 = arith.truncf %50 : vector<8x128xf32> to vector<8x128xbf16>
    %c0_29 = arith.constant 0 : index
    %c0_30 = arith.constant 0 : index
    %52 = vector.load %arg10[%c0_29, %c0_30] : memref<128x128xbf16, #tpu.memory_space<vmem>>, vector<128x128xbf16>
    %cst_31 = arith.constant dense<0.000000e+00> : vector<8x128xf32>
    %53 = tpu.matmul %51, %52, %cst_31 {dimension_numbers = #tpu.dot_dimension_numbers<[1], [0], [0], [1], [0, 0, 1, 1], [], []>} : vector<8x128xbf16>, vector<128x128xbf16>, vector<8x128xf32> -> vector<8x128xf32>
    %c0_32 = arith.constant 0 : index
    %c0_33 = arith.constant 0 : index
    %54 = vector.load %arg11[%c0_32, %c0_33] : memref<1x128xf32, #tpu.memory_space<vmem>>, vector<1x128xf32>
    %55 = vector.broadcast %54 : vector<1x128xf32> to vector<8x128xf32>
    %56 = arith.addf %53, %55 : vector<8x128xf32>
    %cst_34 = arith.constant 2.000000e+01 : f32
    %57 = vector.broadcast %cst_34 : f32 to vector<8x128xf32>
    %58 = arith.minimumf %56, %57 : vector<8x128xf32>
    %59 = math.exp %58 : vector<8x128xf32>
    %cst_35 = arith.constant 1.000000e+00 : f32
    %60 = vector.broadcast %cst_35 : f32 to vector<8x128xf32>
    %61 = arith.addf %60, %59 : vector<8x128xf32>
    %62 = arith.mulf %61, %61 : vector<8x128xf32>
    %cst_36 = arith.constant 1.000000e+00 : f32
    %63 = vector.broadcast %cst_36 : f32 to vector<8x128xf32>
    %64 = arith.subf %62, %63 : vector<8x128xf32>
    %65 = arith.mulf %56, %64 : vector<8x128xf32>
    %cst_37 = arith.constant 1.000000e+00 : f32
    %66 = vector.broadcast %cst_37 : f32 to vector<8x128xf32>
    %67 = arith.addf %62, %66 : vector<8x128xf32>
    %68 = tpu.reciprocal %67 {approx = true} : vector<8x128xf32> -> vector<8x128xf32>
    %69 = arith.mulf %65, %68 : vector<8x128xf32>
    %70 = arith.truncf %69 : vector<8x128xf32> to vector<8x128xbf16>
    %c0_38 = arith.constant 0 : index
    %c0_39 = arith.constant 0 : index
    %71 = vector.load %arg12[%c0_38, %c0_39] : memref<128x8xbf16, #tpu.memory_space<vmem>>, vector<128x8xbf16>
    %cst_40 = arith.constant dense<0.000000e+00> : vector<8x8xf32>
    %72 = tpu.matmul %70, %71, %cst_40 {dimension_numbers = #tpu.dot_dimension_numbers<[1], [0], [0], [1], [0, 0, 1, 1], [], []>} : vector<8x128xbf16>, vector<128x8xbf16>, vector<8x8xf32> -> vector<8x8xf32>
    %c0_41 = arith.constant 0 : index
    %c0_42 = arith.constant 0 : index
    %73 = vector.load %arg13[%c0_41, %c0_42] : memref<1x8xf32, #tpu.memory_space<vmem>>, vector<1x8xf32>
    %74 = vector.broadcast %73 : vector<1x8xf32> to vector<8x8xf32>
    %75 = arith.addf %72, %74 : vector<8x8xf32>
    %c0_43 = arith.constant 0 : index
    %76 = arith.index_cast %11 : i32 to index
    %77 = memref.load %arg1[%c0_43, %76] : memref<3x10xf32, #tpu.memory_space<smem>>
    %c1 = arith.constant 1 : index
    %78 = arith.index_cast %11 : i32 to index
    %79 = memref.load %arg1[%c1, %78] : memref<3x10xf32, #tpu.memory_space<smem>>
    %c2 = arith.constant 2 : index
    %80 = arith.index_cast %11 : i32 to index
    %81 = memref.load %arg1[%c2, %80] : memref<3x10xf32, #tpu.memory_space<smem>>
    %82 = vector.broadcast %77 : f32 to vector<8x8xf32>
    %83 = arith.mulf %82, %10 : vector<8x8xf32>
    %84 = vector.broadcast %79 : f32 to vector<8x8xf32>
    %85 = arith.mulf %84, %75 : vector<8x8xf32>
    %86 = arith.subf %83, %85 : vector<8x8xf32>
    %87 = arith.index_cast %11 : i32 to index
    %c0_44 = arith.constant 0 : index
    %c0_45 = arith.constant 0 : index
    %88 = vector.load %arg4[%87, %c0_44, %c0_45] : memref<10x8x8xf32, #tpu.memory_space<vmem>>, vector<1x8x8xf32>
    %89 = vector.shape_cast %88 : vector<1x8x8xf32> to vector<8x8xf32>
    %90 = vector.broadcast %81 : f32 to vector<8x8xf32>
    %91 = arith.mulf %90, %89 : vector<8x8xf32>
    %92 = arith.addf %86, %91 : vector<8x8xf32>
    %c1_i32 = arith.constant 1 : i32
    %c9_i32_46 = arith.constant 9 : i32
    %93 = arith.subi %c9_i32_46, %c1_i32 : i32
    %94 = arith.truncf %92 : vector<8x8xf32> to vector<8x8xbf16>
    %c0_47 = arith.constant 0 : index
    %c0_48 = arith.constant 0 : index
    %95 = vector.load %arg6[%c0_47, %c0_48] : memref<8x128xbf16, #tpu.memory_space<vmem>>, vector<8x128xbf16>
    %cst_49 = arith.constant dense<0.000000e+00> : vector<8x128xf32>
    %96 = tpu.matmul %94, %95, %cst_49 {dimension_numbers = #tpu.dot_dimension_numbers<[1], [0], [0], [1], [0, 0, 1, 1], [], []>} : vector<8x8xbf16>, vector<8x128xbf16>, vector<8x128xf32> -> vector<8x128xf32>
    %97 = arith.index_cast %93 : i32 to index
    %c0_50 = arith.constant 0 : index
    %c0_51 = arith.constant 0 : index
    %98 = vector.load %arg15[%97, %c0_50, %c0_51] : memref<10x8x128xf32, #tpu.memory_space<vmem>>, vector<1x8x128xf32>
    %99 = vector.shape_cast %98 : vector<1x8x128xf32> to vector<8x128xf32>
    %100 = arith.addf %96, %99 : vector<8x128xf32>
    %cst_52 = arith.constant 2.000000e+01 : f32
    %101 = vector.broadcast %cst_52 : f32 to vector<8x128xf32>
    %102 = arith.minimumf %100, %101 : vector<8x128xf32>
    %103 = math.exp %102 : vector<8x128xf32>
    %cst_53 = arith.constant 1.000000e+00 : f32
    %104 = vector.broadcast %cst_53 : f32 to vector<8x128xf32>
    %105 = arith.addf %104, %103 : vector<8x128xf32>
    %106 = arith.mulf %105, %105 : vector<8x128xf32>
    %cst_54 = arith.constant 1.000000e+00 : f32
    %107 = vector.broadcast %cst_54 : f32 to vector<8x128xf32>
    %108 = arith.subf %106, %107 : vector<8x128xf32>
    %109 = arith.mulf %100, %108 : vector<8x128xf32>
    %cst_55 = arith.constant 1.000000e+00 : f32
    %110 = vector.broadcast %cst_55 : f32 to vector<8x128xf32>
    %111 = arith.addf %106, %110 : vector<8x128xf32>
    %112 = tpu.reciprocal %111 {approx = true} : vector<8x128xf32> -> vector<8x128xf32>
    %113 = arith.mulf %109, %112 : vector<8x128xf32>
    %114 = arith.truncf %113 : vector<8x128xf32> to vector<8x128xbf16>
    %c0_56 = arith.constant 0 : index
    %c0_57 = arith.constant 0 : index
    %115 = vector.load %arg8[%c0_56, %c0_57] : memref<128x128xbf16, #tpu.memory_space<vmem>>, vector<128x128xbf16>
    %cst_58 = arith.constant dense<0.000000e+00> : vector<8x128xf32>
    %116 = tpu.matmul %114, %115, %cst_58 {dimension_numbers = #tpu.dot_dimension_numbers<[1], [0], [0], [1], [0, 0, 1, 1], [], []>} : vector<8x128xbf16>, vector<128x128xbf16>, vector<8x128xf32> -> vector<8x128xf32>
    %c0_59 = arith.constant 0 : index
    %c0_60 = arith.constant 0 : index
    %117 = vector.load %arg9[%c0_59, %c0_60] : memref<1x128xf32, #tpu.memory_space<vmem>>, vector<1x128xf32>
    %118 = vector.broadcast %117 : vector<1x128xf32> to vector<8x128xf32>
    %119 = arith.addf %116, %118 : vector<8x128xf32>
    %cst_61 = arith.constant 2.000000e+01 : f32
    %120 = vector.broadcast %cst_61 : f32 to vector<8x128xf32>
    %121 = arith.minimumf %119, %120 : vector<8x128xf32>
    %122 = math.exp %121 : vector<8x128xf32>
    %cst_62 = arith.constant 1.000000e+00 : f32
    %123 = vector.broadcast %cst_62 : f32 to vector<8x128xf32>
    %124 = arith.addf %123, %122 : vector<8x128xf32>
    %125 = arith.mulf %124, %124 : vector<8x128xf32>
    %cst_63 = arith.constant 1.000000e+00 : f32
    %126 = vector.broadcast %cst_63 : f32 to vector<8x128xf32>
    %127 = arith.subf %125, %126 : vector<8x128xf32>
    %128 = arith.mulf %119, %127 : vector<8x128xf32>
    %cst_64 = arith.constant 1.000000e+00 : f32
    %129 = vector.broadcast %cst_64 : f32 to vector<8x128xf32>
    %130 = arith.addf %125, %129 : vector<8x128xf32>
    %131 = tpu.reciprocal %130 {approx = true} : vector<8x128xf32> -> vector<8x128xf32>
    %132 = arith.mulf %128, %131 : vector<8x128xf32>
    %133 = arith.truncf %132 : vector<8x128xf32> to vector<8x128xbf16>
    %c0_65 = arith.constant 0 : index
    %c0_66 = arith.constant 0 : index
    %134 = vector.load %arg10[%c0_65, %c0_66] : memref<128x128xbf16, #tpu.memory_space<vmem>>, vector<128x128xbf16>
    %cst_67 = arith.constant dense<0.000000e+00> : vector<8x128xf32>
    %135 = tpu.matmul %133, %134, %cst_67 {dimension_numbers = #tpu.dot_dimension_numbers<[1], [0], [0], [1], [0, 0, 1, 1], [], []>} : vector<8x128xbf16>, vector<128x128xbf16>, vector<8x128xf32> -> vector<8x128xf32>
    %c0_68 = arith.constant 0 : index
    %c0_69 = arith.constant 0 : index
    %136 = vector.load %arg11[%c0_68, %c0_69] : memref<1x128xf32, #tpu.memory_space<vmem>>, vector<1x128xf32>
    %137 = vector.broadcast %136 : vector<1x128xf32> to vector<8x128xf32>
    %138 = arith.addf %135, %137 : vector<8x128xf32>
    %cst_70 = arith.constant 2.000000e+01 : f32
    %139 = vector.broadcast %cst_70 : f32 to vector<8x128xf32>
    %140 = arith.minimumf %138, %139 : vector<8x128xf32>
    %141 = math.exp %140 : vector<8x128xf32>
    %cst_71 = arith.constant 1.000000e+00 : f32
    %142 = vector.broadcast %cst_71 : f32 to vector<8x128xf32>
    %143 = arith.addf %142, %141 : vector<8x128xf32>
    %144 = arith.mulf %143, %143 : vector<8x128xf32>
    %cst_72 = arith.constant 1.000000e+00 : f32
    %145 = vector.broadcast %cst_72 : f32 to vector<8x128xf32>
    %146 = arith.subf %144, %145 : vector<8x128xf32>
    %147 = arith.mulf %138, %146 : vector<8x128xf32>
    %cst_73 = arith.constant 1.000000e+00 : f32
    %148 = vector.broadcast %cst_73 : f32 to vector<8x128xf32>
    %149 = arith.addf %144, %148 : vector<8x128xf32>
    %150 = tpu.reciprocal %149 {approx = true} : vector<8x128xf32> -> vector<8x128xf32>
    %151 = arith.mulf %147, %150 : vector<8x128xf32>
    %152 = arith.truncf %151 : vector<8x128xf32> to vector<8x128xbf16>
    %c0_74 = arith.constant 0 : index
    %c0_75 = arith.constant 0 : index
    %153 = vector.load %arg12[%c0_74, %c0_75] : memref<128x8xbf16, #tpu.memory_space<vmem>>, vector<128x8xbf16>
    %cst_76 = arith.constant dense<0.000000e+00> : vector<8x8xf32>
    %154 = tpu.matmul %152, %153, %cst_76 {dimension_numbers = #tpu.dot_dimension_numbers<[1], [0], [0], [1], [0, 0, 1, 1], [], []>} : vector<8x128xbf16>, vector<128x8xbf16>, vector<8x8xf32> -> vector<8x8xf32>
    %c0_77 = arith.constant 0 : index
    %c0_78 = arith.constant 0 : index
    %155 = vector.load %arg13[%c0_77, %c0_78] : memref<1x8xf32, #tpu.memory_space<vmem>>, vector<1x8xf32>
    %156 = vector.broadcast %155 : vector<1x8xf32> to vector<8x8xf32>
    %157 = arith.addf %154, %156 : vector<8x8xf32>
    %c0_79 = arith.constant 0 : index
    %158 = arith.index_cast %93 : i32 to index
    %159 = memref.load %arg1[%c0_79, %158] : memref<3x10xf32, #tpu.memory_space<smem>>
    %c1_80 = arith.constant 1 : index
    %160 = arith.index_cast %93 : i32 to index
    %161 = memref.load %arg1[%c1_80, %160] : memref<3x10xf32, #tpu.memory_space<smem>>
    %c2_81 = arith.constant 2 : index
    %162 = arith.index_cast %93 : i32 to index
    %163 = memref.load %arg1[%c2_81, %162] : memref<3x10xf32, #tpu.memory_space<smem>>
    %164 = vector.broadcast %159 : f32 to vector<8x8xf32>
    %165 = arith.mulf %164, %92 : vector<8x8xf32>
    %166 = vector.broadcast %161 : f32 to vector<8x8xf32>
    %167 = arith.mulf %166, %157 : vector<8x8xf32>
    %168 = arith.subf %165, %167 : vector<8x8xf32>
    %169 = arith.index_cast %93 : i32 to index
    %c0_82 = arith.constant 0 : index
    %c0_83 = arith.constant 0 : index
    %170 = vector.load %arg4[%169, %c0_82, %c0_83] : memref<10x8x8xf32, #tpu.memory_space<vmem>>, vector<1x8x8xf32>
    %171 = vector.shape_cast %170 : vector<1x8x8xf32> to vector<8x8xf32>
    %172 = vector.broadcast %163 : f32 to vector<8x8xf32>
    %173 = arith.mulf %172, %171 : vector<8x8xf32>
    %174 = arith.addf %168, %173 : vector<8x8xf32>
    %c2_i32 = arith.constant 2 : i32
    %c9_i32_84 = arith.constant 9 : i32
    %175 = arith.subi %c9_i32_84, %c2_i32 : i32
    %176 = arith.truncf %174 : vector<8x8xf32> to vector<8x8xbf16>
    %c0_85 = arith.constant 0 : index
    %c0_86 = arith.constant 0 : index
    %177 = vector.load %arg6[%c0_85, %c0_86] : memref<8x128xbf16, #tpu.memory_space<vmem>>, vector<8x128xbf16>
    %cst_87 = arith.constant dense<0.000000e+00> : vector<8x128xf32>
    %178 = tpu.matmul %176, %177, %cst_87 {dimension_numbers = #tpu.dot_dimension_numbers<[1], [0], [0], [1], [0, 0, 1, 1], [], []>} : vector<8x8xbf16>, vector<8x128xbf16>, vector<8x128xf32> -> vector<8x128xf32>
    %179 = arith.index_cast %175 : i32 to index
    %c0_88 = arith.constant 0 : index
    %c0_89 = arith.constant 0 : index
    %180 = vector.load %arg15[%179, %c0_88, %c0_89] : memref<10x8x128xf32, #tpu.memory_space<vmem>>, vector<1x8x128xf32>
    %181 = vector.shape_cast %180 : vector<1x8x128xf32> to vector<8x128xf32>
    %182 = arith.addf %178, %181 : vector<8x128xf32>
    %cst_90 = arith.constant 2.000000e+01 : f32
    %183 = vector.broadcast %cst_90 : f32 to vector<8x128xf32>
    %184 = arith.minimumf %182, %183 : vector<8x128xf32>
    %185 = math.exp %184 : vector<8x128xf32>
    %cst_91 = arith.constant 1.000000e+00 : f32
    %186 = vector.broadcast %cst_91 : f32 to vector<8x128xf32>
    %187 = arith.addf %186, %185 : vector<8x128xf32>
    %188 = arith.mulf %187, %187 : vector<8x128xf32>
    %cst_92 = arith.constant 1.000000e+00 : f32
    %189 = vector.broadcast %cst_92 : f32 to vector<8x128xf32>
    %190 = arith.subf %188, %189 : vector<8x128xf32>
    %191 = arith.mulf %182, %190 : vector<8x128xf32>
    %cst_93 = arith.constant 1.000000e+00 : f32
    %192 = vector.broadcast %cst_93 : f32 to vector<8x128xf32>
    %193 = arith.addf %188, %192 : vector<8x128xf32>
    %194 = tpu.reciprocal %193 {approx = true} : vector<8x128xf32> -> vector<8x128xf32>
    %195 = arith.mulf %191, %194 : vector<8x128xf32>
    %196 = arith.truncf %195 : vector<8x128xf32> to vector<8x128xbf16>
    %c0_94 = arith.constant 0 : index
    %c0_95 = arith.constant 0 : index
    %197 = vector.load %arg8[%c0_94, %c0_95] : memref<128x128xbf16, #tpu.memory_space<vmem>>, vector<128x128xbf16>
    %cst_96 = arith.constant dense<0.000000e+00> : vector<8x128xf32>
    %198 = tpu.matmul %196, %197, %cst_96 {dimension_numbers = #tpu.dot_dimension_numbers<[1], [0], [0], [1], [0, 0, 1, 1], [], []>} : vector<8x128xbf16>, vector<128x128xbf16>, vector<8x128xf32> -> vector<8x128xf32>
    %c0_97 = arith.constant 0 : index
    %c0_98 = arith.constant 0 : index
    %199 = vector.load %arg9[%c0_97, %c0_98] : memref<1x128xf32, #tpu.memory_space<vmem>>, vector<1x128xf32>
    %200 = vector.broadcast %199 : vector<1x128xf32> to vector<8x128xf32>
    %201 = arith.addf %198, %200 : vector<8x128xf32>
    %cst_99 = arith.constant 2.000000e+01 : f32
    %202 = vector.broadcast %cst_99 : f32 to vector<8x128xf32>
    %203 = arith.minimumf %201, %202 : vector<8x128xf32>
    %204 = math.exp %203 : vector<8x128xf32>
    %cst_100 = arith.constant 1.000000e+00 : f32
    %205 = vector.broadcast %cst_100 : f32 to vector<8x128xf32>
    %206 = arith.addf %205, %204 : vector<8x128xf32>
    %207 = arith.mulf %206, %206 : vector<8x128xf32>
    %cst_101 = arith.constant 1.000000e+00 : f32
    %208 = vector.broadcast %cst_101 : f32 to vector<8x128xf32>
    %209 = arith.subf %207, %208 : vector<8x128xf32>
    %210 = arith.mulf %201, %209 : vector<8x128xf32>
    %cst_102 = arith.constant 1.000000e+00 : f32
    %211 = vector.broadcast %cst_102 : f32 to vector<8x128xf32>
    %212 = arith.addf %207, %211 : vector<8x128xf32>
    %213 = tpu.reciprocal %212 {approx = true} : vector<8x128xf32> -> vector<8x128xf32>
    %214 = arith.mulf %210, %213 : vector<8x128xf32>
    %215 = arith.truncf %214 : vector<8x128xf32> to vector<8x128xbf16>
    %c0_103 = arith.constant 0 : index
    %c0_104 = arith.constant 0 : index
    %216 = vector.load %arg10[%c0_103, %c0_104] : memref<128x128xbf16, #tpu.memory_space<vmem>>, vector<128x128xbf16>
    %cst_105 = arith.constant dense<0.000000e+00> : vector<8x128xf32>
    %217 = tpu.matmul %215, %216, %cst_105 {dimension_numbers = #tpu.dot_dimension_numbers<[1], [0], [0], [1], [0, 0, 1, 1], [], []>} : vector<8x128xbf16>, vector<128x128xbf16>, vector<8x128xf32> -> vector<8x128xf32>
    %c0_106 = arith.constant 0 : index
    %c0_107 = arith.constant 0 : index
    %218 = vector.load %arg11[%c0_106, %c0_107] : memref<1x128xf32, #tpu.memory_space<vmem>>, vector<1x128xf32>
    %219 = vector.broadcast %218 : vector<1x128xf32> to vector<8x128xf32>
    %220 = arith.addf %217, %219 : vector<8x128xf32>
    %cst_108 = arith.constant 2.000000e+01 : f32
    %221 = vector.broadcast %cst_108 : f32 to vector<8x128xf32>
    %222 = arith.minimumf %220, %221 : vector<8x128xf32>
    %223 = math.exp %222 : vector<8x128xf32>
    %cst_109 = arith.constant 1.000000e+00 : f32
    %224 = vector.broadcast %cst_109 : f32 to vector<8x128xf32>
    %225 = arith.addf %224, %223 : vector<8x128xf32>
    %226 = arith.mulf %225, %225 : vector<8x128xf32>
    %cst_110 = arith.constant 1.000000e+00 : f32
    %227 = vector.broadcast %cst_110 : f32 to vector<8x128xf32>
    %228 = arith.subf %226, %227 : vector<8x128xf32>
    %229 = arith.mulf %220, %228 : vector<8x128xf32>
    %cst_111 = arith.constant 1.000000e+00 : f32
    %230 = vector.broadcast %cst_111 : f32 to vector<8x128xf32>
    %231 = arith.addf %226, %230 : vector<8x128xf32>
    %232 = tpu.reciprocal %231 {approx = true} : vector<8x128xf32> -> vector<8x128xf32>
    %233 = arith.mulf %229, %232 : vector<8x128xf32>
    %234 = arith.truncf %233 : vector<8x128xf32> to vector<8x128xbf16>
    %c0_112 = arith.constant 0 : index
    %c0_113 = arith.constant 0 : index
    %235 = vector.load %arg12[%c0_112, %c0_113] : memref<128x8xbf16, #tpu.memory_space<vmem>>, vector<128x8xbf16>
    %cst_114 = arith.constant dense<0.000000e+00> : vector<8x8xf32>
    %236 = tpu.matmul %234, %235, %cst_114 {dimension_numbers = #tpu.dot_dimension_numbers<[1], [0], [0], [1], [0, 0, 1, 1], [], []>} : vector<8x128xbf16>, vector<128x8xbf16>, vector<8x8xf32> -> vector<8x8xf32>
    %c0_115 = arith.constant 0 : index
    %c0_116 = arith.constant 0 : index
    %237 = vector.load %arg13[%c0_115, %c0_116] : memref<1x8xf32, #tpu.memory_space<vmem>>, vector<1x8xf32>
    %238 = vector.broadcast %237 : vector<1x8xf32> to vector<8x8xf32>
    %239 = arith.addf %236, %238 : vector<8x8xf32>
    %c0_117 = arith.constant 0 : index
    %240 = arith.index_cast %175 : i32 to index
    %241 = memref.load %arg1[%c0_117, %240] : memref<3x10xf32, #tpu.memory_space<smem>>
    %c1_118 = arith.constant 1 : index
    %242 = arith.index_cast %175 : i32 to index
    %243 = memref.load %arg1[%c1_118, %242] : memref<3x10xf32, #tpu.memory_space<smem>>
    %c2_119 = arith.constant 2 : index
    %244 = arith.index_cast %175 : i32 to index
    %245 = memref.load %arg1[%c2_119, %244] : memref<3x10xf32, #tpu.memory_space<smem>>
    %246 = vector.broadcast %241 : f32 to vector<8x8xf32>
    %247 = arith.mulf %246, %174 : vector<8x8xf32>
    %248 = vector.broadcast %243 : f32 to vector<8x8xf32>
    %249 = arith.mulf %248, %239 : vector<8x8xf32>
    %250 = arith.subf %247, %249 : vector<8x8xf32>
    %251 = arith.index_cast %175 : i32 to index
    %c0_120 = arith.constant 0 : index
    %c0_121 = arith.constant 0 : index
    %252 = vector.load %arg4[%251, %c0_120, %c0_121] : memref<10x8x8xf32, #tpu.memory_space<vmem>>, vector<1x8x8xf32>
    %253 = vector.shape_cast %252 : vector<1x8x8xf32> to vector<8x8xf32>
    %254 = vector.broadcast %245 : f32 to vector<8x8xf32>
    %255 = arith.mulf %254, %253 : vector<8x8xf32>
    %256 = arith.addf %250, %255 : vector<8x8xf32>
    %c3_i32 = arith.constant 3 : i32
    %c9_i32_122 = arith.constant 9 : i32
    %257 = arith.subi %c9_i32_122, %c3_i32 : i32
    %258 = arith.truncf %256 : vector<8x8xf32> to vector<8x8xbf16>
    %c0_123 = arith.constant 0 : index
    %c0_124 = arith.constant 0 : index
    %259 = vector.load %arg6[%c0_123, %c0_124] : memref<8x128xbf16, #tpu.memory_space<vmem>>, vector<8x128xbf16>
    %cst_125 = arith.constant dense<0.000000e+00> : vector<8x128xf32>
    %260 = tpu.matmul %258, %259, %cst_125 {dimension_numbers = #tpu.dot_dimension_numbers<[1], [0], [0], [1], [0, 0, 1, 1], [], []>} : vector<8x8xbf16>, vector<8x128xbf16>, vector<8x128xf32> -> vector<8x128xf32>
    %261 = arith.index_cast %257 : i32 to index
    %c0_126 = arith.constant 0 : index
    %c0_127 = arith.constant 0 : index
    %262 = vector.load %arg15[%261, %c0_126, %c0_127] : memref<10x8x128xf32, #tpu.memory_space<vmem>>, vector<1x8x128xf32>
    %263 = vector.shape_cast %262 : vector<1x8x128xf32> to vector<8x128xf32>
    %264 = arith.addf %260, %263 : vector<8x128xf32>
    %cst_128 = arith.constant 2.000000e+01 : f32
    %265 = vector.broadcast %cst_128 : f32 to vector<8x128xf32>
    %266 = arith.minimumf %264, %265 : vector<8x128xf32>
    %267 = math.exp %266 : vector<8x128xf32>
    %cst_129 = arith.constant 1.000000e+00 : f32
    %268 = vector.broadcast %cst_129 : f32 to vector<8x128xf32>
    %269 = arith.addf %268, %267 : vector<8x128xf32>
    %270 = arith.mulf %269, %269 : vector<8x128xf32>
    %cst_130 = arith.constant 1.000000e+00 : f32
    %271 = vector.broadcast %cst_130 : f32 to vector<8x128xf32>
    %272 = arith.subf %270, %271 : vector<8x128xf32>
    %273 = arith.mulf %264, %272 : vector<8x128xf32>
    %cst_131 = arith.constant 1.000000e+00 : f32
    %274 = vector.broadcast %cst_131 : f32 to vector<8x128xf32>
    %275 = arith.addf %270, %274 : vector<8x128xf32>
    %276 = tpu.reciprocal %275 {approx = true} : vector<8x128xf32> -> vector<8x128xf32>
    %277 = arith.mulf %273, %276 : vector<8x128xf32>
    %278 = arith.truncf %277 : vector<8x128xf32> to vector<8x128xbf16>
    %c0_132 = arith.constant 0 : index
    %c0_133 = arith.constant 0 : index
    %279 = vector.load %arg8[%c0_132, %c0_133] : memref<128x128xbf16, #tpu.memory_space<vmem>>, vector<128x128xbf16>
    %cst_134 = arith.constant dense<0.000000e+00> : vector<8x128xf32>
    %280 = tpu.matmul %278, %279, %cst_134 {dimension_numbers = #tpu.dot_dimension_numbers<[1], [0], [0], [1], [0, 0, 1, 1], [], []>} : vector<8x128xbf16>, vector<128x128xbf16>, vector<8x128xf32> -> vector<8x128xf32>
    %c0_135 = arith.constant 0 : index
    %c0_136 = arith.constant 0 : index
    %281 = vector.load %arg9[%c0_135, %c0_136] : memref<1x128xf32, #tpu.memory_space<vmem>>, vector<1x128xf32>
    %282 = vector.broadcast %281 : vector<1x128xf32> to vector<8x128xf32>
    %283 = arith.addf %280, %282 : vector<8x128xf32>
    %cst_137 = arith.constant 2.000000e+01 : f32
    %284 = vector.broadcast %cst_137 : f32 to vector<8x128xf32>
    %285 = arith.minimumf %283, %284 : vector<8x128xf32>
    %286 = math.exp %285 : vector<8x128xf32>
    %cst_138 = arith.constant 1.000000e+00 : f32
    %287 = vector.broadcast %cst_138 : f32 to vector<8x128xf32>
    %288 = arith.addf %287, %286 : vector<8x128xf32>
    %289 = arith.mulf %288, %288 : vector<8x128xf32>
    %cst_139 = arith.constant 1.000000e+00 : f32
    %290 = vector.broadcast %cst_139 : f32 to vector<8x128xf32>
    %291 = arith.subf %289, %290 : vector<8x128xf32>
    %292 = arith.mulf %283, %291 : vector<8x128xf32>
    %cst_140 = arith.constant 1.000000e+00 : f32
    %293 = vector.broadcast %cst_140 : f32 to vector<8x128xf32>
    %294 = arith.addf %289, %293 : vector<8x128xf32>
    %295 = tpu.reciprocal %294 {approx = true} : vector<8x128xf32> -> vector<8x128xf32>
    %296 = arith.mulf %292, %295 : vector<8x128xf32>
    %297 = arith.truncf %296 : vector<8x128xf32> to vector<8x128xbf16>
    %c0_141 = arith.constant 0 : index
    %c0_142 = arith.constant 0 : index
    %298 = vector.load %arg10[%c0_141, %c0_142] : memref<128x128xbf16, #tpu.memory_space<vmem>>, vector<128x128xbf16>
    %cst_143 = arith.constant dense<0.000000e+00> : vector<8x128xf32>
    %299 = tpu.matmul %297, %298, %cst_143 {dimension_numbers = #tpu.dot_dimension_numbers<[1], [0], [0], [1], [0, 0, 1, 1], [], []>} : vector<8x128xbf16>, vector<128x128xbf16>, vector<8x128xf32> -> vector<8x128xf32>
    %c0_144 = arith.constant 0 : index
    %c0_145 = arith.constant 0 : index
    %300 = vector.load %arg11[%c0_144, %c0_145] : memref<1x128xf32, #tpu.memory_space<vmem>>, vector<1x128xf32>
    %301 = vector.broadcast %300 : vector<1x128xf32> to vector<8x128xf32>
    %302 = arith.addf %299, %301 : vector<8x128xf32>
    %cst_146 = arith.constant 2.000000e+01 : f32
    %303 = vector.broadcast %cst_146 : f32 to vector<8x128xf32>
    %304 = arith.minimumf %302, %303 : vector<8x128xf32>
    %305 = math.exp %304 : vector<8x128xf32>
    %cst_147 = arith.constant 1.000000e+00 : f32
    %306 = vector.broadcast %cst_147 : f32 to vector<8x128xf32>
    %307 = arith.addf %306, %305 : vector<8x128xf32>
    %308 = arith.mulf %307, %307 : vector<8x128xf32>
    %cst_148 = arith.constant 1.000000e+00 : f32
    %309 = vector.broadcast %cst_148 : f32 to vector<8x128xf32>
    %310 = arith.subf %308, %309 : vector<8x128xf32>
    %311 = arith.mulf %302, %310 : vector<8x128xf32>
    %cst_149 = arith.constant 1.000000e+00 : f32
    %312 = vector.broadcast %cst_149 : f32 to vector<8x128xf32>
    %313 = arith.addf %308, %312 : vector<8x128xf32>
    %314 = tpu.reciprocal %313 {approx = true} : vector<8x128xf32> -> vector<8x128xf32>
    %315 = arith.mulf %311, %314 : vector<8x128xf32>
    %316 = arith.truncf %315 : vector<8x128xf32> to vector<8x128xbf16>
    %c0_150 = arith.constant 0 : index
    %c0_151 = arith.constant 0 : index
    %317 = vector.load %arg12[%c0_150, %c0_151] : memref<128x8xbf16, #tpu.memory_space<vmem>>, vector<128x8xbf16>
    %cst_152 = arith.constant dense<0.000000e+00> : vector<8x8xf32>
    %318 = tpu.matmul %316, %317, %cst_152 {dimension_numbers = #tpu.dot_dimension_numbers<[1], [0], [0], [1], [0, 0, 1, 1], [], []>} : vector<8x128xbf16>, vector<128x8xbf16>, vector<8x8xf32> -> vector<8x8xf32>
    %c0_153 = arith.constant 0 : index
    %c0_154 = arith.constant 0 : index
    %319 = vector.load %arg13[%c0_153, %c0_154] : memref<1x8xf32, #tpu.memory_space<vmem>>, vector<1x8xf32>
    %320 = vector.broadcast %319 : vector<1x8xf32> to vector<8x8xf32>
    %321 = arith.addf %318, %320 : vector<8x8xf32>
    %c0_155 = arith.constant 0 : index
    %322 = arith.index_cast %257 : i32 to index
    %323 = memref.load %arg1[%c0_155, %322] : memref<3x10xf32, #tpu.memory_space<smem>>
    %c1_156 = arith.constant 1 : index
    %324 = arith.index_cast %257 : i32 to index
    %325 = memref.load %arg1[%c1_156, %324] : memref<3x10xf32, #tpu.memory_space<smem>>
    %c2_157 = arith.constant 2 : index
    %326 = arith.index_cast %257 : i32 to index
    %327 = memref.load %arg1[%c2_157, %326] : memref<3x10xf32, #tpu.memory_space<smem>>
    %328 = vector.broadcast %323 : f32 to vector<8x8xf32>
    %329 = arith.mulf %328, %256 : vector<8x8xf32>
    %330 = vector.broadcast %325 : f32 to vector<8x8xf32>
    %331 = arith.mulf %330, %321 : vector<8x8xf32>
    %332 = arith.subf %329, %331 : vector<8x8xf32>
    %333 = arith.index_cast %257 : i32 to index
    %c0_158 = arith.constant 0 : index
    %c0_159 = arith.constant 0 : index
    %334 = vector.load %arg4[%333, %c0_158, %c0_159] : memref<10x8x8xf32, #tpu.memory_space<vmem>>, vector<1x8x8xf32>
    %335 = vector.shape_cast %334 : vector<1x8x8xf32> to vector<8x8xf32>
    %336 = vector.broadcast %327 : f32 to vector<8x8xf32>
    %337 = arith.mulf %336, %335 : vector<8x8xf32>
    %338 = arith.addf %332, %337 : vector<8x8xf32>
    %c4_i32 = arith.constant 4 : i32
    %c9_i32_160 = arith.constant 9 : i32
    %339 = arith.subi %c9_i32_160, %c4_i32 : i32
    %340 = arith.truncf %338 : vector<8x8xf32> to vector<8x8xbf16>
    %c0_161 = arith.constant 0 : index
    %c0_162 = arith.constant 0 : index
    %341 = vector.load %arg6[%c0_161, %c0_162] : memref<8x128xbf16, #tpu.memory_space<vmem>>, vector<8x128xbf16>
    %cst_163 = arith.constant dense<0.000000e+00> : vector<8x128xf32>
    %342 = tpu.matmul %340, %341, %cst_163 {dimension_numbers = #tpu.dot_dimension_numbers<[1], [0], [0], [1], [0, 0, 1, 1], [], []>} : vector<8x8xbf16>, vector<8x128xbf16>, vector<8x128xf32> -> vector<8x128xf32>
    %343 = arith.index_cast %339 : i32 to index
    %c0_164 = arith.constant 0 : index
    %c0_165 = arith.constant 0 : index
    %344 = vector.load %arg15[%343, %c0_164, %c0_165] : memref<10x8x128xf32, #tpu.memory_space<vmem>>, vector<1x8x128xf32>
    %345 = vector.shape_cast %344 : vector<1x8x128xf32> to vector<8x128xf32>
    %346 = arith.addf %342, %345 : vector<8x128xf32>
    %cst_166 = arith.constant 2.000000e+01 : f32
    %347 = vector.broadcast %cst_166 : f32 to vector<8x128xf32>
    %348 = arith.minimumf %346, %347 : vector<8x128xf32>
    %349 = math.exp %348 : vector<8x128xf32>
    %cst_167 = arith.constant 1.000000e+00 : f32
    %350 = vector.broadcast %cst_167 : f32 to vector<8x128xf32>
    %351 = arith.addf %350, %349 : vector<8x128xf32>
    %352 = arith.mulf %351, %351 : vector<8x128xf32>
    %cst_168 = arith.constant 1.000000e+00 : f32
    %353 = vector.broadcast %cst_168 : f32 to vector<8x128xf32>
    %354 = arith.subf %352, %353 : vector<8x128xf32>
    %355 = arith.mulf %346, %354 : vector<8x128xf32>
    %cst_169 = arith.constant 1.000000e+00 : f32
    %356 = vector.broadcast %cst_169 : f32 to vector<8x128xf32>
    %357 = arith.addf %352, %356 : vector<8x128xf32>
    %358 = tpu.reciprocal %357 {approx = true} : vector<8x128xf32> -> vector<8x128xf32>
    %359 = arith.mulf %355, %358 : vector<8x128xf32>
    %360 = arith.truncf %359 : vector<8x128xf32> to vector<8x128xbf16>
    %c0_170 = arith.constant 0 : index
    %c0_171 = arith.constant 0 : index
    %361 = vector.load %arg8[%c0_170, %c0_171] : memref<128x128xbf16, #tpu.memory_space<vmem>>, vector<128x128xbf16>
    %cst_172 = arith.constant dense<0.000000e+00> : vector<8x128xf32>
    %362 = tpu.matmul %360, %361, %cst_172 {dimension_numbers = #tpu.dot_dimension_numbers<[1], [0], [0], [1], [0, 0, 1, 1], [], []>} : vector<8x128xbf16>, vector<128x128xbf16>, vector<8x128xf32> -> vector<8x128xf32>
    %c0_173 = arith.constant 0 : index
    %c0_174 = arith.constant 0 : index
    %363 = vector.load %arg9[%c0_173, %c0_174] : memref<1x128xf32, #tpu.memory_space<vmem>>, vector<1x128xf32>
    %364 = vector.broadcast %363 : vector<1x128xf32> to vector<8x128xf32>
    %365 = arith.addf %362, %364 : vector<8x128xf32>
    %cst_175 = arith.constant 2.000000e+01 : f32
    %366 = vector.broadcast %cst_175 : f32 to vector<8x128xf32>
    %367 = arith.minimumf %365, %366 : vector<8x128xf32>
    %368 = math.exp %367 : vector<8x128xf32>
    %cst_176 = arith.constant 1.000000e+00 : f32
    %369 = vector.broadcast %cst_176 : f32 to vector<8x128xf32>
    %370 = arith.addf %369, %368 : vector<8x128xf32>
    %371 = arith.mulf %370, %370 : vector<8x128xf32>
    %cst_177 = arith.constant 1.000000e+00 : f32
    %372 = vector.broadcast %cst_177 : f32 to vector<8x128xf32>
    %373 = arith.subf %371, %372 : vector<8x128xf32>
    %374 = arith.mulf %365, %373 : vector<8x128xf32>
    %cst_178 = arith.constant 1.000000e+00 : f32
    %375 = vector.broadcast %cst_178 : f32 to vector<8x128xf32>
    %376 = arith.addf %371, %375 : vector<8x128xf32>
    %377 = tpu.reciprocal %376 {approx = true} : vector<8x128xf32> -> vector<8x128xf32>
    %378 = arith.mulf %374, %377 : vector<8x128xf32>
    %379 = arith.truncf %378 : vector<8x128xf32> to vector<8x128xbf16>
    %c0_179 = arith.constant 0 : index
    %c0_180 = arith.constant 0 : index
    %380 = vector.load %arg10[%c0_179, %c0_180] : memref<128x128xbf16, #tpu.memory_space<vmem>>, vector<128x128xbf16>
    %cst_181 = arith.constant dense<0.000000e+00> : vector<8x128xf32>
    %381 = tpu.matmul %379, %380, %cst_181 {dimension_numbers = #tpu.dot_dimension_numbers<[1], [0], [0], [1], [0, 0, 1, 1], [], []>} : vector<8x128xbf16>, vector<128x128xbf16>, vector<8x128xf32> -> vector<8x128xf32>
    %c0_182 = arith.constant 0 : index
    %c0_183 = arith.constant 0 : index
    %382 = vector.load %arg11[%c0_182, %c0_183] : memref<1x128xf32, #tpu.memory_space<vmem>>, vector<1x128xf32>
    %383 = vector.broadcast %382 : vector<1x128xf32> to vector<8x128xf32>
    %384 = arith.addf %381, %383 : vector<8x128xf32>
    %cst_184 = arith.constant 2.000000e+01 : f32
    %385 = vector.broadcast %cst_184 : f32 to vector<8x128xf32>
    %386 = arith.minimumf %384, %385 : vector<8x128xf32>
    %387 = math.exp %386 : vector<8x128xf32>
    %cst_185 = arith.constant 1.000000e+00 : f32
    %388 = vector.broadcast %cst_185 : f32 to vector<8x128xf32>
    %389 = arith.addf %388, %387 : vector<8x128xf32>
    %390 = arith.mulf %389, %389 : vector<8x128xf32>
    %cst_186 = arith.constant 1.000000e+00 : f32
    %391 = vector.broadcast %cst_186 : f32 to vector<8x128xf32>
    %392 = arith.subf %390, %391 : vector<8x128xf32>
    %393 = arith.mulf %384, %392 : vector<8x128xf32>
    %cst_187 = arith.constant 1.000000e+00 : f32
    %394 = vector.broadcast %cst_187 : f32 to vector<8x128xf32>
    %395 = arith.addf %390, %394 : vector<8x128xf32>
    %396 = tpu.reciprocal %395 {approx = true} : vector<8x128xf32> -> vector<8x128xf32>
    %397 = arith.mulf %393, %396 : vector<8x128xf32>
    %398 = arith.truncf %397 : vector<8x128xf32> to vector<8x128xbf16>
    %c0_188 = arith.constant 0 : index
    %c0_189 = arith.constant 0 : index
    %399 = vector.load %arg12[%c0_188, %c0_189] : memref<128x8xbf16, #tpu.memory_space<vmem>>, vector<128x8xbf16>
    %cst_190 = arith.constant dense<0.000000e+00> : vector<8x8xf32>
    %400 = tpu.matmul %398, %399, %cst_190 {dimension_numbers = #tpu.dot_dimension_numbers<[1], [0], [0], [1], [0, 0, 1, 1], [], []>} : vector<8x128xbf16>, vector<128x8xbf16>, vector<8x8xf32> -> vector<8x8xf32>
    %c0_191 = arith.constant 0 : index
    %c0_192 = arith.constant 0 : index
    %401 = vector.load %arg13[%c0_191, %c0_192] : memref<1x8xf32, #tpu.memory_space<vmem>>, vector<1x8xf32>
    %402 = vector.broadcast %401 : vector<1x8xf32> to vector<8x8xf32>
    %403 = arith.addf %400, %402 : vector<8x8xf32>
    %c0_193 = arith.constant 0 : index
    %404 = arith.index_cast %339 : i32 to index
    %405 = memref.load %arg1[%c0_193, %404] : memref<3x10xf32, #tpu.memory_space<smem>>
    %c1_194 = arith.constant 1 : index
    %406 = arith.index_cast %339 : i32 to index
    %407 = memref.load %arg1[%c1_194, %406] : memref<3x10xf32, #tpu.memory_space<smem>>
    %c2_195 = arith.constant 2 : index
    %408 = arith.index_cast %339 : i32 to index
    %409 = memref.load %arg1[%c2_195, %408] : memref<3x10xf32, #tpu.memory_space<smem>>
    %410 = vector.broadcast %405 : f32 to vector<8x8xf32>
    %411 = arith.mulf %410, %338 : vector<8x8xf32>
    %412 = vector.broadcast %407 : f32 to vector<8x8xf32>
    %413 = arith.mulf %412, %403 : vector<8x8xf32>
    %414 = arith.subf %411, %413 : vector<8x8xf32>
    %415 = arith.index_cast %339 : i32 to index
    %c0_196 = arith.constant 0 : index
    %c0_197 = arith.constant 0 : index
    %416 = vector.load %arg4[%415, %c0_196, %c0_197] : memref<10x8x8xf32, #tpu.memory_space<vmem>>, vector<1x8x8xf32>
    %417 = vector.shape_cast %416 : vector<1x8x8xf32> to vector<8x8xf32>
    %418 = vector.broadcast %409 : f32 to vector<8x8xf32>
    %419 = arith.mulf %418, %417 : vector<8x8xf32>
    %420 = arith.addf %414, %419 : vector<8x8xf32>
    %c5_i32 = arith.constant 5 : i32
    %c9_i32_198 = arith.constant 9 : i32
    %421 = arith.subi %c9_i32_198, %c5_i32 : i32
    %422 = arith.truncf %420 : vector<8x8xf32> to vector<8x8xbf16>
    %c0_199 = arith.constant 0 : index
    %c0_200 = arith.constant 0 : index
    %423 = vector.load %arg6[%c0_199, %c0_200] : memref<8x128xbf16, #tpu.memory_space<vmem>>, vector<8x128xbf16>
    %cst_201 = arith.constant dense<0.000000e+00> : vector<8x128xf32>
    %424 = tpu.matmul %422, %423, %cst_201 {dimension_numbers = #tpu.dot_dimension_numbers<[1], [0], [0], [1], [0, 0, 1, 1], [], []>} : vector<8x8xbf16>, vector<8x128xbf16>, vector<8x128xf32> -> vector<8x128xf32>
    %425 = arith.index_cast %421 : i32 to index
    %c0_202 = arith.constant 0 : index
    %c0_203 = arith.constant 0 : index
    %426 = vector.load %arg15[%425, %c0_202, %c0_203] : memref<10x8x128xf32, #tpu.memory_space<vmem>>, vector<1x8x128xf32>
    %427 = vector.shape_cast %426 : vector<1x8x128xf32> to vector<8x128xf32>
    %428 = arith.addf %424, %427 : vector<8x128xf32>
    %cst_204 = arith.constant 2.000000e+01 : f32
    %429 = vector.broadcast %cst_204 : f32 to vector<8x128xf32>
    %430 = arith.minimumf %428, %429 : vector<8x128xf32>
    %431 = math.exp %430 : vector<8x128xf32>
    %cst_205 = arith.constant 1.000000e+00 : f32
    %432 = vector.broadcast %cst_205 : f32 to vector<8x128xf32>
    %433 = arith.addf %432, %431 : vector<8x128xf32>
    %434 = arith.mulf %433, %433 : vector<8x128xf32>
    %cst_206 = arith.constant 1.000000e+00 : f32
    %435 = vector.broadcast %cst_206 : f32 to vector<8x128xf32>
    %436 = arith.subf %434, %435 : vector<8x128xf32>
    %437 = arith.mulf %428, %436 : vector<8x128xf32>
    %cst_207 = arith.constant 1.000000e+00 : f32
    %438 = vector.broadcast %cst_207 : f32 to vector<8x128xf32>
    %439 = arith.addf %434, %438 : vector<8x128xf32>
    %440 = tpu.reciprocal %439 {approx = true} : vector<8x128xf32> -> vector<8x128xf32>
    %441 = arith.mulf %437, %440 : vector<8x128xf32>
    %442 = arith.truncf %441 : vector<8x128xf32> to vector<8x128xbf16>
    %c0_208 = arith.constant 0 : index
    %c0_209 = arith.constant 0 : index
    %443 = vector.load %arg8[%c0_208, %c0_209] : memref<128x128xbf16, #tpu.memory_space<vmem>>, vector<128x128xbf16>
    %cst_210 = arith.constant dense<0.000000e+00> : vector<8x128xf32>
    %444 = tpu.matmul %442, %443, %cst_210 {dimension_numbers = #tpu.dot_dimension_numbers<[1], [0], [0], [1], [0, 0, 1, 1], [], []>} : vector<8x128xbf16>, vector<128x128xbf16>, vector<8x128xf32> -> vector<8x128xf32>
    %c0_211 = arith.constant 0 : index
    %c0_212 = arith.constant 0 : index
    %445 = vector.load %arg9[%c0_211, %c0_212] : memref<1x128xf32, #tpu.memory_space<vmem>>, vector<1x128xf32>
    %446 = vector.broadcast %445 : vector<1x128xf32> to vector<8x128xf32>
    %447 = arith.addf %444, %446 : vector<8x128xf32>
    %cst_213 = arith.constant 2.000000e+01 : f32
    %448 = vector.broadcast %cst_213 : f32 to vector<8x128xf32>
    %449 = arith.minimumf %447, %448 : vector<8x128xf32>
    %450 = math.exp %449 : vector<8x128xf32>
    %cst_214 = arith.constant 1.000000e+00 : f32
    %451 = vector.broadcast %cst_214 : f32 to vector<8x128xf32>
    %452 = arith.addf %451, %450 : vector<8x128xf32>
    %453 = arith.mulf %452, %452 : vector<8x128xf32>
    %cst_215 = arith.constant 1.000000e+00 : f32
    %454 = vector.broadcast %cst_215 : f32 to vector<8x128xf32>
    %455 = arith.subf %453, %454 : vector<8x128xf32>
    %456 = arith.mulf %447, %455 : vector<8x128xf32>
    %cst_216 = arith.constant 1.000000e+00 : f32
    %457 = vector.broadcast %cst_216 : f32 to vector<8x128xf32>
    %458 = arith.addf %453, %457 : vector<8x128xf32>
    %459 = tpu.reciprocal %458 {approx = true} : vector<8x128xf32> -> vector<8x128xf32>
    %460 = arith.mulf %456, %459 : vector<8x128xf32>
    %461 = arith.truncf %460 : vector<8x128xf32> to vector<8x128xbf16>
    %c0_217 = arith.constant 0 : index
    %c0_218 = arith.constant 0 : index
    %462 = vector.load %arg10[%c0_217, %c0_218] : memref<128x128xbf16, #tpu.memory_space<vmem>>, vector<128x128xbf16>
    %cst_219 = arith.constant dense<0.000000e+00> : vector<8x128xf32>
    %463 = tpu.matmul %461, %462, %cst_219 {dimension_numbers = #tpu.dot_dimension_numbers<[1], [0], [0], [1], [0, 0, 1, 1], [], []>} : vector<8x128xbf16>, vector<128x128xbf16>, vector<8x128xf32> -> vector<8x128xf32>
    %c0_220 = arith.constant 0 : index
    %c0_221 = arith.constant 0 : index
    %464 = vector.load %arg11[%c0_220, %c0_221] : memref<1x128xf32, #tpu.memory_space<vmem>>, vector<1x128xf32>
    %465 = vector.broadcast %464 : vector<1x128xf32> to vector<8x128xf32>
    %466 = arith.addf %463, %465 : vector<8x128xf32>
    %cst_222 = arith.constant 2.000000e+01 : f32
    %467 = vector.broadcast %cst_222 : f32 to vector<8x128xf32>
    %468 = arith.minimumf %466, %467 : vector<8x128xf32>
    %469 = math.exp %468 : vector<8x128xf32>
    %cst_223 = arith.constant 1.000000e+00 : f32
    %470 = vector.broadcast %cst_223 : f32 to vector<8x128xf32>
    %471 = arith.addf %470, %469 : vector<8x128xf32>
    %472 = arith.mulf %471, %471 : vector<8x128xf32>
    %cst_224 = arith.constant 1.000000e+00 : f32
    %473 = vector.broadcast %cst_224 : f32 to vector<8x128xf32>
    %474 = arith.subf %472, %473 : vector<8x128xf32>
    %475 = arith.mulf %466, %474 : vector<8x128xf32>
    %cst_225 = arith.constant 1.000000e+00 : f32
    %476 = vector.broadcast %cst_225 : f32 to vector<8x128xf32>
    %477 = arith.addf %472, %476 : vector<8x128xf32>
    %478 = tpu.reciprocal %477 {approx = true} : vector<8x128xf32> -> vector<8x128xf32>
    %479 = arith.mulf %475, %478 : vector<8x128xf32>
    %480 = arith.truncf %479 : vector<8x128xf32> to vector<8x128xbf16>
    %c0_226 = arith.constant 0 : index
    %c0_227 = arith.constant 0 : index
    %481 = vector.load %arg12[%c0_226, %c0_227] : memref<128x8xbf16, #tpu.memory_space<vmem>>, vector<128x8xbf16>
    %cst_228 = arith.constant dense<0.000000e+00> : vector<8x8xf32>
    %482 = tpu.matmul %480, %481, %cst_228 {dimension_numbers = #tpu.dot_dimension_numbers<[1], [0], [0], [1], [0, 0, 1, 1], [], []>} : vector<8x128xbf16>, vector<128x8xbf16>, vector<8x8xf32> -> vector<8x8xf32>
    %c0_229 = arith.constant 0 : index
    %c0_230 = arith.constant 0 : index
    %483 = vector.load %arg13[%c0_229, %c0_230] : memref<1x8xf32, #tpu.memory_space<vmem>>, vector<1x8xf32>
    %484 = vector.broadcast %483 : vector<1x8xf32> to vector<8x8xf32>
    %485 = arith.addf %482, %484 : vector<8x8xf32>
    %c0_231 = arith.constant 0 : index
    %486 = arith.index_cast %421 : i32 to index
    %487 = memref.load %arg1[%c0_231, %486] : memref<3x10xf32, #tpu.memory_space<smem>>
    %c1_232 = arith.constant 1 : index
    %488 = arith.index_cast %421 : i32 to index
    %489 = memref.load %arg1[%c1_232, %488] : memref<3x10xf32, #tpu.memory_space<smem>>
    %c2_233 = arith.constant 2 : index
    %490 = arith.index_cast %421 : i32 to index
    %491 = memref.load %arg1[%c2_233, %490] : memref<3x10xf32, #tpu.memory_space<smem>>
    %492 = vector.broadcast %487 : f32 to vector<8x8xf32>
    %493 = arith.mulf %492, %420 : vector<8x8xf32>
    %494 = vector.broadcast %489 : f32 to vector<8x8xf32>
    %495 = arith.mulf %494, %485 : vector<8x8xf32>
    %496 = arith.subf %493, %495 : vector<8x8xf32>
    %497 = arith.index_cast %421 : i32 to index
    %c0_234 = arith.constant 0 : index
    %c0_235 = arith.constant 0 : index
    %498 = vector.load %arg4[%497, %c0_234, %c0_235] : memref<10x8x8xf32, #tpu.memory_space<vmem>>, vector<1x8x8xf32>
    %499 = vector.shape_cast %498 : vector<1x8x8xf32> to vector<8x8xf32>
    %500 = vector.broadcast %491 : f32 to vector<8x8xf32>
    %501 = arith.mulf %500, %499 : vector<8x8xf32>
    %502 = arith.addf %496, %501 : vector<8x8xf32>
    %c6_i32 = arith.constant 6 : i32
    %c9_i32_236 = arith.constant 9 : i32
    %503 = arith.subi %c9_i32_236, %c6_i32 : i32
    %504 = arith.truncf %502 : vector<8x8xf32> to vector<8x8xbf16>
    %c0_237 = arith.constant 0 : index
    %c0_238 = arith.constant 0 : index
    %505 = vector.load %arg6[%c0_237, %c0_238] : memref<8x128xbf16, #tpu.memory_space<vmem>>, vector<8x128xbf16>
    %cst_239 = arith.constant dense<0.000000e+00> : vector<8x128xf32>
    %506 = tpu.matmul %504, %505, %cst_239 {dimension_numbers = #tpu.dot_dimension_numbers<[1], [0], [0], [1], [0, 0, 1, 1], [], []>} : vector<8x8xbf16>, vector<8x128xbf16>, vector<8x128xf32> -> vector<8x128xf32>
    %507 = arith.index_cast %503 : i32 to index
    %c0_240 = arith.constant 0 : index
    %c0_241 = arith.constant 0 : index
    %508 = vector.load %arg15[%507, %c0_240, %c0_241] : memref<10x8x128xf32, #tpu.memory_space<vmem>>, vector<1x8x128xf32>
    %509 = vector.shape_cast %508 : vector<1x8x128xf32> to vector<8x128xf32>
    %510 = arith.addf %506, %509 : vector<8x128xf32>
    %cst_242 = arith.constant 2.000000e+01 : f32
    %511 = vector.broadcast %cst_242 : f32 to vector<8x128xf32>
    %512 = arith.minimumf %510, %511 : vector<8x128xf32>
    %513 = math.exp %512 : vector<8x128xf32>
    %cst_243 = arith.constant 1.000000e+00 : f32
    %514 = vector.broadcast %cst_243 : f32 to vector<8x128xf32>
    %515 = arith.addf %514, %513 : vector<8x128xf32>
    %516 = arith.mulf %515, %515 : vector<8x128xf32>
    %cst_244 = arith.constant 1.000000e+00 : f32
    %517 = vector.broadcast %cst_244 : f32 to vector<8x128xf32>
    %518 = arith.subf %516, %517 : vector<8x128xf32>
    %519 = arith.mulf %510, %518 : vector<8x128xf32>
    %cst_245 = arith.constant 1.000000e+00 : f32
    %520 = vector.broadcast %cst_245 : f32 to vector<8x128xf32>
    %521 = arith.addf %516, %520 : vector<8x128xf32>
    %522 = tpu.reciprocal %521 {approx = true} : vector<8x128xf32> -> vector<8x128xf32>
    %523 = arith.mulf %519, %522 : vector<8x128xf32>
    %524 = arith.truncf %523 : vector<8x128xf32> to vector<8x128xbf16>
    %c0_246 = arith.constant 0 : index
    %c0_247 = arith.constant 0 : index
    %525 = vector.load %arg8[%c0_246, %c0_247] : memref<128x128xbf16, #tpu.memory_space<vmem>>, vector<128x128xbf16>
    %cst_248 = arith.constant dense<0.000000e+00> : vector<8x128xf32>
    %526 = tpu.matmul %524, %525, %cst_248 {dimension_numbers = #tpu.dot_dimension_numbers<[1], [0], [0], [1], [0, 0, 1, 1], [], []>} : vector<8x128xbf16>, vector<128x128xbf16>, vector<8x128xf32> -> vector<8x128xf32>
    %c0_249 = arith.constant 0 : index
    %c0_250 = arith.constant 0 : index
    %527 = vector.load %arg9[%c0_249, %c0_250] : memref<1x128xf32, #tpu.memory_space<vmem>>, vector<1x128xf32>
    %528 = vector.broadcast %527 : vector<1x128xf32> to vector<8x128xf32>
    %529 = arith.addf %526, %528 : vector<8x128xf32>
    %cst_251 = arith.constant 2.000000e+01 : f32
    %530 = vector.broadcast %cst_251 : f32 to vector<8x128xf32>
    %531 = arith.minimumf %529, %530 : vector<8x128xf32>
    %532 = math.exp %531 : vector<8x128xf32>
    %cst_252 = arith.constant 1.000000e+00 : f32
    %533 = vector.broadcast %cst_252 : f32 to vector<8x128xf32>
    %534 = arith.addf %533, %532 : vector<8x128xf32>
    %535 = arith.mulf %534, %534 : vector<8x128xf32>
    %cst_253 = arith.constant 1.000000e+00 : f32
    %536 = vector.broadcast %cst_253 : f32 to vector<8x128xf32>
    %537 = arith.subf %535, %536 : vector<8x128xf32>
    %538 = arith.mulf %529, %537 : vector<8x128xf32>
    %cst_254 = arith.constant 1.000000e+00 : f32
    %539 = vector.broadcast %cst_254 : f32 to vector<8x128xf32>
    %540 = arith.addf %535, %539 : vector<8x128xf32>
    %541 = tpu.reciprocal %540 {approx = true} : vector<8x128xf32> -> vector<8x128xf32>
    %542 = arith.mulf %538, %541 : vector<8x128xf32>
    %543 = arith.truncf %542 : vector<8x128xf32> to vector<8x128xbf16>
    %c0_255 = arith.constant 0 : index
    %c0_256 = arith.constant 0 : index
    %544 = vector.load %arg10[%c0_255, %c0_256] : memref<128x128xbf16, #tpu.memory_space<vmem>>, vector<128x128xbf16>
    %cst_257 = arith.constant dense<0.000000e+00> : vector<8x128xf32>
    %545 = tpu.matmul %543, %544, %cst_257 {dimension_numbers = #tpu.dot_dimension_numbers<[1], [0], [0], [1], [0, 0, 1, 1], [], []>} : vector<8x128xbf16>, vector<128x128xbf16>, vector<8x128xf32> -> vector<8x128xf32>
    %c0_258 = arith.constant 0 : index
    %c0_259 = arith.constant 0 : index
    %546 = vector.load %arg11[%c0_258, %c0_259] : memref<1x128xf32, #tpu.memory_space<vmem>>, vector<1x128xf32>
    %547 = vector.broadcast %546 : vector<1x128xf32> to vector<8x128xf32>
    %548 = arith.addf %545, %547 : vector<8x128xf32>
    %cst_260 = arith.constant 2.000000e+01 : f32
    %549 = vector.broadcast %cst_260 : f32 to vector<8x128xf32>
    %550 = arith.minimumf %548, %549 : vector<8x128xf32>
    %551 = math.exp %550 : vector<8x128xf32>
    %cst_261 = arith.constant 1.000000e+00 : f32
    %552 = vector.broadcast %cst_261 : f32 to vector<8x128xf32>
    %553 = arith.addf %552, %551 : vector<8x128xf32>
    %554 = arith.mulf %553, %553 : vector<8x128xf32>
    %cst_262 = arith.constant 1.000000e+00 : f32
    %555 = vector.broadcast %cst_262 : f32 to vector<8x128xf32>
    %556 = arith.subf %554, %555 : vector<8x128xf32>
    %557 = arith.mulf %548, %556 : vector<8x128xf32>
    %cst_263 = arith.constant 1.000000e+00 : f32
    %558 = vector.broadcast %cst_263 : f32 to vector<8x128xf32>
    %559 = arith.addf %554, %558 : vector<8x128xf32>
    %560 = tpu.reciprocal %559 {approx = true} : vector<8x128xf32> -> vector<8x128xf32>
    %561 = arith.mulf %557, %560 : vector<8x128xf32>
    %562 = arith.truncf %561 : vector<8x128xf32> to vector<8x128xbf16>
    %c0_264 = arith.constant 0 : index
    %c0_265 = arith.constant 0 : index
    %563 = vector.load %arg12[%c0_264, %c0_265] : memref<128x8xbf16, #tpu.memory_space<vmem>>, vector<128x8xbf16>
    %cst_266 = arith.constant dense<0.000000e+00> : vector<8x8xf32>
    %564 = tpu.matmul %562, %563, %cst_266 {dimension_numbers = #tpu.dot_dimension_numbers<[1], [0], [0], [1], [0, 0, 1, 1], [], []>} : vector<8x128xbf16>, vector<128x8xbf16>, vector<8x8xf32> -> vector<8x8xf32>
    %c0_267 = arith.constant 0 : index
    %c0_268 = arith.constant 0 : index
    %565 = vector.load %arg13[%c0_267, %c0_268] : memref<1x8xf32, #tpu.memory_space<vmem>>, vector<1x8xf32>
    %566 = vector.broadcast %565 : vector<1x8xf32> to vector<8x8xf32>
    %567 = arith.addf %564, %566 : vector<8x8xf32>
    %c0_269 = arith.constant 0 : index
    %568 = arith.index_cast %503 : i32 to index
    %569 = memref.load %arg1[%c0_269, %568] : memref<3x10xf32, #tpu.memory_space<smem>>
    %c1_270 = arith.constant 1 : index
    %570 = arith.index_cast %503 : i32 to index
    %571 = memref.load %arg1[%c1_270, %570] : memref<3x10xf32, #tpu.memory_space<smem>>
    %c2_271 = arith.constant 2 : index
    %572 = arith.index_cast %503 : i32 to index
    %573 = memref.load %arg1[%c2_271, %572] : memref<3x10xf32, #tpu.memory_space<smem>>
    %574 = vector.broadcast %569 : f32 to vector<8x8xf32>
    %575 = arith.mulf %574, %502 : vector<8x8xf32>
    %576 = vector.broadcast %571 : f32 to vector<8x8xf32>
    %577 = arith.mulf %576, %567 : vector<8x8xf32>
    %578 = arith.subf %575, %577 : vector<8x8xf32>
    %579 = arith.index_cast %503 : i32 to index
    %c0_272 = arith.constant 0 : index
    %c0_273 = arith.constant 0 : index
    %580 = vector.load %arg4[%579, %c0_272, %c0_273] : memref<10x8x8xf32, #tpu.memory_space<vmem>>, vector<1x8x8xf32>
    %581 = vector.shape_cast %580 : vector<1x8x8xf32> to vector<8x8xf32>
    %582 = vector.broadcast %573 : f32 to vector<8x8xf32>
    %583 = arith.mulf %582, %581 : vector<8x8xf32>
    %584 = arith.addf %578, %583 : vector<8x8xf32>
    %c7_i32 = arith.constant 7 : i32
    %c9_i32_274 = arith.constant 9 : i32
    %585 = arith.subi %c9_i32_274, %c7_i32 : i32
    %586 = arith.truncf %584 : vector<8x8xf32> to vector<8x8xbf16>
    %c0_275 = arith.constant 0 : index
    %c0_276 = arith.constant 0 : index
    %587 = vector.load %arg6[%c0_275, %c0_276] : memref<8x128xbf16, #tpu.memory_space<vmem>>, vector<8x128xbf16>
    %cst_277 = arith.constant dense<0.000000e+00> : vector<8x128xf32>
    %588 = tpu.matmul %586, %587, %cst_277 {dimension_numbers = #tpu.dot_dimension_numbers<[1], [0], [0], [1], [0, 0, 1, 1], [], []>} : vector<8x8xbf16>, vector<8x128xbf16>, vector<8x128xf32> -> vector<8x128xf32>
    %589 = arith.index_cast %585 : i32 to index
    %c0_278 = arith.constant 0 : index
    %c0_279 = arith.constant 0 : index
    %590 = vector.load %arg15[%589, %c0_278, %c0_279] : memref<10x8x128xf32, #tpu.memory_space<vmem>>, vector<1x8x128xf32>
    %591 = vector.shape_cast %590 : vector<1x8x128xf32> to vector<8x128xf32>
    %592 = arith.addf %588, %591 : vector<8x128xf32>
    %cst_280 = arith.constant 2.000000e+01 : f32
    %593 = vector.broadcast %cst_280 : f32 to vector<8x128xf32>
    %594 = arith.minimumf %592, %593 : vector<8x128xf32>
    %595 = math.exp %594 : vector<8x128xf32>
    %cst_281 = arith.constant 1.000000e+00 : f32
    %596 = vector.broadcast %cst_281 : f32 to vector<8x128xf32>
    %597 = arith.addf %596, %595 : vector<8x128xf32>
    %598 = arith.mulf %597, %597 : vector<8x128xf32>
    %cst_282 = arith.constant 1.000000e+00 : f32
    %599 = vector.broadcast %cst_282 : f32 to vector<8x128xf32>
    %600 = arith.subf %598, %599 : vector<8x128xf32>
    %601 = arith.mulf %592, %600 : vector<8x128xf32>
    %cst_283 = arith.constant 1.000000e+00 : f32
    %602 = vector.broadcast %cst_283 : f32 to vector<8x128xf32>
    %603 = arith.addf %598, %602 : vector<8x128xf32>
    %604 = tpu.reciprocal %603 {approx = true} : vector<8x128xf32> -> vector<8x128xf32>
    %605 = arith.mulf %601, %604 : vector<8x128xf32>
    %606 = arith.truncf %605 : vector<8x128xf32> to vector<8x128xbf16>
    %c0_284 = arith.constant 0 : index
    %c0_285 = arith.constant 0 : index
    %607 = vector.load %arg8[%c0_284, %c0_285] : memref<128x128xbf16, #tpu.memory_space<vmem>>, vector<128x128xbf16>
    %cst_286 = arith.constant dense<0.000000e+00> : vector<8x128xf32>
    %608 = tpu.matmul %606, %607, %cst_286 {dimension_numbers = #tpu.dot_dimension_numbers<[1], [0], [0], [1], [0, 0, 1, 1], [], []>} : vector<8x128xbf16>, vector<128x128xbf16>, vector<8x128xf32> -> vector<8x128xf32>
    %c0_287 = arith.constant 0 : index
    %c0_288 = arith.constant 0 : index
    %609 = vector.load %arg9[%c0_287, %c0_288] : memref<1x128xf32, #tpu.memory_space<vmem>>, vector<1x128xf32>
    %610 = vector.broadcast %609 : vector<1x128xf32> to vector<8x128xf32>
    %611 = arith.addf %608, %610 : vector<8x128xf32>
    %cst_289 = arith.constant 2.000000e+01 : f32
    %612 = vector.broadcast %cst_289 : f32 to vector<8x128xf32>
    %613 = arith.minimumf %611, %612 : vector<8x128xf32>
    %614 = math.exp %613 : vector<8x128xf32>
    %cst_290 = arith.constant 1.000000e+00 : f32
    %615 = vector.broadcast %cst_290 : f32 to vector<8x128xf32>
    %616 = arith.addf %615, %614 : vector<8x128xf32>
    %617 = arith.mulf %616, %616 : vector<8x128xf32>
    %cst_291 = arith.constant 1.000000e+00 : f32
    %618 = vector.broadcast %cst_291 : f32 to vector<8x128xf32>
    %619 = arith.subf %617, %618 : vector<8x128xf32>
    %620 = arith.mulf %611, %619 : vector<8x128xf32>
    %cst_292 = arith.constant 1.000000e+00 : f32
    %621 = vector.broadcast %cst_292 : f32 to vector<8x128xf32>
    %622 = arith.addf %617, %621 : vector<8x128xf32>
    %623 = tpu.reciprocal %622 {approx = true} : vector<8x128xf32> -> vector<8x128xf32>
    %624 = arith.mulf %620, %623 : vector<8x128xf32>
    %625 = arith.truncf %624 : vector<8x128xf32> to vector<8x128xbf16>
    %c0_293 = arith.constant 0 : index
    %c0_294 = arith.constant 0 : index
    %626 = vector.load %arg10[%c0_293, %c0_294] : memref<128x128xbf16, #tpu.memory_space<vmem>>, vector<128x128xbf16>
    %cst_295 = arith.constant dense<0.000000e+00> : vector<8x128xf32>
    %627 = tpu.matmul %625, %626, %cst_295 {dimension_numbers = #tpu.dot_dimension_numbers<[1], [0], [0], [1], [0, 0, 1, 1], [], []>} : vector<8x128xbf16>, vector<128x128xbf16>, vector<8x128xf32> -> vector<8x128xf32>
    %c0_296 = arith.constant 0 : index
    %c0_297 = arith.constant 0 : index
    %628 = vector.load %arg11[%c0_296, %c0_297] : memref<1x128xf32, #tpu.memory_space<vmem>>, vector<1x128xf32>
    %629 = vector.broadcast %628 : vector<1x128xf32> to vector<8x128xf32>
    %630 = arith.addf %627, %629 : vector<8x128xf32>
    %cst_298 = arith.constant 2.000000e+01 : f32
    %631 = vector.broadcast %cst_298 : f32 to vector<8x128xf32>
    %632 = arith.minimumf %630, %631 : vector<8x128xf32>
    %633 = math.exp %632 : vector<8x128xf32>
    %cst_299 = arith.constant 1.000000e+00 : f32
    %634 = vector.broadcast %cst_299 : f32 to vector<8x128xf32>
    %635 = arith.addf %634, %633 : vector<8x128xf32>
    %636 = arith.mulf %635, %635 : vector<8x128xf32>
    %cst_300 = arith.constant 1.000000e+00 : f32
    %637 = vector.broadcast %cst_300 : f32 to vector<8x128xf32>
    %638 = arith.subf %636, %637 : vector<8x128xf32>
    %639 = arith.mulf %630, %638 : vector<8x128xf32>
    %cst_301 = arith.constant 1.000000e+00 : f32
    %640 = vector.broadcast %cst_301 : f32 to vector<8x128xf32>
    %641 = arith.addf %636, %640 : vector<8x128xf32>
    %642 = tpu.reciprocal %641 {approx = true} : vector<8x128xf32> -> vector<8x128xf32>
    %643 = arith.mulf %639, %642 : vector<8x128xf32>
    %644 = arith.truncf %643 : vector<8x128xf32> to vector<8x128xbf16>
    %c0_302 = arith.constant 0 : index
    %c0_303 = arith.constant 0 : index
    %645 = vector.load %arg12[%c0_302, %c0_303] : memref<128x8xbf16, #tpu.memory_space<vmem>>, vector<128x8xbf16>
    %cst_304 = arith.constant dense<0.000000e+00> : vector<8x8xf32>
    %646 = tpu.matmul %644, %645, %cst_304 {dimension_numbers = #tpu.dot_dimension_numbers<[1], [0], [0], [1], [0, 0, 1, 1], [], []>} : vector<8x128xbf16>, vector<128x8xbf16>, vector<8x8xf32> -> vector<8x8xf32>
    %c0_305 = arith.constant 0 : index
    %c0_306 = arith.constant 0 : index
    %647 = vector.load %arg13[%c0_305, %c0_306] : memref<1x8xf32, #tpu.memory_space<vmem>>, vector<1x8xf32>
    %648 = vector.broadcast %647 : vector<1x8xf32> to vector<8x8xf32>
    %649 = arith.addf %646, %648 : vector<8x8xf32>
    %c0_307 = arith.constant 0 : index
    %650 = arith.index_cast %585 : i32 to index
    %651 = memref.load %arg1[%c0_307, %650] : memref<3x10xf32, #tpu.memory_space<smem>>
    %c1_308 = arith.constant 1 : index
    %652 = arith.index_cast %585 : i32 to index
    %653 = memref.load %arg1[%c1_308, %652] : memref<3x10xf32, #tpu.memory_space<smem>>
    %c2_309 = arith.constant 2 : index
    %654 = arith.index_cast %585 : i32 to index
    %655 = memref.load %arg1[%c2_309, %654] : memref<3x10xf32, #tpu.memory_space<smem>>
    %656 = vector.broadcast %651 : f32 to vector<8x8xf32>
    %657 = arith.mulf %656, %584 : vector<8x8xf32>
    %658 = vector.broadcast %653 : f32 to vector<8x8xf32>
    %659 = arith.mulf %658, %649 : vector<8x8xf32>
    %660 = arith.subf %657, %659 : vector<8x8xf32>
    %661 = arith.index_cast %585 : i32 to index
    %c0_310 = arith.constant 0 : index
    %c0_311 = arith.constant 0 : index
    %662 = vector.load %arg4[%661, %c0_310, %c0_311] : memref<10x8x8xf32, #tpu.memory_space<vmem>>, vector<1x8x8xf32>
    %663 = vector.shape_cast %662 : vector<1x8x8xf32> to vector<8x8xf32>
    %664 = vector.broadcast %655 : f32 to vector<8x8xf32>
    %665 = arith.mulf %664, %663 : vector<8x8xf32>
    %666 = arith.addf %660, %665 : vector<8x8xf32>
    %c8_i32 = arith.constant 8 : i32
    %c9_i32_312 = arith.constant 9 : i32
    %667 = arith.subi %c9_i32_312, %c8_i32 : i32
    %668 = arith.truncf %666 : vector<8x8xf32> to vector<8x8xbf16>
    %c0_313 = arith.constant 0 : index
    %c0_314 = arith.constant 0 : index
    %669 = vector.load %arg6[%c0_313, %c0_314] : memref<8x128xbf16, #tpu.memory_space<vmem>>, vector<8x128xbf16>
    %cst_315 = arith.constant dense<0.000000e+00> : vector<8x128xf32>
    %670 = tpu.matmul %668, %669, %cst_315 {dimension_numbers = #tpu.dot_dimension_numbers<[1], [0], [0], [1], [0, 0, 1, 1], [], []>} : vector<8x8xbf16>, vector<8x128xbf16>, vector<8x128xf32> -> vector<8x128xf32>
    %671 = arith.index_cast %667 : i32 to index
    %c0_316 = arith.constant 0 : index
    %c0_317 = arith.constant 0 : index
    %672 = vector.load %arg15[%671, %c0_316, %c0_317] : memref<10x8x128xf32, #tpu.memory_space<vmem>>, vector<1x8x128xf32>
    %673 = vector.shape_cast %672 : vector<1x8x128xf32> to vector<8x128xf32>
    %674 = arith.addf %670, %673 : vector<8x128xf32>
    %cst_318 = arith.constant 2.000000e+01 : f32
    %675 = vector.broadcast %cst_318 : f32 to vector<8x128xf32>
    %676 = arith.minimumf %674, %675 : vector<8x128xf32>
    %677 = math.exp %676 : vector<8x128xf32>
    %cst_319 = arith.constant 1.000000e+00 : f32
    %678 = vector.broadcast %cst_319 : f32 to vector<8x128xf32>
    %679 = arith.addf %678, %677 : vector<8x128xf32>
    %680 = arith.mulf %679, %679 : vector<8x128xf32>
    %cst_320 = arith.constant 1.000000e+00 : f32
    %681 = vector.broadcast %cst_320 : f32 to vector<8x128xf32>
    %682 = arith.subf %680, %681 : vector<8x128xf32>
    %683 = arith.mulf %674, %682 : vector<8x128xf32>
    %cst_321 = arith.constant 1.000000e+00 : f32
    %684 = vector.broadcast %cst_321 : f32 to vector<8x128xf32>
    %685 = arith.addf %680, %684 : vector<8x128xf32>
    %686 = tpu.reciprocal %685 {approx = true} : vector<8x128xf32> -> vector<8x128xf32>
    %687 = arith.mulf %683, %686 : vector<8x128xf32>
    %688 = arith.truncf %687 : vector<8x128xf32> to vector<8x128xbf16>
    %c0_322 = arith.constant 0 : index
    %c0_323 = arith.constant 0 : index
    %689 = vector.load %arg8[%c0_322, %c0_323] : memref<128x128xbf16, #tpu.memory_space<vmem>>, vector<128x128xbf16>
    %cst_324 = arith.constant dense<0.000000e+00> : vector<8x128xf32>
    %690 = tpu.matmul %688, %689, %cst_324 {dimension_numbers = #tpu.dot_dimension_numbers<[1], [0], [0], [1], [0, 0, 1, 1], [], []>} : vector<8x128xbf16>, vector<128x128xbf16>, vector<8x128xf32> -> vector<8x128xf32>
    %c0_325 = arith.constant 0 : index
    %c0_326 = arith.constant 0 : index
    %691 = vector.load %arg9[%c0_325, %c0_326] : memref<1x128xf32, #tpu.memory_space<vmem>>, vector<1x128xf32>
    %692 = vector.broadcast %691 : vector<1x128xf32> to vector<8x128xf32>
    %693 = arith.addf %690, %692 : vector<8x128xf32>
    %cst_327 = arith.constant 2.000000e+01 : f32
    %694 = vector.broadcast %cst_327 : f32 to vector<8x128xf32>
    %695 = arith.minimumf %693, %694 : vector<8x128xf32>
    %696 = math.exp %695 : vector<8x128xf32>
    %cst_328 = arith.constant 1.000000e+00 : f32
    %697 = vector.broadcast %cst_328 : f32 to vector<8x128xf32>
    %698 = arith.addf %697, %696 : vector<8x128xf32>
    %699 = arith.mulf %698, %698 : vector<8x128xf32>
    %cst_329 = arith.constant 1.000000e+00 : f32
    %700 = vector.broadcast %cst_329 : f32 to vector<8x128xf32>
    %701 = arith.subf %699, %700 : vector<8x128xf32>
    %702 = arith.mulf %693, %701 : vector<8x128xf32>
    %cst_330 = arith.constant 1.000000e+00 : f32
    %703 = vector.broadcast %cst_330 : f32 to vector<8x128xf32>
    %704 = arith.addf %699, %703 : vector<8x128xf32>
    %705 = tpu.reciprocal %704 {approx = true} : vector<8x128xf32> -> vector<8x128xf32>
    %706 = arith.mulf %702, %705 : vector<8x128xf32>
    %707 = arith.truncf %706 : vector<8x128xf32> to vector<8x128xbf16>
    %c0_331 = arith.constant 0 : index
    %c0_332 = arith.constant 0 : index
    %708 = vector.load %arg10[%c0_331, %c0_332] : memref<128x128xbf16, #tpu.memory_space<vmem>>, vector<128x128xbf16>
    %cst_333 = arith.constant dense<0.000000e+00> : vector<8x128xf32>
    %709 = tpu.matmul %707, %708, %cst_333 {dimension_numbers = #tpu.dot_dimension_numbers<[1], [0], [0], [1], [0, 0, 1, 1], [], []>} : vector<8x128xbf16>, vector<128x128xbf16>, vector<8x128xf32> -> vector<8x128xf32>
    %c0_334 = arith.constant 0 : index
    %c0_335 = arith.constant 0 : index
    %710 = vector.load %arg11[%c0_334, %c0_335] : memref<1x128xf32, #tpu.memory_space<vmem>>, vector<1x128xf32>
    %711 = vector.broadcast %710 : vector<1x128xf32> to vector<8x128xf32>
    %712 = arith.addf %709, %711 : vector<8x128xf32>
    %cst_336 = arith.constant 2.000000e+01 : f32
    %713 = vector.broadcast %cst_336 : f32 to vector<8x128xf32>
    %714 = arith.minimumf %712, %713 : vector<8x128xf32>
    %715 = math.exp %714 : vector<8x128xf32>
    %cst_337 = arith.constant 1.000000e+00 : f32
    %716 = vector.broadcast %cst_337 : f32 to vector<8x128xf32>
    %717 = arith.addf %716, %715 : vector<8x128xf32>
    %718 = arith.mulf %717, %717 : vector<8x128xf32>
    %cst_338 = arith.constant 1.000000e+00 : f32
    %719 = vector.broadcast %cst_338 : f32 to vector<8x128xf32>
    %720 = arith.subf %718, %719 : vector<8x128xf32>
    %721 = arith.mulf %712, %720 : vector<8x128xf32>
    %cst_339 = arith.constant 1.000000e+00 : f32
    %722 = vector.broadcast %cst_339 : f32 to vector<8x128xf32>
    %723 = arith.addf %718, %722 : vector<8x128xf32>
    %724 = tpu.reciprocal %723 {approx = true} : vector<8x128xf32> -> vector<8x128xf32>
    %725 = arith.mulf %721, %724 : vector<8x128xf32>
    %726 = arith.truncf %725 : vector<8x128xf32> to vector<8x128xbf16>
    %c0_340 = arith.constant 0 : index
    %c0_341 = arith.constant 0 : index
    %727 = vector.load %arg12[%c0_340, %c0_341] : memref<128x8xbf16, #tpu.memory_space<vmem>>, vector<128x8xbf16>
    %cst_342 = arith.constant dense<0.000000e+00> : vector<8x8xf32>
    %728 = tpu.matmul %726, %727, %cst_342 {dimension_numbers = #tpu.dot_dimension_numbers<[1], [0], [0], [1], [0, 0, 1, 1], [], []>} : vector<8x128xbf16>, vector<128x8xbf16>, vector<8x8xf32> -> vector<8x8xf32>
    %c0_343 = arith.constant 0 : index
    %c0_344 = arith.constant 0 : index
    %729 = vector.load %arg13[%c0_343, %c0_344] : memref<1x8xf32, #tpu.memory_space<vmem>>, vector<1x8xf32>
    %730 = vector.broadcast %729 : vector<1x8xf32> to vector<8x8xf32>
    %731 = arith.addf %728, %730 : vector<8x8xf32>
    %c0_345 = arith.constant 0 : index
    %732 = arith.index_cast %667 : i32 to index
    %733 = memref.load %arg1[%c0_345, %732] : memref<3x10xf32, #tpu.memory_space<smem>>
    %c1_346 = arith.constant 1 : index
    %734 = arith.index_cast %667 : i32 to index
    %735 = memref.load %arg1[%c1_346, %734] : memref<3x10xf32, #tpu.memory_space<smem>>
    %c2_347 = arith.constant 2 : index
    %736 = arith.index_cast %667 : i32 to index
    %737 = memref.load %arg1[%c2_347, %736] : memref<3x10xf32, #tpu.memory_space<smem>>
    %738 = vector.broadcast %733 : f32 to vector<8x8xf32>
    %739 = arith.mulf %738, %666 : vector<8x8xf32>
    %740 = vector.broadcast %735 : f32 to vector<8x8xf32>
    %741 = arith.mulf %740, %731 : vector<8x8xf32>
    %742 = arith.subf %739, %741 : vector<8x8xf32>
    %743 = arith.index_cast %667 : i32 to index
    %c0_348 = arith.constant 0 : index
    %c0_349 = arith.constant 0 : index
    %744 = vector.load %arg4[%743, %c0_348, %c0_349] : memref<10x8x8xf32, #tpu.memory_space<vmem>>, vector<1x8x8xf32>
    %745 = vector.shape_cast %744 : vector<1x8x8xf32> to vector<8x8xf32>
    %746 = vector.broadcast %737 : f32 to vector<8x8xf32>
    %747 = arith.mulf %746, %745 : vector<8x8xf32>
    %748 = arith.addf %742, %747 : vector<8x8xf32>
    %c9_i32_350 = arith.constant 9 : i32
    %c9_i32_351 = arith.constant 9 : i32
    %749 = arith.subi %c9_i32_351, %c9_i32_350 : i32
    %750 = arith.truncf %748 : vector<8x8xf32> to vector<8x8xbf16>
    %c0_352 = arith.constant 0 : index
    %c0_353 = arith.constant 0 : index
    %751 = vector.load %arg6[%c0_352, %c0_353] : memref<8x128xbf16, #tpu.memory_space<vmem>>, vector<8x128xbf16>
    %cst_354 = arith.constant dense<0.000000e+00> : vector<8x128xf32>
    %752 = tpu.matmul %750, %751, %cst_354 {dimension_numbers = #tpu.dot_dimension_numbers<[1], [0], [0], [1], [0, 0, 1, 1], [], []>} : vector<8x8xbf16>, vector<8x128xbf16>, vector<8x128xf32> -> vector<8x128xf32>
    %753 = arith.index_cast %749 : i32 to index
    %c0_355 = arith.constant 0 : index
    %c0_356 = arith.constant 0 : index
    %754 = vector.load %arg15[%753, %c0_355, %c0_356] : memref<10x8x128xf32, #tpu.memory_space<vmem>>, vector<1x8x128xf32>
    %755 = vector.shape_cast %754 : vector<1x8x128xf32> to vector<8x128xf32>
    %756 = arith.addf %752, %755 : vector<8x128xf32>
    %cst_357 = arith.constant 2.000000e+01 : f32
    %757 = vector.broadcast %cst_357 : f32 to vector<8x128xf32>
    %758 = arith.minimumf %756, %757 : vector<8x128xf32>
    %759 = math.exp %758 : vector<8x128xf32>
    %cst_358 = arith.constant 1.000000e+00 : f32
    %760 = vector.broadcast %cst_358 : f32 to vector<8x128xf32>
    %761 = arith.addf %760, %759 : vector<8x128xf32>
    %762 = arith.mulf %761, %761 : vector<8x128xf32>
    %cst_359 = arith.constant 1.000000e+00 : f32
    %763 = vector.broadcast %cst_359 : f32 to vector<8x128xf32>
    %764 = arith.subf %762, %763 : vector<8x128xf32>
    %765 = arith.mulf %756, %764 : vector<8x128xf32>
    %cst_360 = arith.constant 1.000000e+00 : f32
    %766 = vector.broadcast %cst_360 : f32 to vector<8x128xf32>
    %767 = arith.addf %762, %766 : vector<8x128xf32>
    %768 = tpu.reciprocal %767 {approx = true} : vector<8x128xf32> -> vector<8x128xf32>
    %769 = arith.mulf %765, %768 : vector<8x128xf32>
    %770 = arith.truncf %769 : vector<8x128xf32> to vector<8x128xbf16>
    %c0_361 = arith.constant 0 : index
    %c0_362 = arith.constant 0 : index
    %771 = vector.load %arg8[%c0_361, %c0_362] : memref<128x128xbf16, #tpu.memory_space<vmem>>, vector<128x128xbf16>
    %cst_363 = arith.constant dense<0.000000e+00> : vector<8x128xf32>
    %772 = tpu.matmul %770, %771, %cst_363 {dimension_numbers = #tpu.dot_dimension_numbers<[1], [0], [0], [1], [0, 0, 1, 1], [], []>} : vector<8x128xbf16>, vector<128x128xbf16>, vector<8x128xf32> -> vector<8x128xf32>
    %c0_364 = arith.constant 0 : index
    %c0_365 = arith.constant 0 : index
    %773 = vector.load %arg9[%c0_364, %c0_365] : memref<1x128xf32, #tpu.memory_space<vmem>>, vector<1x128xf32>
    %774 = vector.broadcast %773 : vector<1x128xf32> to vector<8x128xf32>
    %775 = arith.addf %772, %774 : vector<8x128xf32>
    %cst_366 = arith.constant 2.000000e+01 : f32
    %776 = vector.broadcast %cst_366 : f32 to vector<8x128xf32>
    %777 = arith.minimumf %775, %776 : vector<8x128xf32>
    %778 = math.exp %777 : vector<8x128xf32>
    %cst_367 = arith.constant 1.000000e+00 : f32
    %779 = vector.broadcast %cst_367 : f32 to vector<8x128xf32>
    %780 = arith.addf %779, %778 : vector<8x128xf32>
    %781 = arith.mulf %780, %780 : vector<8x128xf32>
    %cst_368 = arith.constant 1.000000e+00 : f32
    %782 = vector.broadcast %cst_368 : f32 to vector<8x128xf32>
    %783 = arith.subf %781, %782 : vector<8x128xf32>
    %784 = arith.mulf %775, %783 : vector<8x128xf32>
    %cst_369 = arith.constant 1.000000e+00 : f32
    %785 = vector.broadcast %cst_369 : f32 to vector<8x128xf32>
    %786 = arith.addf %781, %785 : vector<8x128xf32>
    %787 = tpu.reciprocal %786 {approx = true} : vector<8x128xf32> -> vector<8x128xf32>
    %788 = arith.mulf %784, %787 : vector<8x128xf32>
    %789 = arith.truncf %788 : vector<8x128xf32> to vector<8x128xbf16>
    %c0_370 = arith.constant 0 : index
    %c0_371 = arith.constant 0 : index
    %790 = vector.load %arg10[%c0_370, %c0_371] : memref<128x128xbf16, #tpu.memory_space<vmem>>, vector<128x128xbf16>
    %cst_372 = arith.constant dense<0.000000e+00> : vector<8x128xf32>
    %791 = tpu.matmul %789, %790, %cst_372 {dimension_numbers = #tpu.dot_dimension_numbers<[1], [0], [0], [1], [0, 0, 1, 1], [], []>} : vector<8x128xbf16>, vector<128x128xbf16>, vector<8x128xf32> -> vector<8x128xf32>
    %c0_373 = arith.constant 0 : index
    %c0_374 = arith.constant 0 : index
    %792 = vector.load %arg11[%c0_373, %c0_374] : memref<1x128xf32, #tpu.memory_space<vmem>>, vector<1x128xf32>
    %793 = vector.broadcast %792 : vector<1x128xf32> to vector<8x128xf32>
    %794 = arith.addf %791, %793 : vector<8x128xf32>
    %cst_375 = arith.constant 2.000000e+01 : f32
    %795 = vector.broadcast %cst_375 : f32 to vector<8x128xf32>
    %796 = arith.minimumf %794, %795 : vector<8x128xf32>
    %797 = math.exp %796 : vector<8x128xf32>
    %cst_376 = arith.constant 1.000000e+00 : f32
    %798 = vector.broadcast %cst_376 : f32 to vector<8x128xf32>
    %799 = arith.addf %798, %797 : vector<8x128xf32>
    %800 = arith.mulf %799, %799 : vector<8x128xf32>
    %cst_377 = arith.constant 1.000000e+00 : f32
    %801 = vector.broadcast %cst_377 : f32 to vector<8x128xf32>
    %802 = arith.subf %800, %801 : vector<8x128xf32>
    %803 = arith.mulf %794, %802 : vector<8x128xf32>
    %cst_378 = arith.constant 1.000000e+00 : f32
    %804 = vector.broadcast %cst_378 : f32 to vector<8x128xf32>
    %805 = arith.addf %800, %804 : vector<8x128xf32>
    %806 = tpu.reciprocal %805 {approx = true} : vector<8x128xf32> -> vector<8x128xf32>
    %807 = arith.mulf %803, %806 : vector<8x128xf32>
    %808 = arith.truncf %807 : vector<8x128xf32> to vector<8x128xbf16>
    %c0_379 = arith.constant 0 : index
    %c0_380 = arith.constant 0 : index
    %809 = vector.load %arg12[%c0_379, %c0_380] : memref<128x8xbf16, #tpu.memory_space<vmem>>, vector<128x8xbf16>
    %cst_381 = arith.constant dense<0.000000e+00> : vector<8x8xf32>
    %810 = tpu.matmul %808, %809, %cst_381 {dimension_numbers = #tpu.dot_dimension_numbers<[1], [0], [0], [1], [0, 0, 1, 1], [], []>} : vector<8x128xbf16>, vector<128x8xbf16>, vector<8x8xf32> -> vector<8x8xf32>
    %c0_382 = arith.constant 0 : index
    %c0_383 = arith.constant 0 : index
    %811 = vector.load %arg13[%c0_382, %c0_383] : memref<1x8xf32, #tpu.memory_space<vmem>>, vector<1x8xf32>
    %812 = vector.broadcast %811 : vector<1x8xf32> to vector<8x8xf32>
    %813 = arith.addf %810, %812 : vector<8x8xf32>
    %c0_384 = arith.constant 0 : index
    %814 = arith.index_cast %749 : i32 to index
    %815 = memref.load %arg1[%c0_384, %814] : memref<3x10xf32, #tpu.memory_space<smem>>
    %c1_385 = arith.constant 1 : index
    %816 = arith.index_cast %749 : i32 to index
    %817 = memref.load %arg1[%c1_385, %816] : memref<3x10xf32, #tpu.memory_space<smem>>
    %c2_386 = arith.constant 2 : index
    %818 = arith.index_cast %749 : i32 to index
    %819 = memref.load %arg1[%c2_386, %818] : memref<3x10xf32, #tpu.memory_space<smem>>
    %820 = vector.broadcast %815 : f32 to vector<8x8xf32>
    %821 = arith.mulf %820, %748 : vector<8x8xf32>
    %822 = vector.broadcast %817 : f32 to vector<8x8xf32>
    %823 = arith.mulf %822, %813 : vector<8x8xf32>
    %824 = arith.subf %821, %823 : vector<8x8xf32>
    %825 = arith.index_cast %749 : i32 to index
    %c0_387 = arith.constant 0 : index
    %c0_388 = arith.constant 0 : index
    %826 = vector.load %arg4[%825, %c0_387, %c0_388] : memref<10x8x8xf32, #tpu.memory_space<vmem>>, vector<1x8x8xf32>
    %827 = vector.shape_cast %826 : vector<1x8x8xf32> to vector<8x8xf32>
    %828 = vector.broadcast %819 : f32 to vector<8x8xf32>
    %829 = arith.mulf %828, %827 : vector<8x8xf32>
    %830 = arith.addf %824, %829 : vector<8x8xf32>
    %c10_i32 = arith.constant 10 : i32
    %cst_389 = arith.constant dense<0xFF800000> : vector<8xf32>
    %831 = vector.multi_reduction <maximumf>, %830, %cst_389 [1] : vector<8x8xf32> to vector<8xf32>
    %832 = vector.shape_cast %831 : vector<8xf32> to vector<8x1xf32>
    %833 = vector.broadcast %832 : vector<8x1xf32> to vector<8x8xf32>
    %834 = arith.subf %830, %833 : vector<8x8xf32>
    %835 = math.exp %834 : vector<8x8xf32>
    %cst_390 = arith.constant dense<0.000000e+00> : vector<8xf32>
    %836 = vector.multi_reduction <add>, %835, %cst_390 [1] : vector<8x8xf32> to vector<8xf32>
    %837 = vector.shape_cast %836 : vector<8xf32> to vector<8x1xf32>
    %838 = vector.broadcast %837 : vector<8x1xf32> to vector<8x8xf32>
    %839 = arith.divf %835, %838 : vector<8x8xf32>
    %c0_391 = arith.constant 0 : index
    %c0_392 = arith.constant 0 : index
    %840 = vector.load %arg14[%c0_391, %c0_392] : memref<8x8xf32, #tpu.memory_space<vmem>>, vector<8x8xf32>
    tpu.vector_store %arg14[%c0_391, %c0_392], %839 {strides = array<i32>} : memref<8x8xf32, #tpu.memory_space<vmem>>, vector<8x8xf32>,
    return
  }
  func.func @transform_0(%arg0: i32) -> (i32, i32) {
    %c0_i32 = arith.constant 0 : i32
    %c0_i32_0 = arith.constant 0 : i32
    %c0_i32_1 = arith.constant 0 : i32
    return %c0_i32, %c0_i32_0 : i32, i32
  }
  func.func @transform_1(%arg0: i32) -> (i32, i32) {
    %c0_i32 = arith.constant 0 : i32
    %c0_i32_0 = arith.constant 0 : i32
    return %arg0, %c0_i32 : i32, i32
  }
  func.func @transform_2(%arg0: i32) -> (i32, i32) {
    %c0_i32 = arith.constant 0 : i32
    %c0_i32_0 = arith.constant 0 : i32
    return %arg0, %c0_i32 : i32, i32
  }
  func.func @transform_3(%arg0: i32) -> (i32, i32, i32) {
    %c0_i32 = arith.constant 0 : i32
    %c0_i32_0 = arith.constant 0 : i32
    %c0_i32_1 = arith.constant 0 : i32
    return %c0_i32, %arg0, %c0_i32_0 : i32, i32, i32
  }
  func.func @transform_4(%arg0: i32) -> (i32, i32, i32) {
    %c0_i32 = arith.constant 0 : i32
    %c0_i32_0 = arith.constant 0 : i32
    %c0_i32_1 = arith.constant 0 : i32
    %c0_i32_2 = arith.constant 0 : i32
    return %c0_i32, %c0_i32_0, %c0_i32_1 : i32, i32, i32
  }
  func.func @transform_5(%arg0: i32) -> (i32, i32) {
    %c0_i32 = arith.constant 0 : i32
    %c0_i32_0 = arith.constant 0 : i32
    %c0_i32_1 = arith.constant 0 : i32
    return %c0_i32, %c0_i32_0 : i32, i32
  }
  func.func @transform_6(%arg0: i32) -> (i32, i32) {
    %c0_i32 = arith.constant 0 : i32
    %c0_i32_0 = arith.constant 0 : i32
    %c0_i32_1 = arith.constant 0 : i32
    return %c0_i32, %c0_i32_0 : i32, i32
  }
  func.func @transform_7(%arg0: i32) -> (i32, i32) {
    %c0_i32 = arith.constant 0 : i32
    %c0_i32_0 = arith.constant 0 : i32
    %c0_i32_1 = arith.constant 0 : i32
    return %c0_i32, %c0_i32_0 : i32, i32
  }
  func.func @transform_8(%arg0: i32) -> (i32, i32) {
    %c0_i32 = arith.constant 0 : i32
    %c0_i32_0 = arith.constant 0 : i32
    %c0_i32_1 = arith.constant 0 : i32
    return %c0_i32, %c0_i32_0 : i32, i32
  }
  func.func @transform_9(%arg0: i32) -> (i32, i32) {
    %c0_i32 = arith.constant 0 : i32
    %c0_i32_0 = arith.constant 0 : i32
    %c0_i32_1 = arith.constant 0 : i32
    return %c0_i32, %c0_i32_0 : i32, i32
  }
  func.func @transform_10(%arg0: i32) -> (i32, i32) {
    %c0_i32 = arith.constant 0 : i32
    %c0_i32_0 = arith.constant 0 : i32
    %c0_i32_1 = arith.constant 0 : i32
    return %c0_i32, %c0_i32_0 : i32, i32
  }
  func.func @transform_11(%arg0: i32) -> (i32, i32) {
    %c0_i32 = arith.constant 0 : i32
    %c0_i32_0 = arith.constant 0 : i32
    %c0_i32_1 = arith.constant 0 : i32
    return %c0_i32, %c0_i32_0 : i32, i32
  }
  func.func @transform_12(%arg0: i32) -> (i32, i32) {
    %c0_i32 = arith.constant 0 : i32
    %c0_i32_0 = arith.constant 0 : i32
    %c0_i32_1 = arith.constant 0 : i32
    return %c0_i32, %c0_i32_0 : i32, i32
  }
  func.func @transform_13(%arg0: i32) -> (i32, i32) {
    %c0_i32 = arith.constant 0 : i32
    %c0_i32_0 = arith.constant 0 : i32
    return %arg0, %c0_i32 : i32, i32
  }
}

</mosaic_0001>

<llo_original>
// kernel: tpu_custom_call.1
$region0: #{tpu_custom_call.1}
  #allocation0 [shape = 'u32[]', space=smem, size = 0x4, offset = 0x4, fixed_abs, tag = 'smem constant byte address 0x4 - core index']
  #allocation1 [shape = 'u32[144,128]{1,0:T(1,128)}', space=vmem, size = 0x12000, scoped, tag = 'internal scratch']
  #allocation2 [shape = 'f32[10,8,128]{2,1,0:T(8,128)}', space=vmem, size = 0xa000, scoped, tag = 'scratch operand']
  %s0 = inlined_call_operand.hbm [shape: f32[3,10], index: 0, kind: input, shape index: {}]
  %s1 = inlined_call_operand.vmem [shape: f32[8,8], index: 1, kind: input, shape index: {}]
  %s2 = inlined_call_operand.hbm [shape: f32[8,16], index: 2, kind: input, shape index: {}]
  %s3 = inlined_call_operand.vmem [shape: f32[10,8,8], index: 3, kind: input, shape index: {}]
  %s4 = inlined_call_operand.vmem [shape: f32[10,1,128], index: 4, kind: input, shape index: {}]
  %s5 = inlined_call_operand.hbm [shape: bf16[8,128], index: 5, kind: input, shape index: {}]
  %s6 = inlined_call_operand.vmem [shape: bf16[16,128], index: 6, kind: input, shape index: {}]
  %s7 = inlined_call_operand.vmem [shape: bf16[128,128], index: 7, kind: input, shape index: {}]
  %s8 = inlined_call_operand.vmem [shape: f32[1,128], index: 8, kind: input, shape index: {}]
  %s9 = inlined_call_operand.vmem [shape: bf16[128,128], index: 9, kind: input, shape index: {}]
  %s10 = inlined_call_operand.vmem [shape: f32[1,128], index: 10, kind: input, shape index: {}]
  %s11 = inlined_call_operand.vmem [shape: bf16[128,8], index: 11, kind: input, shape index: {}]
  %s12 = inlined_call_operand.vmem [shape: f32[1,8], index: 12, kind: input, shape index: {}]
  %s13 = inlined_call_operand.hbm [shape: f32[8,8], index: 13, kind: output, shape index: {}]
  %s14 = sld [smem:[#allocation0]]
  $region74: #{tpu_custom_call.1} parent=0
    _
  %s16 = ssub.s32 1, %s14
  %s17 = scalar_select 0, %s16, %s14
  $region1: #{tpu_custom_call.1} parent=0
    #allocation3 [shape = 'u8[2048]{0}', space=smem, size = 0x800, scoped, tag = 'input window, operand 0, single buffered']
    #allocation4 [shape = 's32[1]{0}', space=sflag, size = 0x4, scoped, tag = 'scoped memory for tpu_custom_call.1']
    #allocation5 [shape = 's32[1]{0}', space=sflag, size = 0x4, scoped, tag = 'scoped memory for tpu_custom_call.1']
    #allocation6 [shape = 's32[1]{0}', space=sflag, size = 0x4, scoped, tag = 'scoped memory for tpu_custom_call.1']
    #allocation7 [shape = 'u8[4096]{0}', space=vmem, size = 0x1000, scoped, tag = 'input window, operand 2, single buffered']
    #allocation8 [shape = 'u8[2048]{0}', space=vmem, size = 0x800, scoped, tag = 'input window, operand 5, single buffered']
    #allocation9 [shape = 's32[1]{0}', space=sflag, size = 0x4, scoped, tag = 'scoped memory for tpu_custom_call.1']
    #allocation10 [shape = 'u8[4096]{0}', space=vmem, size = 0x1000, scoped, tag = 'output window, operand 0, single buffered']
    %18 = vsyncpa [#allocation6], 0
    %19 = vsyncpa [#allocation4], 0
    %20 = vsyncpa [#allocation9], 0
    %21 = vsyncpa [#allocation5], 0
    // Predicated region
    $region2: #{tpu_custom_call.1} parent=1 // pred_check
      _
    $region3: #{tpu_custom_call.1} parent=1 // pred_check_branch
      %23 = sbr.rel (0) target = $region5
    $region4: #{tpu_custom_call.1} parent=1 // pred_region
      %s25 = ssub.s32 64, 64
      %26 = vsyncadd [#allocation6], %s25
      %29 = dma.hbm_to_smem %s0, 64, [#allocation3], [#allocation6]
    $region5: #{tpu_custom_call.1} parent=1 // pred_fallthru
      _
    // Predicated region
    $region6: #{tpu_custom_call.1} parent=1 // pred_check
      _
    $region7: #{tpu_custom_call.1} parent=1 // pred_check_branch
      %31 = sbr.rel (0) target = $region9
    $region8: #{tpu_custom_call.1} parent=1 // pred_region
      _
    $region9: #{tpu_custom_call.1} parent=1 // pred_fallthru
      _
    // Predicated region
    $region10: #{tpu_custom_call.1} parent=1 // pred_check
      _
    $region11: #{tpu_custom_call.1} parent=1 // pred_check_branch
      %33 = sbr.rel (0) target = $region13
    $region12: #{tpu_custom_call.1} parent=1 // pred_region
      %s35 = ssub.s32 128, 128
      %36 = vsyncadd [#allocation4], %s35
      %s38 = sshll.u32 [#allocation7], 4
      %s39 = int_to_ptr.vmem [resolvable:$true] %s38
      %41 = dma.hbm_to_vmem [thread:$0]  %s2, 128, %s39, [#allocation4]
    $region13: #{tpu_custom_call.1} parent=1 // pred_fallthru
      _
    // Predicated region
    $region14: #{tpu_custom_call.1} parent=1 // pred_check
      _
    $region15: #{tpu_custom_call.1} parent=1 // pred_check_branch
      %43 = sbr.rel (0) target = $region17
    $region16: #{tpu_custom_call.1} parent=1 // pred_region
      _
    $region17: #{tpu_custom_call.1} parent=1 // pred_fallthru
      _
    // Predicated region
    $region18: #{tpu_custom_call.1} parent=1 // pred_check
      _
    $region19: #{tpu_custom_call.1} parent=1 // pred_check_branch
      %45 = sbr.rel (0) target = $region21
    $region20: #{tpu_custom_call.1} parent=1 // pred_region
      _
    $region21: #{tpu_custom_call.1} parent=1 // pred_fallthru
      _
    // Predicated region
    $region22: #{tpu_custom_call.1} parent=1 // pred_check
      _
    $region23: #{tpu_custom_call.1} parent=1 // pred_check_branch
      %47 = sbr.rel (0) target = $region25
    $region24: #{tpu_custom_call.1} parent=1 // pred_region
      %s49 = ssub.s32 64, 64
      %50 = vsyncadd [#allocation9], %s49
      %s52 = sshll.u32 [#allocation8], 4
      %s53 = int_to_ptr.vmem [resolvable:$true] %s52
      %55 = dma.hbm_to_vmem [thread:$0]  %s5, 64, %s53, [#allocation9]
    $region25: #{tpu_custom_call.1} parent=1 // pred_fallthru
      _
    // Predicated region
    $region26: #{tpu_custom_call.1} parent=1 // pred_check
      _
    $region27: #{tpu_custom_call.1} parent=1 // pred_check_branch
      %57 = sbr.rel (0) target = $region29
    $region28: #{tpu_custom_call.1} parent=1 // pred_region
      _
    $region29: #{tpu_custom_call.1} parent=1 // pred_fallthru
      _
    // Predicated region
    $region30: #{tpu_custom_call.1} parent=1 // pred_check
      _
    $region31: #{tpu_custom_call.1} parent=1 // pred_check_branch
      %59 = sbr.rel (0) target = $region33
    $region32: #{tpu_custom_call.1} parent=1 // pred_region
      _
    $region33: #{tpu_custom_call.1} parent=1 // pred_fallthru
      _
    // Predicated region
    $region34: #{tpu_custom_call.1} parent=1 // pred_check
      _
    $region35: #{tpu_custom_call.1} parent=1 // pred_check_branch
      %61 = sbr.rel (0) target = $region37
    $region36: #{tpu_custom_call.1} parent=1 // pred_region
      _
    $region37: #{tpu_custom_call.1} parent=1 // pred_fallthru
      _
    // Predicated region
    $region38: #{tpu_custom_call.1} parent=1 // pred_check
      _
    $region39: #{tpu_custom_call.1} parent=1 // pred_check_branch
      %63 = sbr.rel (0) target = $region41
    $region40: #{tpu_custom_call.1} parent=1 // pred_region
      _
    $region41: #{tpu_custom_call.1} parent=1 // pred_fallthru
      _
    // Predicated region
    $region42: #{tpu_custom_call.1} parent=1 // pred_check
      _
    $region43: #{tpu_custom_call.1} parent=1 // pred_check_branch
      %65 = sbr.rel (0) target = $region45
    $region44: #{tpu_custom_call.1} parent=1 // pred_region
      _
    $region45: #{tpu_custom_call.1} parent=1 // pred_fallthru
      _
    // Predicated region
    $region46: #{tpu_custom_call.1} parent=1 // pred_check
      _
    $region47: #{tpu_custom_call.1} parent=1 // pred_check_branch
      %67 = sbr.rel (0) target = $region49
    $region48: #{tpu_custom_call.1} parent=1 // pred_region
      _
    $region49: #{tpu_custom_call.1} parent=1 // pred_fallthru
      _
    // Predicated region
    $region50: #{tpu_custom_call.1} parent=1 // pred_check
      _
    $region51: #{tpu_custom_call.1} parent=1 // pred_check_branch
      %69 = sbr.rel (0) target = $region53
    $region52: #{tpu_custom_call.1} parent=1 // pred_region
      _
    $region53: #{tpu_custom_call.1} parent=1 // pred_fallthru
      _
    // Predicated region
    $region54: #{tpu_custom_call.1} parent=1 // pred_check
      _
    $region55: #{tpu_custom_call.1} parent=1 // pred_check_branch
      %71 = sbr.rel (0) target = $region57
    $region56: #{tpu_custom_call.1} parent=1 // pred_region
      %72 = dma.done [#allocation6], 64
    $region57: #{tpu_custom_call.1} parent=1 // pred_fallthru
      _
    // Predicated region
    $region58: #{tpu_custom_call.1} parent=1 // pred_check
      _
    $region59: #{tpu_custom_call.1} parent=1 // pred_check_branch
      %74 = sbr.rel (0) target = $region61
    $region60: #{tpu_custom_call.1} parent=1 // pred_region
      %75 = dma.done [#allocation4], 128
    $region61: #{tpu_custom_call.1} parent=1 // pred_fallthru
      _
    // Predicated region
    $region62: #{tpu_custom_call.1} parent=1 // pred_check
      _
    $region63: #{tpu_custom_call.1} parent=1 // pred_check_branch
      %77 = sbr.rel (0) target = $region65
    $region64: #{tpu_custom_call.1} parent=1 // pred_region
      %78 = dma.done [#allocation9], 64
    $region65: #{tpu_custom_call.1} parent=1 // pred_fallthru
      _
    %79 = sfence
    %v81 = vld [vmem:[#allocation7] sm:$0xff]
    %v82 = vpack.c.bf16 %v81, %v81
    %v83 = vld [vmem:[%s6] sm:$0xf]
    %v84 = vld [vmem:[%s6 + $0x4] sm:$0xf]
    %v87 = vunpack.c.l.b16 %v83
    %v88 = vunpack.c.l.b16 %v84
    %v89 = vpack.c.b16 %v88, %v87
    %vm91 = vcmask 130048
    %v93 = vsel %vm91, %v82, 0
    %95 = vmatprep.subr.bf16.mxu0 0
    %96 = vmatpush1.bf16.msra.mxu0 0
    %97 = vmatprep.subr.bf16.mxu0 0
    %98 = vmatpush1.bf16.msra.mxu0 0
    %99 = vmatprep.subr.bf16.mxu0 0
    %100 = vmatpush1.bf16.msra.mxu0 0
    %101 = vmatprep.subr.bf16.mxu0 0
    %102 = vmatpush1.bf16.msra.mxu0 0
    %103 = vmatprep.subr.bf16.mxu0 0
    %104 = vmatpush1.bf16.msra.mxu0 0
    %105 = vmatprep.subr.bf16.mxu0 0
    %106 = vmatpush1.bf16.msra.mxu0 0
    %107 = vmatprep.subr.bf16.mxu0 0
    %108 = vmatpush1.bf16.msra.mxu0 0
    %109 = vmatprep.subr.bf16.mxu0 0
    %110 = vmatpush1.bf16.msra.mxu0 %v89
    %111 = vmatprep.subr.bf16.mxu0 0
    %112 = vmatpush2.bf16.msra.mxu0 0
    %113 = vmatprep.subr.bf16.mxu0 0
    %114 = vmatpush2.bf16.msra.mxu0 0
    %115 = vmatprep.subr.bf16.mxu0 0
    %116 = vmatpush2.bf16.msra.mxu0 0
    %117 = vmatprep.subr.bf16.mxu0 0
    %118 = vmatpush2.bf16.msra.mxu0 0
    %119 = vmatprep.subr.bf16.mxu0 0
    %120 = vmatpush2.bf16.msra.mxu0 0
    %121 = vmatprep.subr.bf16.mxu0 0
    %122 = vmatpush2.bf16.msra.mxu0 0
    %123 = vmatprep.subr.bf16.mxu0 0
    %124 = vmatpush2.bf16.msra.mxu0 0
    %125 = vmatprep.subr.bf16.mxu0 0
    %126 = vmatpush2.bf16.msra.mxu0 0
    %127 = vmatprep.mubr.bf16.mxu0 0
    %128 = vmatmul.mubr.bf16.gmra.mxu0 %v93
    %v129 = vpop.f32.mrf.mxu0
    %v130 = vadd.f32 0.0, %v129
    %v131 = vpop.f32.mrf.mxu0
    %v132 = vpop.f32.mrf.mxu0
    %v133 = vpop.f32.mrf.mxu0
    %134 = vdwg.mxu0
    %v135 = vld [vmem:[%s4] sm:$0x1]
    %v136 = vld [vmem:[%s4 + $0x1] sm:$0x1]
    %v137 = vld [vmem:[%s4 + $0x2] sm:$0x1]
    %v138 = vld [vmem:[%s4 + $0x3] sm:$0x1]
    %v139 = vld [vmem:[%s4 + $0x4] sm:$0x1]
    %v140 = vld [vmem:[%s4 + $0x5] sm:$0x1]
    %v141 = vld [vmem:[%s4 + $0x6] sm:$0x1]
    %v142 = vld [vmem:[%s4 + $0x7] sm:$0x1]
    %v143 = vld [vmem:[%s4 + $0x8] sm:$0x1]
    %v144 = vld [vmem:[%s4 + $0x9] sm:$0x1]
    %v155 = vlaneseq
    %v156 = vshrl.u32 %v155, 7
    %v157 = vsub.s32 0, %v156
    %v158 = vrot.slane %v135, %v157
    %v159 = vlaneseq
    %v160 = vshrl.u32 %v159, 7
    %v161 = vsub.s32 0, %v160
    %v162 = vrot.slane %v136, %v161
    %v163 = vlaneseq
    %v164 = vshrl.u32 %v163, 7
    %v165 = vsub.s32 0, %v164
    %v166 = vrot.slane %v137, %v165
    %v167 = vlaneseq
    %v168 = vshrl.u32 %v167, 7
    %v169 = vsub.s32 0, %v168
    %v170 = vrot.slane %v138, %v169
    %v171 = vlaneseq
    %v172 = vshrl.u32 %v171, 7
    %v173 = vsub.s32 0, %v172
    %v174 = vrot.slane %v139, %v173
    %v175 = vlaneseq
    %v176 = vshrl.u32 %v175, 7
    %v177 = vsub.s32 0, %v176
    %v178 = vrot.slane %v140, %v177
    %v179 = vlaneseq
    %v180 = vshrl.u32 %v179, 7
    %v181 = vsub.s32 0, %v180
    %v182 = vrot.slane %v141, %v181
    %v183 = vlaneseq
    %v184 = vshrl.u32 %v183, 7
    %v185 = vsub.s32 0, %v184
    %v186 = vrot.slane %v142, %v185
    %v187 = vlaneseq
    %v188 = vshrl.u32 %v187, 7
    %v189 = vsub.s32 0, %v188
    %v190 = vrot.slane %v143, %v189
    %v191 = vlaneseq
    %v192 = vshrl.u32 %v191, 7
    %v193 = vsub.s32 0, %v192
    %v194 = vrot.slane %v144, %v193
    %v205 = vadd.f32 %v130, %v158
    %v206 = vadd.f32 %v130, %v162
    %v207 = vadd.f32 %v130, %v166
    %v208 = vadd.f32 %v130, %v170
    %v209 = vadd.f32 %v130, %v174
    %v210 = vadd.f32 %v130, %v178
    %v211 = vadd.f32 %v130, %v182
    %v212 = vadd.f32 %v130, %v186
    %v213 = vadd.f32 %v130, %v190
    %v214 = vadd.f32 %v130, %v194
    %215 = vst [vmem:[#allocation2] sm:$0xff] %v205
    %216 = vst [vmem:[#allocation2 + $0x8] sm:$0xff] %v206
    %217 = vst [vmem:[#allocation2 + $0x10] sm:$0xff] %v207
    %218 = vst [vmem:[#allocation2 + $0x18] sm:$0xff] %v208
    %219 = vst [vmem:[#allocation2 + $0x20] sm:$0xff] %v209
    %220 = vst [vmem:[#allocation2 + $0x28] sm:$0xff] %v210
    %221 = vst [vmem:[#allocation2 + $0x30] sm:$0xff] %v211
    %222 = vst [vmem:[#allocation2 + $0x38] sm:$0xff] %v212
    %223 = vst [vmem:[#allocation2 + $0x40] sm:$0xff] %v213
    %224 = vst [vmem:[#allocation2 + $0x48] sm:$0xff] %v214
    %v225 = vld [vmem:[%s1] sm:$0xff]
    %v226 = vpack.c.bf16 %v225, %v225
    %v227 = vld [vmem:[#allocation8] sm:$0xf]
    %s228 = scalar_lea.vmem [#allocation2], 72
    %v229 = vld [vmem:[%s228] sm:$0xff]
    %vm230 = vcmask 64512
    %v232 = vsel %vm230, %v226, 0
    %vm234 = vcmask 1043456
    %v236 = vsel %vm234, %v227, 0
    %238 = vmatprep.subr.bf16.mxu0 0
    %239 = vmatpush1.bf16.msra.mxu0 0
    %240 = vmatprep.subr.bf16.mxu0 0
    %241 = vmatpush1.bf16.msra.mxu0 0
    %242 = vmatprep.subr.bf16.mxu0 0
    %243 = vmatpush1.bf16.msra.mxu0 0
    %244 = vmatprep.subr.bf16.mxu0 0
    %245 = vmatpush1.bf16.msra.mxu0 0
    %246 = vmatprep.subr.bf16.mxu0 0
    %247 = vmatpush1.bf16.msra.mxu0 0
    %248 = vmatprep.subr.bf16.mxu0 0
    %249 = vmatpush1.bf16.msra.mxu0 0
    %250 = vmatprep.subr.bf16.mxu0 0
    %251 = vmatpush1.bf16.msra.mxu0 0
    %252 = vmatprep.subr.bf16.mxu0 0
    %253 = vmatpush1.bf16.msra.mxu0 %v236
    %254 = vmatprep.subr.bf16.mxu0 0
    %255 = vmatpush2.bf16.msra.mxu0 0
    %256 = vmatprep.subr.bf16.mxu0 0
    %257 = vmatpush2.bf16.msra.mxu0 0
    %258 = vmatprep.subr.bf16.mxu0 0
    %259 = vmatpush2.bf16.msra.mxu0 0
    %260 = vmatprep.subr.bf16.mxu0 0
    %261 = vmatpush2.bf16.msra.mxu0 0
    %262 = vmatprep.subr.bf16.mxu0 0
    %263 = vmatpush2.bf16.msra.mxu0 0
    %264 = vmatprep.subr.bf16.mxu0 0
    %265 = vmatpush2.bf16.msra.mxu0 0
    %266 = vmatprep.subr.bf16.mxu0 0
    %267 = vmatpush2.bf16.msra.mxu0 0
    %268 = vmatprep.subr.bf16.mxu0 0
    %269 = vmatpush2.bf16.msra.mxu0 0
    %270 = vmatprep.mubr.bf16.mxu0 0
    %271 = vmatmul.mubr.bf16.gmra.mxu0 %v232
    %v272 = vpop.f32.mrf.mxu0
    %v273 = vadd.f32 %v229, %v272
    %v274 = vpop.f32.mrf.mxu0
    %v275 = vpop.f32.mrf.mxu0
    %v276 = vpop.f32.mrf.mxu0
    %277 = vdwg.mxu0
    %v278 = vmin.f32 %v273, 20.0
    %v279 = vmul.f32 %v278, 1.442695
    %v280 = vpow.pop %v279
    %v281 = vadd.f32 %v280, 1.0
    %v282 = vmul.f32 %v281, %v281
    %v283 = vsub.f32 %v282, 1.0
    %v284 = vmul.f32 %v273, %v283
    %v285 = vadd.f32 %v282, 1.0
    %v286 = vrcp.pop %v285
    %v287 = vmul.f32 %v284, %v286
    %v288 = vpack.c.bf16 %v287, %v287
    %v289 = vld [vmem:[%s7] sm:$0xf]
    %v290 = vld [vmem:[%s7 + $0x4] sm:$0xf]
    %v291 = vld [vmem:[%s7 + $0x8] sm:$0xf]
    %v292 = vld [vmem:[%s7 + $0xc] sm:$0xf]
    %v293 = vld [vmem:[%s7 + $0x10] sm:$0xf]
    %v294 = vld [vmem:[%s7 + $0x14] sm:$0xf]
    %v295 = vld [vmem:[%s7 + $0x18] sm:$0xf]
    %v296 = vld [vmem:[%s7 + $0x1c] sm:$0xf]
    %v297 = vld [vmem:[%s7 + $0x20] sm:$0xf]
    %v298 = vld [vmem:[%s7 + $0x24] sm:$0xf]
    %v299 = vld [vmem:[%s7 + $0x28] sm:$0xf]
    %v300 = vld [vmem:[%s7 + $0x2c] sm:$0xf]
    %v301 = vld [vmem:[%s7 + $0x30] sm:$0xf]
    %v302 = vld [vmem:[%s7 + $0x34] sm:$0xf]
    %v303 = vld [vmem:[%s7 + $0x38] sm:$0xf]
    %v304 = vld [vmem:[%s7 + $0x3c] sm:$0xf]
    %v305 = vld [vmem:[%s8] sm:$0x1]
    %v307 = vlaneseq
    %v308 = vshrl.u32 %v307, 7
    %v309 = vsub.s32 0, %v308
    %v310 = vrot.slane %v305, %v309
    %v328 = vunpack.c.l.b16 %v289
    %v329 = vunpack.c.l.b16 %v290
    %v330 = vunpack.c.l.b16 %v291
    %v331 = vunpack.c.l.b16 %v292
    %v332 = vunpack.c.l.b16 %v293
    %v333 = vunpack.c.l.b16 %v294
    %v334 = vunpack.c.l.b16 %v295
    %v335 = vunpack.c.l.b16 %v296
    %v336 = vunpack.c.l.b16 %v297
    %v337 = vunpack.c.l.b16 %v298
    %v338 = vunpack.c.l.b16 %v299
    %v339 = vunpack.c.l.b16 %v300
    %v340 = vunpack.c.l.b16 %v301
    %v341 = vunpack.c.l.b16 %v302
    %v342 = vunpack.c.l.b16 %v303
    %v343 = vunpack.c.l.b16 %v304
    %v344 = vpack.c.b16 %v329, %v328
    %v345 = vpack.c.b16 %v331, %v330
    %v346 = vpack.c.b16 %v333, %v332
    %v347 = vpack.c.b16 %v335, %v334
    %v348 = vpack.c.b16 %v337, %v336
    %v349 = vpack.c.b16 %v339, %v338
    %v350 = vpack.c.b16 %v341, %v340
    %v351 = vpack.c.b16 %v343, %v342
    %360 = vmatprep.subr.bf16.mxu0 0
    %361 = vmatpush1.bf16.msra.mxu0 %v351
    %362 = vmatprep.subr.bf16.mxu0 0
    %363 = vmatpush1.bf16.msra.mxu0 %v350
    %364 = vmatprep.subr.bf16.mxu0 0
    %365 = vmatpush1.bf16.msra.mxu0 %v349
    %366 = vmatprep.subr.bf16.mxu0 0
    %367 = vmatpush1.bf16.msra.mxu0 %v348
    %368 = vmatprep.subr.bf16.mxu0 0
    %369 = vmatpush1.bf16.msra.mxu0 %v347
    %370 = vmatprep.subr.bf16.mxu0 0
    %371 = vmatpush1.bf16.msra.mxu0 %v346
    %372 = vmatprep.subr.bf16.mxu0 0
    %373 = vmatpush1.bf16.msra.mxu0 %v345
    %374 = vmatprep.subr.bf16.mxu0 0
    %375 = vmatpush1.bf16.msra.mxu0 %v344
    %376 = vmatprep.subr.bf16.mxu0 0
    %377 = vmatpush2.bf16.msra.mxu0 0
    %378 = vmatprep.subr.bf16.mxu0 0
    %379 = vmatpush2.bf16.msra.mxu0 0
    %380 = vmatprep.subr.bf16.mxu0 0
    %381 = vmatpush2.bf16.msra.mxu0 0
    %382 = vmatprep.subr.bf16.mxu0 0
    %383 = vmatpush2.bf16.msra.mxu0 0
    %384 = vmatprep.subr.bf16.mxu0 0
    %385 = vmatpush2.bf16.msra.mxu0 0
    %386 = vmatprep.subr.bf16.mxu0 0
    %387 = vmatpush2.bf16.msra.mxu0 0
    %388 = vmatprep.subr.bf16.mxu0 0
    %389 = vmatpush2.bf16.msra.mxu0 0
    %390 = vmatprep.subr.bf16.mxu0 0
    %391 = vmatpush2.bf16.msra.mxu0 0
    %392 = vmatprep.mubr.bf16.mxu0 0
    %393 = vmatmul.mubr.bf16.gmra.mxu0 %v288
    %v394 = vpop.f32.mrf.mxu0
    %v395 = vadd.f32 %v310, %v394
    %v396 = vpop.f32.mrf.mxu0
    %v397 = vpop.f32.mrf.mxu0
    %v398 = vpop.f32.mrf.mxu0
    %399 = vdwg.mxu0
    %v400 = vmin.f32 %v395, 20.0
    %v401 = vmul.f32 %v400, 1.442695
    %v402 = vpow.pop %v401
    %v403 = vadd.f32 %v402, 1.0
    %v404 = vmul.f32 %v403, %v403
    %v405 = vsub.f32 %v404, 1.0
    %v406 = vmul.f32 %v395, %v405
    %v407 = vadd.f32 %v404, 1.0
    %v408 = vrcp.pop %v407
    %v409 = vmul.f32 %v406, %v408
    %v410 = vpack.c.bf16 %v409, %v409
    %v411 = vld [vmem:[%s9] sm:$0xf]
    %v412 = vld [vmem:[%s9 + $0x4] sm:$0xf]
    %v413 = vld [vmem:[%s9 + $0x8] sm:$0xf]
    %v414 = vld [vmem:[%s9 + $0xc] sm:$0xf]
    %v415 = vld [vmem:[%s9 + $0x10] sm:$0xf]
    %v416 = vld [vmem:[%s9 + $0x14] sm:$0xf]
    %v417 = vld [vmem:[%s9 + $0x18] sm:$0xf]
    %v418 = vld [vmem:[%s9 + $0x1c] sm:$0xf]
    %v419 = vld [vmem:[%s9 + $0x20] sm:$0xf]
    %v420 = vld [vmem:[%s9 + $0x24] sm:$0xf]
    %v421 = vld [vmem:[%s9 + $0x28] sm:$0xf]
    %v422 = vld [vmem:[%s9 + $0x2c] sm:$0xf]
    %v423 = vld [vmem:[%s9 + $0x30] sm:$0xf]
    %v424 = vld [vmem:[%s9 + $0x34] sm:$0xf]
    %v425 = vld [vmem:[%s9 + $0x38] sm:$0xf]
    %v426 = vld [vmem:[%s9 + $0x3c] sm:$0xf]
    %v427 = vld [vmem:[%s10] sm:$0x1]
    %v429 = vlaneseq
    %v430 = vshrl.u32 %v429, 7
    %v431 = vsub.s32 0, %v430
    %v432 = vrot.slane %v427, %v431
    %v450 = vunpack.c.l.b16 %v411
    %v451 = vunpack.c.l.b16 %v412
    %v452 = vunpack.c.l.b16 %v413
    %v453 = vunpack.c.l.b16 %v414
    %v454 = vunpack.c.l.b16 %v415
    %v455 = vunpack.c.l.b16 %v416
    %v456 = vunpack.c.l.b16 %v417
    %v457 = vunpack.c.l.b16 %v418
    %v458 = vunpack.c.l.b16 %v419
    %v459 = vunpack.c.l.b16 %v420
    %v460 = vunpack.c.l.b16 %v421
    %v461 = vunpack.c.l.b16 %v422
    %v462 = vunpack.c.l.b16 %v423
    %v463 = vunpack.c.l.b16 %v424
    %v464 = vunpack.c.l.b16 %v425
    %v465 = vunpack.c.l.b16 %v426
    %v466 = vpack.c.b16 %v451, %v450
    %v467 = vpack.c.b16 %v453, %v452
    %v468 = vpack.c.b16 %v455, %v454
    %v469 = vpack.c.b16 %v457, %v456
    %v470 = vpack.c.b16 %v459, %v458
    %v471 = vpack.c.b16 %v461, %v460
    %v472 = vpack.c.b16 %v463, %v462
    %v473 = vpack.c.b16 %v465, %v464
    %482 = vmatprep.subr.bf16.mxu0 0
    %483 = vmatpush1.bf16.msra.mxu0 %v473
    %484 = vmatprep.subr.bf16.mxu0 0
    %485 = vmatpush1.bf16.msra.mxu0 %v472
    %486 = vmatprep.subr.bf16.mxu0 0
    %487 = vmatpush1.bf16.msra.mxu0 %v471
    %488 = vmatprep.subr.bf16.mxu0 0
    %489 = vmatpush1.bf16.msra.mxu0 %v470
    %490 = vmatprep.subr.bf16.mxu0 0
    %491 = vmatpush1.bf16.msra.mxu0 %v469
    %492 = vmatprep.subr.bf16.mxu0 0
    %493 = vmatpush1.bf16.msra.mxu0 %v468
    %494 = vmatprep.subr.bf16.mxu0 0
    %495 = vmatpush1.bf16.msra.mxu0 %v467
    %496 = vmatprep.subr.bf16.mxu0 0
    %497 = vmatpush1.bf16.msra.mxu0 %v466
    %498 = vmatprep.subr.bf16.mxu0 0
    %499 = vmatpush2.bf16.msra.mxu0 0
    %500 = vmatprep.subr.bf16.mxu0 0
    %501 = vmatpush2.bf16.msra.mxu0 0
    %502 = vmatprep.subr.bf16.mxu0 0
    %503 = vmatpush2.bf16.msra.mxu0 0
    %504 = vmatprep.subr.bf16.mxu0 0
    %505 = vmatpush2.bf16.msra.mxu0 0
    %506 = vmatprep.subr.bf16.mxu0 0
    %507 = vmatpush2.bf16.msra.mxu0 0
    %508 = vmatprep.subr.bf16.mxu0 0
    %509 = vmatpush2.bf16.msra.mxu0 0
    %510 = vmatprep.subr.bf16.mxu0 0
    %511 = vmatpush2.bf16.msra.mxu0 0
    %512 = vmatprep.subr.bf16.mxu0 0
    %513 = vmatpush2.bf16.msra.mxu0 0
    %514 = vmatprep.mubr.bf16.mxu0 0
    %515 = vmatmul.mubr.bf16.gmra.mxu0 %v410
    %v516 = vpop.f32.mrf.mxu0
    %v517 = vadd.f32 %v432, %v516
    %v518 = vpop.f32.mrf.mxu0
    %v519 = vpop.f32.mrf.mxu0
    %v520 = vpop.f32.mrf.mxu0
    %521 = vdwg.mxu0
    %v522 = vmin.f32 %v517, 20.0
    %v523 = vmul.f32 %v522, 1.442695
    %v524 = vpow.pop %v523
    %v525 = vadd.f32 %v524, 1.0
    %v526 = vmul.f32 %v525, %v525
    %v527 = vsub.f32 %v526, 1.0
    %v528 = vmul.f32 %v517, %v527
    %v529 = vadd.f32 %v526, 1.0
    %v530 = vrcp.pop %v529
    %v531 = vmul.f32 %v528, %v530
    %v532 = vpack.c.bf16 %v531, %v531
    %v533 = vld [vmem:[%s11] sm:$0xf]
    %v534 = vld [vmem:[%s11 + $0x4] sm:$0xf]
    %v535 = vld [vmem:[%s11 + $0x8] sm:$0xf]
    %v536 = vld [vmem:[%s11 + $0xc] sm:$0xf]
    %v537 = vld [vmem:[%s11 + $0x10] sm:$0xf]
    %v538 = vld [vmem:[%s11 + $0x14] sm:$0xf]
    %v539 = vld [vmem:[%s11 + $0x18] sm:$0xf]
    %v540 = vld [vmem:[%s11 + $0x1c] sm:$0xf]
    %v541 = vld [vmem:[%s11 + $0x20] sm:$0xf]
    %v542 = vld [vmem:[%s11 + $0x24] sm:$0xf]
    %v543 = vld [vmem:[%s11 + $0x28] sm:$0xf]
    %v544 = vld [vmem:[%s11 + $0x2c] sm:$0xf]
    %v545 = vld [vmem:[%s11 + $0x30] sm:$0xf]
    %v546 = vld [vmem:[%s11 + $0x34] sm:$0xf]
    %v547 = vld [vmem:[%s11 + $0x38] sm:$0xf]
    %v548 = vld [vmem:[%s11 + $0x3c] sm:$0xf]
    %v549 = vld [vmem:[%s12] sm:$0x1]
    %v551 = vlaneseq
    %v552 = vshrl.u32 %v551, 7
    %v553 = vsub.s32 0, %v552
    %v554 = vrot.slane %v549, %v553
    %v572 = vunpack.c.l.b16 %v533
    %v573 = vunpack.c.l.b16 %v534
    %v574 = vunpack.c.l.b16 %v535
    %v575 = vunpack.c.l.b16 %v536
    %v576 = vunpack.c.l.b16 %v537
    %v577 = vunpack.c.l.b16 %v538
    %v578 = vunpack.c.l.b16 %v539
    %v579 = vunpack.c.l.b16 %v540
    %v580 = vunpack.c.l.b16 %v541
    %v581 = vunpack.c.l.b16 %v542
    %v582 = vunpack.c.l.b16 %v543
    %v583 = vunpack.c.l.b16 %v544
    %v584 = vunpack.c.l.b16 %v545
    %v585 = vunpack.c.l.b16 %v546
    %v586 = vunpack.c.l.b16 %v547
    %v587 = vunpack.c.l.b16 %v548
    %v588 = vpack.c.b16 %v573, %v572
    %v589 = vpack.c.b16 %v575, %v574
    %v590 = vpack.c.b16 %v577, %v576
    %v591 = vpack.c.b16 %v579, %v578
    %v592 = vpack.c.b16 %v581, %v580
    %v593 = vpack.c.b16 %v583, %v582
    %v594 = vpack.c.b16 %v585, %v584
    %v595 = vpack.c.b16 %v587, %v586
    %604 = vmatprep.subr.bf16.mxu0 0
    %605 = vmatpush1.bf16.msra.mxu0 %v595
    %606 = vmatprep.subr.bf16.mxu0 0
    %607 = vmatpush1.bf16.msra.mxu0 %v594
    %608 = vmatprep.subr.bf16.mxu0 0
    %609 = vmatpush1.bf16.msra.mxu0 %v593
    %610 = vmatprep.subr.bf16.mxu0 0
    %611 = vmatpush1.bf16.msra.mxu0 %v592
    %612 = vmatprep.subr.bf16.mxu0 0
    %613 = vmatpush1.bf16.msra.mxu0 %v591
    %614 = vmatprep.subr.bf16.mxu0 0
    %615 = vmatpush1.bf16.msra.mxu0 %v590
    %616 = vmatprep.subr.bf16.mxu0 0
    %617 = vmatpush1.bf16.msra.mxu0 %v589
    %618 = vmatprep.subr.bf16.mxu0 0
    %619 = vmatpush1.bf16.msra.mxu0 %v588
    %620 = vmatprep.subr.bf16.mxu0 0
    %621 = vmatpush2.bf16.msra.mxu0 0
    %622 = vmatprep.subr.bf16.mxu0 0
    %623 = vmatpush2.bf16.msra.mxu0 0
    %624 = vmatprep.subr.bf16.mxu0 0
    %625 = vmatpush2.bf16.msra.mxu0 0
    %626 = vmatprep.subr.bf16.mxu0 0
    %627 = vmatpush2.bf16.msra.mxu0 0
    %628 = vmatprep.subr.bf16.mxu0 0
    %629 = vmatpush2.bf16.msra.mxu0 0
    %630 = vmatprep.subr.bf16.mxu0 0
    %631 = vmatpush2.bf16.msra.mxu0 0
    %632 = vmatprep.subr.bf16.mxu0 0
    %633 = vmatpush2.bf16.msra.mxu0 0
    %634 = vmatprep.subr.bf16.mxu0 0
    %635 = vmatpush2.bf16.msra.mxu0 0
    %636 = vmatprep.mubr.bf16.mxu0 0
    %637 = vmatmul.mubr.bf16.gmra.mxu0 %v532
    %v638 = vpop.f32.mrf.mxu0
    %v639 = vadd.f32 %v554, %v638
    %v640 = vpop.f32.mrf.mxu0
    %v641 = vpop.f32.mrf.mxu0
    %v642 = vpop.f32.mrf.mxu0
    %643 = vdwg.mxu0
    %s644 = sld [smem:[#allocation3 + $0x9]]
    %s645 = sld [smem:[#allocation3 + $0x89]]
    %s646 = sld [smem:[#allocation3 + $0x109]]
    %v647 = vstv %s644
    %v648 = vmul.f32 %v647, %v225
    %v649 = vstv %s645
    %v650 = vmul.f32 %v649, %v639
    %v651 = vsub.f32 %v648, %v650
    %s652 = scalar_lea.vmem %s3, 72
    %v653 = vld [vmem:[%s652] sm:$0xff]
    %v654 = vstv %s646
    %v655 = vmul.f32 %v654, %v653
    %v656 = vadd.f32 %v651, %v655
    %v657 = vpack.c.bf16 %v656, %v656
    %s658 = scalar_lea.vmem [#allocation2], 64
    %v659 = vld [vmem:[%s658] sm:$0xff]
    %v661 = vsel %vm230, %v657, 0
    %663 = vmatprep.subr.bf16.mxu0 0
    %664 = vmatpush1.bf16.msra.mxu0 0
    %665 = vmatprep.subr.bf16.mxu0 0
    %666 = vmatpush1.bf16.msra.mxu0 0
    %667 = vmatprep.subr.bf16.mxu0 0
    %668 = vmatpush1.bf16.msra.mxu0 0
    %669 = vmatprep.subr.bf16.mxu0 0
    %670 = vmatpush1.bf16.msra.mxu0 0
    %671 = vmatprep.subr.bf16.mxu0 0
    %672 = vmatpush1.bf16.msra.mxu0 0
    %673 = vmatprep.subr.bf16.mxu0 0
    %674 = vmatpush1.bf16.msra.mxu0 0
    %675 = vmatprep.subr.bf16.mxu0 0
    %676 = vmatpush1.bf16.msra.mxu0 0
    %677 = vmatprep.subr.bf16.mxu0 0
    %678 = vmatpush1.bf16.msra.mxu0 %v236
    %679 = vmatprep.subr.bf16.mxu0 0
    %680 = vmatpush2.bf16.msra.mxu0 0
    %681 = vmatprep.subr.bf16.mxu0 0
    %682 = vmatpush2.bf16.msra.mxu0 0
    %683 = vmatprep.subr.bf16.mxu0 0
    %684 = vmatpush2.bf16.msra.mxu0 0
    %685 = vmatprep.subr.bf16.mxu0 0
    %686 = vmatpush2.bf16.msra.mxu0 0
    %687 = vmatprep.subr.bf16.mxu0 0
    %688 = vmatpush2.bf16.msra.mxu0 0
    %689 = vmatprep.subr.bf16.mxu0 0
    %690 = vmatpush2.bf16.msra.mxu0 0
    %691 = vmatprep.subr.bf16.mxu0 0
    %692 = vmatpush2.bf16.msra.mxu0 0
    %693 = vmatprep.subr.bf16.mxu0 0
    %694 = vmatpush2.bf16.msra.mxu0 0
    %695 = vmatprep.mubr.bf16.mxu0 0
    %696 = vmatmul.mubr.bf16.gmra.mxu0 %v661
    %v697 = vpop.f32.mrf.mxu0
    %v698 = vadd.f32 %v659, %v697
    %v699 = vpop.f32.mrf.mxu0
    %v700 = vpop.f32.mrf.mxu0
    %v701 = vpop.f32.mrf.mxu0
    %702 = vdwg.mxu0
    %v703 = vmin.f32 %v698, 20.0
    %v704 = vmul.f32 %v703, 1.442695
    %v705 = vpow.pop %v704
    %v706 = vadd.f32 %v705, 1.0
    %v707 = vmul.f32 %v706, %v706
    %v708 = vsub.f32 %v707, 1.0
    %v709 = vmul.f32 %v698, %v708
    %v710 = vadd.f32 %v707, 1.0
    %v711 = vrcp.pop %v710
    %v712 = vmul.f32 %v709, %v711
    %v713 = vpack.c.bf16 %v712, %v712
    %714 = vmatprep.subr.bf16.mxu0 0
    %715 = vmatpush1.bf16.msra.mxu0 %v351
    %716 = vmatprep.subr.bf16.mxu0 0
    %717 = vmatpush1.bf16.msra.mxu0 %v350
    %718 = vmatprep.subr.bf16.mxu0 0
    %719 = vmatpush1.bf16.msra.mxu0 %v349
    %720 = vmatprep.subr.bf16.mxu0 0
    %721 = vmatpush1.bf16.msra.mxu0 %v348
    %722 = vmatprep.subr.bf16.mxu0 0
    %723 = vmatpush1.bf16.msra.mxu0 %v347
    %724 = vmatprep.subr.bf16.mxu0 0
    %725 = vmatpush1.bf16.msra.mxu0 %v346
    %726 = vmatprep.subr.bf16.mxu0 0
    %727 = vmatpush1.bf16.msra.mxu0 %v345
    %728 = vmatprep.subr.bf16.mxu0 0
    %729 = vmatpush1.bf16.msra.mxu0 %v344
    %730 = vmatprep.subr.bf16.mxu0 0
    %731 = vmatpush2.bf16.msra.mxu0 0
    %732 = vmatprep.subr.bf16.mxu0 0
    %733 = vmatpush2.bf16.msra.mxu0 0
    %734 = vmatprep.subr.bf16.mxu0 0
    %735 = vmatpush2.bf16.msra.mxu0 0
    %736 = vmatprep.subr.bf16.mxu0 0
    %737 = vmatpush2.bf16.msra.mxu0 0
    %738 = vmatprep.subr.bf16.mxu0 0
    %739 = vmatpush2.bf16.msra.mxu0 0
    %740 = vmatprep.subr.bf16.mxu0 0
    %741 = vmatpush2.bf16.msra.mxu0 0
    %742 = vmatprep.subr.bf16.mxu0 0
    %743 = vmatpush2.bf16.msra.mxu0 0
    %744 = vmatprep.subr.bf16.mxu0 0
    %745 = vmatpush2.bf16.msra.mxu0 0
    %746 = vmatprep.mubr.bf16.mxu0 0
    %747 = vmatmul.mubr.bf16.gmra.mxu0 %v713
    %v748 = vpop.f32.mrf.mxu0
    %v749 = vadd.f32 %v310, %v748
    %v750 = vpop.f32.mrf.mxu0
    %v751 = vpop.f32.mrf.mxu0
    %v752 = vpop.f32.mrf.mxu0
    %753 = vdwg.mxu0
    %v754 = vmin.f32 %v749, 20.0
    %v755 = vmul.f32 %v754, 1.442695
    %v756 = vpow.pop %v755
    %v757 = vadd.f32 %v756, 1.0
    %v758 = vmul.f32 %v757, %v757
    %v759 = vsub.f32 %v758, 1.0
    %v760 = vmul.f32 %v749, %v759
    %v761 = vadd.f32 %v758, 1.0
    %v762 = vrcp.pop %v761
    %v763 = vmul.f32 %v760, %v762
    %v764 = vpack.c.bf16 %v763, %v763
    %765 = vmatprep.subr.bf16.mxu0 0
    %766 = vmatpush1.bf16.msra.mxu0 %v473
    %767 = vmatprep.subr.bf16.mxu0 0
    %768 = vmatpush1.bf16.msra.mxu0 %v472
    %769 = vmatprep.subr.bf16.mxu0 0
    %770 = vmatpush1.bf16.msra.mxu0 %v471
    %771 = vmatprep.subr.bf16.mxu0 0
    %772 = vmatpush1.bf16.msra.mxu0 %v470
    %773 = vmatprep.subr.bf16.mxu0 0
    %774 = vmatpush1.bf16.msra.mxu0 %v469
    %775 = vmatprep.subr.bf16.mxu0 0
    %776 = vmatpush1.bf16.msra.mxu0 %v468
    %777 = vmatprep.subr.bf16.mxu0 0
    %778 = vmatpush1.bf16.msra.mxu0 %v467
    %779 = vmatprep.subr.bf16.mxu0 0
    %780 = vmatpush1.bf16.msra.mxu0 %v466
    %781 = vmatprep.subr.bf16.mxu0 0
    %782 = vmatpush2.bf16.msra.mxu0 0
    %783 = vmatprep.subr.bf16.mxu0 0
    %784 = vmatpush2.bf16.msra.mxu0 0
    %785 = vmatprep.subr.bf16.mxu0 0
    %786 = vmatpush2.bf16.msra.mxu0 0
    %787 = vmatprep.subr.bf16.mxu0 0
    %788 = vmatpush2.bf16.msra.mxu0 0
    %789 = vmatprep.subr.bf16.mxu0 0
    %790 = vmatpush2.bf16.msra.mxu0 0
    %791 = vmatprep.subr.bf16.mxu0 0
    %792 = vmatpush2.bf16.msra.mxu0 0
    %793 = vmatprep.subr.bf16.mxu0 0
    %794 = vmatpush2.bf16.msra.mxu0 0
    %795 = vmatprep.subr.bf16.mxu0 0
    %796 = vmatpush2.bf16.msra.mxu0 0
    %797 = vmatprep.mubr.bf16.mxu0 0
    %798 = vmatmul.mubr.bf16.gmra.mxu0 %v764
    %v799 = vpop.f32.mrf.mxu0
    %v800 = vadd.f32 %v432, %v799
    %v801 = vpop.f32.mrf.mxu0
    %v802 = vpop.f32.mrf.mxu0
    %v803 = vpop.f32.mrf.mxu0
    %804 = vdwg.mxu0
    %v805 = vmin.f32 %v800, 20.0
    %v806 = vmul.f32 %v805, 1.442695
    %v807 = vpow.pop %v806
    %v808 = vadd.f32 %v807, 1.0
    %v809 = vmul.f32 %v808, %v808
    %v810 = vsub.f32 %v809, 1.0
    %v811 = vmul.f32 %v800, %v810
    %v812 = vadd.f32 %v809, 1.0
    %v813 = vrcp.pop %v812
    %v814 = vmul.f32 %v811, %v813
    %v815 = vpack.c.bf16 %v814, %v814
    %816 = vmatprep.subr.bf16.mxu0 0
    %817 = vmatpush1.bf16.msra.mxu0 %v595
    %818 = vmatprep.subr.bf16.mxu0 0
    %819 = vmatpush1.bf16.msra.mxu0 %v594
    %820 = vmatprep.subr.bf16.mxu0 0
    %821 = vmatpush1.bf16.msra.mxu0 %v593
    %822 = vmatprep.subr.bf16.mxu0 0
    %823 = vmatpush1.bf16.msra.mxu0 %v592
    %824 = vmatprep.subr.bf16.mxu0 0
    %825 = vmatpush1.bf16.msra.mxu0 %v591
    %826 = vmatprep.subr.bf16.mxu0 0
    %827 = vmatpush1.bf16.msra.mxu0 %v590
    %828 = vmatprep.subr.bf16.mxu0 0
    %829 = vmatpush1.bf16.msra.mxu0 %v589
    %830 = vmatprep.subr.bf16.mxu0 0
    %831 = vmatpush1.bf16.msra.mxu0 %v588
    %832 = vmatprep.subr.bf16.mxu0 0
    %833 = vmatpush2.bf16.msra.mxu0 0
    %834 = vmatprep.subr.bf16.mxu0 0
    %835 = vmatpush2.bf16.msra.mxu0 0
    %836 = vmatprep.subr.bf16.mxu0 0
    %837 = vmatpush2.bf16.msra.mxu0 0
    %838 = vmatprep.subr.bf16.mxu0 0
    %839 = vmatpush2.bf16.msra.mxu0 0
    %840 = vmatprep.subr.bf16.mxu0 0
    %841 = vmatpush2.bf16.msra.mxu0 0
    %842 = vmatprep.subr.bf16.mxu0 0
    %843 = vmatpush2.bf16.msra.mxu0 0
    %844 = vmatprep.subr.bf16.mxu0 0
    %845 = vmatpush2.bf16.msra.mxu0 0
    %846 = vmatprep.subr.bf16.mxu0 0
    %847 = vmatpush2.bf16.msra.mxu0 0
    %848 = vmatprep.mubr.bf16.mxu0 0
    %849 = vmatmul.mubr.bf16.gmra.mxu0 %v815
    %v850 = vpop.f32.mrf.mxu0
    %v851 = vadd.f32 %v554, %v850
    %v852 = vpop.f32.mrf.mxu0
    %v853 = vpop.f32.mrf.mxu0
    %v854 = vpop.f32.mrf.mxu0
    %855 = vdwg.mxu0
    %s856 = sld [smem:[#allocation3 + $0x8]]
    %s857 = sld [smem:[#allocation3 + $0x88]]
    %s858 = sld [smem:[#allocation3 + $0x108]]
    %v859 = vstv %s856
    %v860 = vmul.f32 %v859, %v656
    %v861 = vstv %s857
    %v862 = vmul.f32 %v861, %v851
    %v863 = vsub.f32 %v860, %v862
    %s864 = scalar_lea.vmem %s3, 64
    %v865 = vld [vmem:[%s864] sm:$0xff]
    %v866 = vstv %s858
    %v867 = vmul.f32 %v866, %v865
    %v868 = vadd.f32 %v863, %v867
    %v869 = vpack.c.bf16 %v868, %v868
    %s870 = scalar_lea.vmem [#allocation2], 56
    %v871 = vld [vmem:[%s870] sm:$0xff]
    %v873 = vsel %vm230, %v869, 0
    %875 = vmatprep.subr.bf16.mxu0 0
    %876 = vmatpush1.bf16.msra.mxu0 0
    %877 = vmatprep.subr.bf16.mxu0 0
    %878 = vmatpush1.bf16.msra.mxu0 0
    %879 = vmatprep.subr.bf16.mxu0 0
    %880 = vmatpush1.bf16.msra.mxu0 0
    %881 = vmatprep.subr.bf16.mxu0 0
    %882 = vmatpush1.bf16.msra.mxu0 0
    %883 = vmatprep.subr.bf16.mxu0 0
    %884 = vmatpush1.bf16.msra.mxu0 0
    %885 = vmatprep.subr.bf16.mxu0 0
    %886 = vmatpush1.bf16.msra.mxu0 0
    %887 = vmatprep.subr.bf16.mxu0 0
    %888 = vmatpush1.bf16.msra.mxu0 0
    %889 = vmatprep.subr.bf16.mxu0 0
    %890 = vmatpush1.bf16.msra.mxu0 %v236
    %891 = vmatprep.subr.bf16.mxu0 0
    %892 = vmatpush2.bf16.msra.mxu0 0
    %893 = vmatprep.subr.bf16.mxu0 0
    %894 = vmatpush2.bf16.msra.mxu0 0
    %895 = vmatprep.subr.bf16.mxu0 0
    %896 = vmatpush2.bf16.msra.mxu0 0
    %897 = vmatprep.subr.bf16.mxu0 0
    %898 = vmatpush2.bf16.msra.mxu0 0
    %899 = vmatprep.subr.bf16.mxu0 0
    %900 = vmatpush2.bf16.msra.mxu0 0
    %901 = vmatprep.subr.bf16.mxu0 0
    %902 = vmatpush2.bf16.msra.mxu0 0
    %903 = vmatprep.subr.bf16.mxu0 0
    %904 = vmatpush2.bf16.msra.mxu0 0
    %905 = vmatprep.subr.bf16.mxu0 0
    %906 = vmatpush2.bf16.msra.mxu0 0
    %907 = vmatprep.mubr.bf16.mxu0 0
    %908 = vmatmul.mubr.bf16.gmra.mxu0 %v873
    %v909 = vpop.f32.mrf.mxu0
    %v910 = vadd.f32 %v871, %v909
    %v911 = vpop.f32.mrf.mxu0
    %v912 = vpop.f32.mrf.mxu0
    %v913 = vpop.f32.mrf.mxu0
    %914 = vdwg.mxu0
    %v915 = vmin.f32 %v910, 20.0
    %v916 = vmul.f32 %v915, 1.442695
    %v917 = vpow.pop %v916
    %v918 = vadd.f32 %v917, 1.0
    %v919 = vmul.f32 %v918, %v918
    %v920 = vsub.f32 %v919, 1.0
    %v921 = vmul.f32 %v910, %v920
    %v922 = vadd.f32 %v919, 1.0
    %v923 = vrcp.pop %v922
    %v924 = vmul.f32 %v921, %v923
    %v925 = vpack.c.bf16 %v924, %v924
    %926 = vmatprep.subr.bf16.mxu0 0
    %927 = vmatpush1.bf16.msra.mxu0 %v351
    %928 = vmatprep.subr.bf16.mxu0 0
    %929 = vmatpush1.bf16.msra.mxu0 %v350
    %930 = vmatprep.subr.bf16.mxu0 0
    %931 = vmatpush1.bf16.msra.mxu0 %v349
    %932 = vmatprep.subr.bf16.mxu0 0
    %933 = vmatpush1.bf16.msra.mxu0 %v348
    %934 = vmatprep.subr.bf16.mxu0 0
    %935 = vmatpush1.bf16.msra.mxu0 %v347
    %936 = vmatprep.subr.bf16.mxu0 0
    %937 = vmatpush1.bf16.msra.mxu0 %v346
    %938 = vmatprep.subr.bf16.mxu0 0
    %939 = vmatpush1.bf16.msra.mxu0 %v345
    %940 = vmatprep.subr.bf16.mxu0 0
    %941 = vmatpush1.bf16.msra.mxu0 %v344
    %942 = vmatprep.subr.bf16.mxu0 0
    %943 = vmatpush2.bf16.msra.mxu0 0
    %944 = vmatprep.subr.bf16.mxu0 0
    %945 = vmatpush2.bf16.msra.mxu0 0
    %946 = vmatprep.subr.bf16.mxu0 0
    %947 = vmatpush2.bf16.msra.mxu0 0
    %948 = vmatprep.subr.bf16.mxu0 0
    %949 = vmatpush2.bf16.msra.mxu0 0
    %950 = vmatprep.subr.bf16.mxu0 0
    %951 = vmatpush2.bf16.msra.mxu0 0
    %952 = vmatprep.subr.bf16.mxu0 0
    %953 = vmatpush2.bf16.msra.mxu0 0
    %954 = vmatprep.subr.bf16.mxu0 0
    %955 = vmatpush2.bf16.msra.mxu0 0
    %956 = vmatprep.subr.bf16.mxu0 0
    %957 = vmatpush2.bf16.msra.mxu0 0
    %958 = vmatprep.mubr.bf16.mxu0 0
    %959 = vmatmul.mubr.bf16.gmra.mxu0 %v925
    %v960 = vpop.f32.mrf.mxu0
    %v961 = vadd.f32 %v310, %v960
    %v962 = vpop.f32.mrf.mxu0
    %v963 = vpop.f32.mrf.mxu0
    %v964 = vpop.f32.mrf.mxu0
    %965 = vdwg.mxu0
    %v966 = vmin.f32 %v961, 20.0
    %v967 = vmul.f32 %v966, 1.442695
    %v968 = vpow.pop %v967
    %v969 = vadd.f32 %v968, 1.0
    %v970 = vmul.f32 %v969, %v969
    %v971 = vsub.f32 %v970, 1.0
    %v972 = vmul.f32 %v961, %v971
    %v973 = vadd.f32 %v970, 1.0
    %v974 = vrcp.pop %v973
    %v975 = vmul.f32 %v972, %v974
    %v976 = vpack.c.bf16 %v975, %v975
    %977 = vmatprep.subr.bf16.mxu0 0
    %978 = vmatpush1.bf16.msra.mxu0 %v473
    %979 = vmatprep.subr.bf16.mxu0 0
    %980 = vmatpush1.bf16.msra.mxu0 %v472
    %981 = vmatprep.subr.bf16.mxu0 0
    %982 = vmatpush1.bf16.msra.mxu0 %v471
    %983 = vmatprep.subr.bf16.mxu0 0
    %984 = vmatpush1.bf16.msra.mxu0 %v470
    %985 = vmatprep.subr.bf16.mxu0 0
    %986 = vmatpush1.bf16.msra.mxu0 %v469
    %987 = vmatprep.subr.bf16.mxu0 0
    %988 = vmatpush1.bf16.msra.mxu0 %v468
    %989 = vmatprep.subr.bf16.mxu0 0
    %990 = vmatpush1.bf16.msra.mxu0 %v467
    %991 = vmatprep.subr.bf16.mxu0 0
    %992 = vmatpush1.bf16.msra.mxu0 %v466
    %993 = vmatprep.subr.bf16.mxu0 0
    %994 = vmatpush2.bf16.msra.mxu0 0
    %995 = vmatprep.subr.bf16.mxu0 0
    %996 = vmatpush2.bf16.msra.mxu0 0
    %997 = vmatprep.subr.bf16.mxu0 0
    %998 = vmatpush2.bf16.msra.mxu0 0
    %999 = vmatprep.subr.bf16.mxu0 0
    %1000 = vmatpush2.bf16.msra.mxu0 0
    %1001 = vmatprep.subr.bf16.mxu0 0
    %1002 = vmatpush2.bf16.msra.mxu0 0
    %1003 = vmatprep.subr.bf16.mxu0 0
    %1004 = vmatpush2.bf16.msra.mxu0 0
    %1005 = vmatprep.subr.bf16.mxu0 0
    %1006 = vmatpush2.bf16.msra.mxu0 0
    %1007 = vmatprep.subr.bf16.mxu0 0
    %1008 = vmatpush2.bf16.msra.mxu0 0
    %1009 = vmatprep.mubr.bf16.mxu0 0
    %1010 = vmatmul.mubr.bf16.gmra.mxu0 %v976
    %v1011 = vpop.f32.mrf.mxu0
    %v1012 = vadd.f32 %v432, %v1011
    %v1013 = vpop.f32.mrf.mxu0
    %v1014 = vpop.f32.mrf.mxu0
    %v1015 = vpop.f32.mrf.mxu0
    %1016 = vdwg.mxu0
    %v1017 = vmin.f32 %v1012, 20.0
    %v1018 = vmul.f32 %v1017, 1.442695
    %v1019 = vpow.pop %v1018
    %v1020 = vadd.f32 %v1019, 1.0
    %v1021 = vmul.f32 %v1020, %v1020
    %v1022 = vsub.f32 %v1021, 1.0
    %v1023 = vmul.f32 %v1012, %v1022
    %v1024 = vadd.f32 %v1021, 1.0
    %v1025 = vrcp.pop %v1024
    %v1026 = vmul.f32 %v1023, %v1025
    %v1027 = vpack.c.bf16 %v1026, %v1026
    %1028 = vmatprep.subr.bf16.mxu0 0
    %1029 = vmatpush1.bf16.msra.mxu0 %v595
    %1030 = vmatprep.subr.bf16.mxu0 0
    %1031 = vmatpush1.bf16.msra.mxu0 %v594
    %1032 = vmatprep.subr.bf16.mxu0 0
    %1033 = vmatpush1.bf16.msra.mxu0 %v593
    %1034 = vmatprep.subr.bf16.mxu0 0
    %1035 = vmatpush1.bf16.msra.mxu0 %v592
    %1036 = vmatprep.subr.bf16.mxu0 0
    %1037 = vmatpush1.bf16.msra.mxu0 %v591
    %1038 = vmatprep.subr.bf16.mxu0 0
    %1039 = vmatpush1.bf16.msra.mxu0 %v590
    %1040 = vmatprep.subr.bf16.mxu0 0
    %1041 = vmatpush1.bf16.msra.mxu0 %v589
    %1042 = vmatprep.subr.bf16.mxu0 0
    %1043 = vmatpush1.bf16.msra.mxu0 %v588
    %1044 = vmatprep.subr.bf16.mxu0 0
    %1045 = vmatpush2.bf16.msra.mxu0 0
    %1046 = vmatprep.subr.bf16.mxu0 0
    %1047 = vmatpush2.bf16.msra.mxu0 0
    %1048 = vmatprep.subr.bf16.mxu0 0
    %1049 = vmatpush2.bf16.msra.mxu0 0
    %1050 = vmatprep.subr.bf16.mxu0 0
    %1051 = vmatpush2.bf16.msra.mxu0 0
    %1052 = vmatprep.subr.bf16.mxu0 0
    %1053 = vmatpush2.bf16.msra.mxu0 0
    %1054 = vmatprep.subr.bf16.mxu0 0
    %1055 = vmatpush2.bf16.msra.mxu0 0
    %1056 = vmatprep.subr.bf16.mxu0 0
    %1057 = vmatpush2.bf16.msra.mxu0 0
    %1058 = vmatprep.subr.bf16.mxu0 0
    %1059 = vmatpush2.bf16.msra.mxu0 0
    %1060 = vmatprep.mubr.bf16.mxu0 0
    %1061 = vmatmul.mubr.bf16.gmra.mxu0 %v1027
    %v1062 = vpop.f32.mrf.mxu0
    %v1063 = vadd.f32 %v554, %v1062
    %v1064 = vpop.f32.mrf.mxu0
    %v1065 = vpop.f32.mrf.mxu0
    %v1066 = vpop.f32.mrf.mxu0
    %1067 = vdwg.mxu0
    %s1068 = sld [smem:[#allocation3 + $0x7]]
    %s1069 = sld [smem:[#allocation3 + $0x87]]
    %s1070 = sld [smem:[#allocation3 + $0x107]]
    %v1071 = vstv %s1068
    %v1072 = vmul.f32 %v1071, %v868
    %v1073 = vstv %s1069
    %v1074 = vmul.f32 %v1073, %v1063
    %v1075 = vsub.f32 %v1072, %v1074
    %s1076 = scalar_lea.vmem %s3, 56
    %v1077 = vld [vmem:[%s1076] sm:$0xff]
    %v1078 = vstv %s1070
    %v1079 = vmul.f32 %v1078, %v1077
    %v1080 = vadd.f32 %v1075, %v1079
    %v1081 = vpack.c.bf16 %v1080, %v1080
    %s1082 = scalar_lea.vmem [#allocation2], 48
    %v1083 = vld [vmem:[%s1082] sm:$0xff]
    %v1085 = vsel %vm230, %v1081, 0
    %1087 = vmatprep.subr.bf16.mxu0 0
    %1088 = vmatpush1.bf16.msra.mxu0 0
    %1089 = vmatprep.subr.bf16.mxu0 0
    %1090 = vmatpush1.bf16.msra.mxu0 0
    %1091 = vmatprep.subr.bf16.mxu0 0
    %1092 = vmatpush1.bf16.msra.mxu0 0
    %1093 = vmatprep.subr.bf16.mxu0 0
    %1094 = vmatpush1.bf16.msra.mxu0 0
    %1095 = vmatprep.subr.bf16.mxu0 0
    %1096 = vmatpush1.bf16.msra.mxu0 0
    %1097 = vmatprep.subr.bf16.mxu0 0
    %1098 = vmatpush1.bf16.msra.mxu0 0
    %1099 = vmatprep.subr.bf16.mxu0 0
    %1100 = vmatpush1.bf16.msra.mxu0 0
    %1101 = vmatprep.subr.bf16.mxu0 0
    %1102 = vmatpush1.bf16.msra.mxu0 %v236
    %1103 = vmatprep.subr.bf16.mxu0 0
    %1104 = vmatpush2.bf16.msra.mxu0 0
    %1105 = vmatprep.subr.bf16.mxu0 0
    %1106 = vmatpush2.bf16.msra.mxu0 0
    %1107 = vmatprep.subr.bf16.mxu0 0
    %1108 = vmatpush2.bf16.msra.mxu0 0
    %1109 = vmatprep.subr.bf16.mxu0 0
    %1110 = vmatpush2.bf16.msra.mxu0 0
    %1111 = vmatprep.subr.bf16.mxu0 0
    %1112 = vmatpush2.bf16.msra.mxu0 0
    %1113 = vmatprep.subr.bf16.mxu0 0
    %1114 = vmatpush2.bf16.msra.mxu0 0
    %1115 = vmatprep.subr.bf16.mxu0 0
    %1116 = vmatpush2.bf16.msra.mxu0 0
    %1117 = vmatprep.subr.bf16.mxu0 0
    %1118 = vmatpush2.bf16.msra.mxu0 0
    %1119 = vmatprep.mubr.bf16.mxu0 0
    %1120 = vmatmul.mubr.bf16.gmra.mxu0 %v1085
    %v1121 = vpop.f32.mrf.mxu0
    %v1122 = vadd.f32 %v1083, %v1121
    %v1123 = vpop.f32.mrf.mxu0
    %v1124 = vpop.f32.mrf.mxu0
    %v1125 = vpop.f32.mrf.mxu0
    %1126 = vdwg.mxu0
    %v1127 = vmin.f32 %v1122, 20.0
    %v1128 = vmul.f32 %v1127, 1.442695
    %v1129 = vpow.pop %v1128
    %v1130 = vadd.f32 %v1129, 1.0
    %v1131 = vmul.f32 %v1130, %v1130
    %v1132 = vsub.f32 %v1131, 1.0
    %v1133 = vmul.f32 %v1122, %v1132
    %v1134 = vadd.f32 %v1131, 1.0
    %v1135 = vrcp.pop %v1134
    %v1136 = vmul.f32 %v1133, %v1135
    %v1137 = vpack.c.bf16 %v1136, %v1136
    %1138 = vmatprep.subr.bf16.mxu0 0
    %1139 = vmatpush1.bf16.msra.mxu0 %v351
    %1140 = vmatprep.subr.bf16.mxu0 0
    %1141 = vmatpush1.bf16.msra.mxu0 %v350
    %1142 = vmatprep.subr.bf16.mxu0 0
    %1143 = vmatpush1.bf16.msra.mxu0 %v349
    %1144 = vmatprep.subr.bf16.mxu0 0
    %1145 = vmatpush1.bf16.msra.mxu0 %v348
    %1146 = vmatprep.subr.bf16.mxu0 0
    %1147 = vmatpush1.bf16.msra.mxu0 %v347
    %1148 = vmatprep.subr.bf16.mxu0 0
    %1149 = vmatpush1.bf16.msra.mxu0 %v346
    %1150 = vmatprep.subr.bf16.mxu0 0
    %1151 = vmatpush1.bf16.msra.mxu0 %v345
    %1152 = vmatprep.subr.bf16.mxu0 0
    %1153 = vmatpush1.bf16.msra.mxu0 %v344
    %1154 = vmatprep.subr.bf16.mxu0 0
    %1155 = vmatpush2.bf16.msra.mxu0 0
    %1156 = vmatprep.subr.bf16.mxu0 0
    %1157 = vmatpush2.bf16.msra.mxu0 0
    %1158 = vmatprep.subr.bf16.mxu0 0
    %1159 = vmatpush2.bf16.msra.mxu0 0
    %1160 = vmatprep.subr.bf16.mxu0 0
    %1161 = vmatpush2.bf16.msra.mxu0 0
    %1162 = vmatprep.subr.bf16.mxu0 0
    %1163 = vmatpush2.bf16.msra.mxu0 0
    %1164 = vmatprep.subr.bf16.mxu0 0
    %1165 = vmatpush2.bf16.msra.mxu0 0
    %1166 = vmatprep.subr.bf16.mxu0 0
    %1167 = vmatpush2.bf16.msra.mxu0 0
    %1168 = vmatprep.subr.bf16.mxu0 0
    %1169 = vmatpush2.bf16.msra.mxu0 0
    %1170 = vmatprep.mubr.bf16.mxu0 0
    %1171 = vmatmul.mubr.bf16.gmra.mxu0 %v1137
    %v1172 = vpop.f32.mrf.mxu0
    %v1173 = vadd.f32 %v310, %v1172
    %v1174 = vpop.f32.mrf.mxu0
    %v1175 = vpop.f32.mrf.mxu0
    %v1176 = vpop.f32.mrf.mxu0
    %1177 = vdwg.mxu0
    %v1178 = vmin.f32 %v1173, 20.0
    %v1179 = vmul.f32 %v1178, 1.442695
    %v1180 = vpow.pop %v1179
    %v1181 = vadd.f32 %v1180, 1.0
    %v1182 = vmul.f32 %v1181, %v1181
    %v1183 = vsub.f32 %v1182, 1.0
    %v1184 = vmul.f32 %v1173, %v1183
    %v1185 = vadd.f32 %v1182, 1.0
    %v1186 = vrcp.pop %v1185
    %v1187 = vmul.f32 %v1184, %v1186
    %v1188 = vpack.c.bf16 %v1187, %v1187
    %1189 = vmatprep.subr.bf16.mxu0 0
    %1190 = vmatpush1.bf16.msra.mxu0 %v473
    %1191 = vmatprep.subr.bf16.mxu0 0
    %1192 = vmatpush1.bf16.msra.mxu0 %v472
    %1193 = vmatprep.subr.bf16.mxu0 0
    %1194 = vmatpush1.bf16.msra.mxu0 %v471
    %1195 = vmatprep.subr.bf16.mxu0 0
    %1196 = vmatpush1.bf16.msra.mxu0 %v470
    %1197 = vmatprep.subr.bf16.mxu0 0
    %1198 = vmatpush1.bf16.msra.mxu0 %v469
    %1199 = vmatprep.subr.bf16.mxu0 0
    %1200 = vmatpush1.bf16.msra.mxu0 %v468
    %1201 = vmatprep.subr.bf16.mxu0 0
    %1202 = vmatpush1.bf16.msra.mxu0 %v467
    %1203 = vmatprep.subr.bf16.mxu0 0
    %1204 = vmatpush1.bf16.msra.mxu0 %v466
    %1205 = vmatprep.subr.bf16.mxu0 0
    %1206 = vmatpush2.bf16.msra.mxu0 0
    %1207 = vmatprep.subr.bf16.mxu0 0
    %1208 = vmatpush2.bf16.msra.mxu0 0
    %1209 = vmatprep.subr.bf16.mxu0 0
    %1210 = vmatpush2.bf16.msra.mxu0 0
    %1211 = vmatprep.subr.bf16.mxu0 0
    %1212 = vmatpush2.bf16.msra.mxu0 0
    %1213 = vmatprep.subr.bf16.mxu0 0
    %1214 = vmatpush2.bf16.msra.mxu0 0
    %1215 = vmatprep.subr.bf16.mxu0 0
    %1216 = vmatpush2.bf16.msra.mxu0 0
    %1217 = vmatprep.subr.bf16.mxu0 0
    %1218 = vmatpush2.bf16.msra.mxu0 0
    %1219 = vmatprep.subr.bf16.mxu0 0
    %1220 = vmatpush2.bf16.msra.mxu0 0
    %1221 = vmatprep.mubr.bf16.mxu0 0
    %1222 = vmatmul.mubr.bf16.gmra.mxu0 %v1188
    %v1223 = vpop.f32.mrf.mxu0
    %v1224 = vadd.f32 %v432, %v1223
    %v1225 = vpop.f32.mrf.mxu0
    %v1226 = vpop.f32.mrf.mxu0
    %v1227 = vpop.f32.mrf.mxu0
    %1228 = vdwg.mxu0
    %v1229 = vmin.f32 %v1224, 20.0
    %v1230 = vmul.f32 %v1229, 1.442695
    %v1231 = vpow.pop %v1230
    %v1232 = vadd.f32 %v1231, 1.0
    %v1233 = vmul.f32 %v1232, %v1232
    %v1234 = vsub.f32 %v1233, 1.0
    %v1235 = vmul.f32 %v1224, %v1234
    %v1236 = vadd.f32 %v1233, 1.0
    %v1237 = vrcp.pop %v1236
    %v1238 = vmul.f32 %v1235, %v1237
    %v1239 = vpack.c.bf16 %v1238, %v1238
    %1240 = vmatprep.subr.bf16.mxu0 0
    %1241 = vmatpush1.bf16.msra.mxu0 %v595
    %1242 = vmatprep.subr.bf16.mxu0 0
    %1243 = vmatpush1.bf16.msra.mxu0 %v594
    %1244 = vmatprep.subr.bf16.mxu0 0
    %1245 = vmatpush1.bf16.msra.mxu0 %v593
    %1246 = vmatprep.subr.bf16.mxu0 0
    %1247 = vmatpush1.bf16.msra.mxu0 %v592
    %1248 = vmatprep.subr.bf16.mxu0 0
    %1249 = vmatpush1.bf16.msra.mxu0 %v591
    %1250 = vmatprep.subr.bf16.mxu0 0
    %1251 = vmatpush1.bf16.msra.mxu0 %v590
    %1252 = vmatprep.subr.bf16.mxu0 0
    %1253 = vmatpush1.bf16.msra.mxu0 %v589
    %1254 = vmatprep.subr.bf16.mxu0 0
    %1255 = vmatpush1.bf16.msra.mxu0 %v588
    %1256 = vmatprep.subr.bf16.mxu0 0
    %1257 = vmatpush2.bf16.msra.mxu0 0
    %1258 = vmatprep.subr.bf16.mxu0 0
    %1259 = vmatpush2.bf16.msra.mxu0 0
    %1260 = vmatprep.subr.bf16.mxu0 0
    %1261 = vmatpush2.bf16.msra.mxu0 0
    %1262 = vmatprep.subr.bf16.mxu0 0
    %1263 = vmatpush2.bf16.msra.mxu0 0
    %1264 = vmatprep.subr.bf16.mxu0 0
    %1265 = vmatpush2.bf16.msra.mxu0 0
    %1266 = vmatprep.subr.bf16.mxu0 0
    %1267 = vmatpush2.bf16.msra.mxu0 0
    %1268 = vmatprep.subr.bf16.mxu0 0
    %1269 = vmatpush2.bf16.msra.mxu0 0
    %1270 = vmatprep.subr.bf16.mxu0 0
    %1271 = vmatpush2.bf16.msra.mxu0 0
    %1272 = vmatprep.mubr.bf16.mxu0 0
    %1273 = vmatmul.mubr.bf16.gmra.mxu0 %v1239
    %v1274 = vpop.f32.mrf.mxu0
    %v1275 = vadd.f32 %v554, %v1274
    %v1276 = vpop.f32.mrf.mxu0
    %v1277 = vpop.f32.mrf.mxu0
    %v1278 = vpop.f32.mrf.mxu0
    %1279 = vdwg.mxu0
    %s1280 = sld [smem:[#allocation3 + $0x6]]
    %s1281 = sld [smem:[#allocation3 + $0x86]]
    %s1282 = sld [smem:[#allocation3 + $0x106]]
    %v1283 = vstv %s1280
    %v1284 = vmul.f32 %v1283, %v1080
    %v1285 = vstv %s1281
    %v1286 = vmul.f32 %v1285, %v1275
    %v1287 = vsub.f32 %v1284, %v1286
    %s1288 = scalar_lea.vmem %s3, 48
    %v1289 = vld [vmem:[%s1288] sm:$0xff]
    %v1290 = vstv %s1282
    %v1291 = vmul.f32 %v1290, %v1289
    %v1292 = vadd.f32 %v1287, %v1291
    %v1293 = vpack.c.bf16 %v1292, %v1292
    %s1294 = scalar_lea.vmem [#allocation2], 40
    %v1295 = vld [vmem:[%s1294] sm:$0xff]
    %v1297 = vsel %vm230, %v1293, 0
    %1299 = vmatprep.subr.bf16.mxu0 0
    %1300 = vmatpush1.bf16.msra.mxu0 0
    %1301 = vmatprep.subr.bf16.mxu0 0
    %1302 = vmatpush1.bf16.msra.mxu0 0
    %1303 = vmatprep.subr.bf16.mxu0 0
    %1304 = vmatpush1.bf16.msra.mxu0 0
    %1305 = vmatprep.subr.bf16.mxu0 0
    %1306 = vmatpush1.bf16.msra.mxu0 0
    %1307 = vmatprep.subr.bf16.mxu0 0
    %1308 = vmatpush1.bf16.msra.mxu0 0
    %1309 = vmatprep.subr.bf16.mxu0 0
    %1310 = vmatpush1.bf16.msra.mxu0 0
    %1311 = vmatprep.subr.bf16.mxu0 0
    %1312 = vmatpush1.bf16.msra.mxu0 0
    %1313 = vmatprep.subr.bf16.mxu0 0
    %1314 = vmatpush1.bf16.msra.mxu0 %v236
    %1315 = vmatprep.subr.bf16.mxu0 0
    %1316 = vmatpush2.bf16.msra.mxu0 0
    %1317 = vmatprep.subr.bf16.mxu0 0
    %1318 = vmatpush2.bf16.msra.mxu0 0
    %1319 = vmatprep.subr.bf16.mxu0 0
    %1320 = vmatpush2.bf16.msra.mxu0 0
    %1321 = vmatprep.subr.bf16.mxu0 0
    %1322 = vmatpush2.bf16.msra.mxu0 0
    %1323 = vmatprep.subr.bf16.mxu0 0
    %1324 = vmatpush2.bf16.msra.mxu0 0
    %1325 = vmatprep.subr.bf16.mxu0 0
    %1326 = vmatpush2.bf16.msra.mxu0 0
    %1327 = vmatprep.subr.bf16.mxu0 0
    %1328 = vmatpush2.bf16.msra.mxu0 0
    %1329 = vmatprep.subr.bf16.mxu0 0
    %1330 = vmatpush2.bf16.msra.mxu0 0
    %1331 = vmatprep.mubr.bf16.mxu0 0
    %1332 = vmatmul.mubr.bf16.gmra.mxu0 %v1297
    %v1333 = vpop.f32.mrf.mxu0
    %v1334 = vadd.f32 %v1295, %v1333
    %v1335 = vpop.f32.mrf.mxu0
    %v1336 = vpop.f32.mrf.mxu0
    %v1337 = vpop.f32.mrf.mxu0
    %1338 = vdwg.mxu0
    %v1339 = vmin.f32 %v1334, 20.0
    %v1340 = vmul.f32 %v1339, 1.442695
    %v1341 = vpow.pop %v1340
    %v1342 = vadd.f32 %v1341, 1.0
    %v1343 = vmul.f32 %v1342, %v1342
    %v1344 = vsub.f32 %v1343, 1.0
    %v1345 = vmul.f32 %v1334, %v1344
    %v1346 = vadd.f32 %v1343, 1.0
    %v1347 = vrcp.pop %v1346
    %v1348 = vmul.f32 %v1345, %v1347
    %v1349 = vpack.c.bf16 %v1348, %v1348
    %1350 = vmatprep.subr.bf16.mxu0 0
    %1351 = vmatpush1.bf16.msra.mxu0 %v351
    %1352 = vmatprep.subr.bf16.mxu0 0
    %1353 = vmatpush1.bf16.msra.mxu0 %v350
    %1354 = vmatprep.subr.bf16.mxu0 0
    %1355 = vmatpush1.bf16.msra.mxu0 %v349
    %1356 = vmatprep.subr.bf16.mxu0 0
    %1357 = vmatpush1.bf16.msra.mxu0 %v348
    %1358 = vmatprep.subr.bf16.mxu0 0
    %1359 = vmatpush1.bf16.msra.mxu0 %v347
    %1360 = vmatprep.subr.bf16.mxu0 0
    %1361 = vmatpush1.bf16.msra.mxu0 %v346
    %1362 = vmatprep.subr.bf16.mxu0 0
    %1363 = vmatpush1.bf16.msra.mxu0 %v345
    %1364 = vmatprep.subr.bf16.mxu0 0
    %1365 = vmatpush1.bf16.msra.mxu0 %v344
    %1366 = vmatprep.subr.bf16.mxu0 0
    %1367 = vmatpush2.bf16.msra.mxu0 0
    %1368 = vmatprep.subr.bf16.mxu0 0
    %1369 = vmatpush2.bf16.msra.mxu0 0
    %1370 = vmatprep.subr.bf16.mxu0 0
    %1371 = vmatpush2.bf16.msra.mxu0 0
    %1372 = vmatprep.subr.bf16.mxu0 0
    %1373 = vmatpush2.bf16.msra.mxu0 0
    %1374 = vmatprep.subr.bf16.mxu0 0
    %1375 = vmatpush2.bf16.msra.mxu0 0
    %1376 = vmatprep.subr.bf16.mxu0 0
    %1377 = vmatpush2.bf16.msra.mxu0 0
    %1378 = vmatprep.subr.bf16.mxu0 0
    %1379 = vmatpush2.bf16.msra.mxu0 0
    %1380 = vmatprep.subr.bf16.mxu0 0
    %1381 = vmatpush2.bf16.msra.mxu0 0
    %1382 = vmatprep.mubr.bf16.mxu0 0
    %1383 = vmatmul.mubr.bf16.gmra.mxu0 %v1349
    %v1384 = vpop.f32.mrf.mxu0
    %v1385 = vadd.f32 %v310, %v1384
    %v1386 = vpop.f32.mrf.mxu0
    %v1387 = vpop.f32.mrf.mxu0
    %v1388 = vpop.f32.mrf.mxu0
    %1389 = vdwg.mxu0
    %v1390 = vmin.f32 %v1385, 20.0
    %v1391 = vmul.f32 %v1390, 1.442695
    %v1392 = vpow.pop %v1391
    %v1393 = vadd.f32 %v1392, 1.0
    %v1394 = vmul.f32 %v1393, %v1393
    %v1395 = vsub.f32 %v1394, 1.0
    %v1396 = vmul.f32 %v1385, %v1395
    %v1397 = vadd.f32 %v1394, 1.0
    %v1398 = vrcp.pop %v1397
    %v1399 = vmul.f32 %v1396, %v1398
    %v1400 = vpack.c.bf16 %v1399, %v1399
    %1401 = vmatprep.subr.bf16.mxu0 0
    %1402 = vmatpush1.bf16.msra.mxu0 %v473
    %1403 = vmatprep.subr.bf16.mxu0 0
    %1404 = vmatpush1.bf16.msra.mxu0 %v472
    %1405 = vmatprep.subr.bf16.mxu0 0
    %1406 = vmatpush1.bf16.msra.mxu0 %v471
    %1407 = vmatprep.subr.bf16.mxu0 0
    %1408 = vmatpush1.bf16.msra.mxu0 %v470
    %1409 = vmatprep.subr.bf16.mxu0 0
    %1410 = vmatpush1.bf16.msra.mxu0 %v469
    %1411 = vmatprep.subr.bf16.mxu0 0
    %1412 = vmatpush1.bf16.msra.mxu0 %v468
    %1413 = vmatprep.subr.bf16.mxu0 0
    %1414 = vmatpush1.bf16.msra.mxu0 %v467
    %1415 = vmatprep.subr.bf16.mxu0 0
    %1416 = vmatpush1.bf16.msra.mxu0 %v466
    %1417 = vmatprep.subr.bf16.mxu0 0
    %1418 = vmatpush2.bf16.msra.mxu0 0
    %1419 = vmatprep.subr.bf16.mxu0 0
    %1420 = vmatpush2.bf16.msra.mxu0 0
    %1421 = vmatprep.subr.bf16.mxu0 0
    %1422 = vmatpush2.bf16.msra.mxu0 0
    %1423 = vmatprep.subr.bf16.mxu0 0
    %1424 = vmatpush2.bf16.msra.mxu0 0
    %1425 = vmatprep.subr.bf16.mxu0 0
    %1426 = vmatpush2.bf16.msra.mxu0 0
    %1427 = vmatprep.subr.bf16.mxu0 0
    %1428 = vmatpush2.bf16.msra.mxu0 0
    %1429 = vmatprep.subr.bf16.mxu0 0
    %1430 = vmatpush2.bf16.msra.mxu0 0
    %1431 = vmatprep.subr.bf16.mxu0 0
    %1432 = vmatpush2.bf16.msra.mxu0 0
    %1433 = vmatprep.mubr.bf16.mxu0 0
    %1434 = vmatmul.mubr.bf16.gmra.mxu0 %v1400
    %v1435 = vpop.f32.mrf.mxu0
    %v1436 = vadd.f32 %v432, %v1435
    %v1437 = vpop.f32.mrf.mxu0
    %v1438 = vpop.f32.mrf.mxu0
    %v1439 = vpop.f32.mrf.mxu0
    %1440 = vdwg.mxu0
    %v1441 = vmin.f32 %v1436, 20.0
    %v1442 = vmul.f32 %v1441, 1.442695
    %v1443 = vpow.pop %v1442
    %v1444 = vadd.f32 %v1443, 1.0
    %v1445 = vmul.f32 %v1444, %v1444
    %v1446 = vsub.f32 %v1445, 1.0
    %v1447 = vmul.f32 %v1436, %v1446
    %v1448 = vadd.f32 %v1445, 1.0
    %v1449 = vrcp.pop %v1448
    %v1450 = vmul.f32 %v1447, %v1449
    %v1451 = vpack.c.bf16 %v1450, %v1450
    %1452 = vmatprep.subr.bf16.mxu0 0
    %1453 = vmatpush1.bf16.msra.mxu0 %v595
    %1454 = vmatprep.subr.bf16.mxu0 0
    %1455 = vmatpush1.bf16.msra.mxu0 %v594
    %1456 = vmatprep.subr.bf16.mxu0 0
    %1457 = vmatpush1.bf16.msra.mxu0 %v593
    %1458 = vmatprep.subr.bf16.mxu0 0
    %1459 = vmatpush1.bf16.msra.mxu0 %v592
    %1460 = vmatprep.subr.bf16.mxu0 0
    %1461 = vmatpush1.bf16.msra.mxu0 %v591
    %1462 = vmatprep.subr.bf16.mxu0 0
    %1463 = vmatpush1.bf16.msra.mxu0 %v590
    %1464 = vmatprep.subr.bf16.mxu0 0
    %1465 = vmatpush1.bf16.msra.mxu0 %v589
    %1466 = vmatprep.subr.bf16.mxu0 0
    %1467 = vmatpush1.bf16.msra.mxu0 %v588
    %1468 = vmatprep.subr.bf16.mxu0 0
    %1469 = vmatpush2.bf16.msra.mxu0 0
    %1470 = vmatprep.subr.bf16.mxu0 0
    %1471 = vmatpush2.bf16.msra.mxu0 0
    %1472 = vmatprep.subr.bf16.mxu0 0
    %1473 = vmatpush2.bf16.msra.mxu0 0
    %1474 = vmatprep.subr.bf16.mxu0 0
    %1475 = vmatpush2.bf16.msra.mxu0 0
    %1476 = vmatprep.subr.bf16.mxu0 0
    %1477 = vmatpush2.bf16.msra.mxu0 0
    %1478 = vmatprep.subr.bf16.mxu0 0
    %1479 = vmatpush2.bf16.msra.mxu0 0
    %1480 = vmatprep.subr.bf16.mxu0 0
    %1481 = vmatpush2.bf16.msra.mxu0 0
    %1482 = vmatprep.subr.bf16.mxu0 0
    %1483 = vmatpush2.bf16.msra.mxu0 0
    %1484 = vmatprep.mubr.bf16.mxu0 0
    %1485 = vmatmul.mubr.bf16.gmra.mxu0 %v1451
    %v1486 = vpop.f32.mrf.mxu0
    %v1487 = vadd.f32 %v554, %v1486
    %v1488 = vpop.f32.mrf.mxu0
    %v1489 = vpop.f32.mrf.mxu0
    %v1490 = vpop.f32.mrf.mxu0
    %1491 = vdwg.mxu0
    %s1492 = sld [smem:[#allocation3 + $0x5]]
    %s1493 = sld [smem:[#allocation3 + $0x85]]
    %s1494 = sld [smem:[#allocation3 + $0x105]]
    %v1495 = vstv %s1492
    %v1496 = vmul.f32 %v1495, %v1292
    %v1497 = vstv %s1493
    %v1498 = vmul.f32 %v1497, %v1487
    %v1499 = vsub.f32 %v1496, %v1498
    %s1500 = scalar_lea.vmem %s3, 40
    %v1501 = vld [vmem:[%s1500] sm:$0xff]
    %v1502 = vstv %s1494
    %v1503 = vmul.f32 %v1502, %v1501
    %v1504 = vadd.f32 %v1499, %v1503
    %v1505 = vpack.c.bf16 %v1504, %v1504
    %s1506 = scalar_lea.vmem [#allocation2], 32
    %v1507 = vld [vmem:[%s1506] sm:$0xff]
    %v1509 = vsel %vm230, %v1505, 0
    %1511 = vmatprep.subr.bf16.mxu0 0
    %1512 = vmatpush1.bf16.msra.mxu0 0
    %1513 = vmatprep.subr.bf16.mxu0 0
    %1514 = vmatpush1.bf16.msra.mxu0 0
    %1515 = vmatprep.subr.bf16.mxu0 0
    %1516 = vmatpush1.bf16.msra.mxu0 0
    %1517 = vmatprep.subr.bf16.mxu0 0
    %1518 = vmatpush1.bf16.msra.mxu0 0
    %1519 = vmatprep.subr.bf16.mxu0 0
    %1520 = vmatpush1.bf16.msra.mxu0 0
    %1521 = vmatprep.subr.bf16.mxu0 0
    %1522 = vmatpush1.bf16.msra.mxu0 0
    %1523 = vmatprep.subr.bf16.mxu0 0
    %1524 = vmatpush1.bf16.msra.mxu0 0
    %1525 = vmatprep.subr.bf16.mxu0 0
    %1526 = vmatpush1.bf16.msra.mxu0 %v236
    %1527 = vmatprep.subr.bf16.mxu0 0
    %1528 = vmatpush2.bf16.msra.mxu0 0
    %1529 = vmatprep.subr.bf16.mxu0 0
    %1530 = vmatpush2.bf16.msra.mxu0 0
    %1531 = vmatprep.subr.bf16.mxu0 0
    %1532 = vmatpush2.bf16.msra.mxu0 0
    %1533 = vmatprep.subr.bf16.mxu0 0
    %1534 = vmatpush2.bf16.msra.mxu0 0
    %1535 = vmatprep.subr.bf16.mxu0 0
    %1536 = vmatpush2.bf16.msra.mxu0 0
    %1537 = vmatprep.subr.bf16.mxu0 0
    %1538 = vmatpush2.bf16.msra.mxu0 0
    %1539 = vmatprep.subr.bf16.mxu0 0
    %1540 = vmatpush2.bf16.msra.mxu0 0
    %1541 = vmatprep.subr.bf16.mxu0 0
    %1542 = vmatpush2.bf16.msra.mxu0 0
    %1543 = vmatprep.mubr.bf16.mxu0 0
    %1544 = vmatmul.mubr.bf16.gmra.mxu0 %v1509
    %v1545 = vpop.f32.mrf.mxu0
    %v1546 = vadd.f32 %v1507, %v1545
    %v1547 = vpop.f32.mrf.mxu0
    %v1548 = vpop.f32.mrf.mxu0
    %v1549 = vpop.f32.mrf.mxu0
    %1550 = vdwg.mxu0
    %v1551 = vmin.f32 %v1546, 20.0
    %v1552 = vmul.f32 %v1551, 1.442695
    %v1553 = vpow.pop %v1552
    %v1554 = vadd.f32 %v1553, 1.0
    %v1555 = vmul.f32 %v1554, %v1554
    %v1556 = vsub.f32 %v1555, 1.0
    %v1557 = vmul.f32 %v1546, %v1556
    %v1558 = vadd.f32 %v1555, 1.0
    %v1559 = vrcp.pop %v1558
    %v1560 = vmul.f32 %v1557, %v1559
    %v1561 = vpack.c.bf16 %v1560, %v1560
    %1562 = vmatprep.subr.bf16.mxu0 0
    %1563 = vmatpush1.bf16.msra.mxu0 %v351
    %1564 = vmatprep.subr.bf16.mxu0 0
    %1565 = vmatpush1.bf16.msra.mxu0 %v350
    %1566 = vmatprep.subr.bf16.mxu0 0
    %1567 = vmatpush1.bf16.msra.mxu0 %v349
    %1568 = vmatprep.subr.bf16.mxu0 0
    %1569 = vmatpush1.bf16.msra.mxu0 %v348
    %1570 = vmatprep.subr.bf16.mxu0 0
    %1571 = vmatpush1.bf16.msra.mxu0 %v347
    %1572 = vmatprep.subr.bf16.mxu0 0
    %1573 = vmatpush1.bf16.msra.mxu0 %v346
    %1574 = vmatprep.subr.bf16.mxu0 0
    %1575 = vmatpush1.bf16.msra.mxu0 %v345
    %1576 = vmatprep.subr.bf16.mxu0 0
    %1577 = vmatpush1.bf16.msra.mxu0 %v344
    %1578 = vmatprep.subr.bf16.mxu0 0
    %1579 = vmatpush2.bf16.msra.mxu0 0
    %1580 = vmatprep.subr.bf16.mxu0 0
    %1581 = vmatpush2.bf16.msra.mxu0 0
    %1582 = vmatprep.subr.bf16.mxu0 0
    %1583 = vmatpush2.bf16.msra.mxu0 0
    %1584 = vmatprep.subr.bf16.mxu0 0
    %1585 = vmatpush2.bf16.msra.mxu0 0
    %1586 = vmatprep.subr.bf16.mxu0 0
    %1587 = vmatpush2.bf16.msra.mxu0 0
    %1588 = vmatprep.subr.bf16.mxu0 0
    %1589 = vmatpush2.bf16.msra.mxu0 0
    %1590 = vmatprep.subr.bf16.mxu0 0
    %1591 = vmatpush2.bf16.msra.mxu0 0
    %1592 = vmatprep.subr.bf16.mxu0 0
    %1593 = vmatpush2.bf16.msra.mxu0 0
    %1594 = vmatprep.mubr.bf16.mxu0 0
    %1595 = vmatmul.mubr.bf16.gmra.mxu0 %v1561
    %v1596 = vpop.f32.mrf.mxu0
    %v1597 = vadd.f32 %v310, %v1596
    %v1598 = vpop.f32.mrf.mxu0
    %v1599 = vpop.f32.mrf.mxu0
    %v1600 = vpop.f32.mrf.mxu0
    %1601 = vdwg.mxu0
    %v1602 = vmin.f32 %v1597, 20.0
    %v1603 = vmul.f32 %v1602, 1.442695
    %v1604 = vpow.pop %v1603
    %v1605 = vadd.f32 %v1604, 1.0
    %v1606 = vmul.f32 %v1605, %v1605
    %v1607 = vsub.f32 %v1606, 1.0
    %v1608 = vmul.f32 %v1597, %v1607
    %v1609 = vadd.f32 %v1606, 1.0
    %v1610 = vrcp.pop %v1609
    %v1611 = vmul.f32 %v1608, %v1610
    %v1612 = vpack.c.bf16 %v1611, %v1611
    %1613 = vmatprep.subr.bf16.mxu0 0
    %1614 = vmatpush1.bf16.msra.mxu0 %v473
    %1615 = vmatprep.subr.bf16.mxu0 0
    %1616 = vmatpush1.bf16.msra.mxu0 %v472
    %1617 = vmatprep.subr.bf16.mxu0 0
    %1618 = vmatpush1.bf16.msra.mxu0 %v471
    %1619 = vmatprep.subr.bf16.mxu0 0
    %1620 = vmatpush1.bf16.msra.mxu0 %v470
    %1621 = vmatprep.subr.bf16.mxu0 0
    %1622 = vmatpush1.bf16.msra.mxu0 %v469
    %1623 = vmatprep.subr.bf16.mxu0 0
    %1624 = vmatpush1.bf16.msra.mxu0 %v468
    %1625 = vmatprep.subr.bf16.mxu0 0
    %1626 = vmatpush1.bf16.msra.mxu0 %v467
    %1627 = vmatprep.subr.bf16.mxu0 0
    %1628 = vmatpush1.bf16.msra.mxu0 %v466
    %1629 = vmatprep.subr.bf16.mxu0 0
    %1630 = vmatpush2.bf16.msra.mxu0 0
    %1631 = vmatprep.subr.bf16.mxu0 0
    %1632 = vmatpush2.bf16.msra.mxu0 0
    %1633 = vmatprep.subr.bf16.mxu0 0
    %1634 = vmatpush2.bf16.msra.mxu0 0
    %1635 = vmatprep.subr.bf16.mxu0 0
    %1636 = vmatpush2.bf16.msra.mxu0 0
    %1637 = vmatprep.subr.bf16.mxu0 0
    %1638 = vmatpush2.bf16.msra.mxu0 0
    %1639 = vmatprep.subr.bf16.mxu0 0
    %1640 = vmatpush2.bf16.msra.mxu0 0
    %1641 = vmatprep.subr.bf16.mxu0 0
    %1642 = vmatpush2.bf16.msra.mxu0 0
    %1643 = vmatprep.subr.bf16.mxu0 0
    %1644 = vmatpush2.bf16.msra.mxu0 0
    %1645 = vmatprep.mubr.bf16.mxu0 0
    %1646 = vmatmul.mubr.bf16.gmra.mxu0 %v1612
    %v1647 = vpop.f32.mrf.mxu0
    %v1648 = vadd.f32 %v432, %v1647
    %v1649 = vpop.f32.mrf.mxu0
    %v1650 = vpop.f32.mrf.mxu0
    %v1651 = vpop.f32.mrf.mxu0
    %1652 = vdwg.mxu0
    %v1653 = vmin.f32 %v1648, 20.0
    %v1654 = vmul.f32 %v1653, 1.442695
    %v1655 = vpow.pop %v1654
    %v1656 = vadd.f32 %v1655, 1.0
    %v1657 = vmul.f32 %v1656, %v1656
    %v1658 = vsub.f32 %v1657, 1.0
    %v1659 = vmul.f32 %v1648, %v1658
    %v1660 = vadd.f32 %v1657, 1.0
    %v1661 = vrcp.pop %v1660
    %v1662 = vmul.f32 %v1659, %v1661
    %v1663 = vpack.c.bf16 %v1662, %v1662
    %1664 = vmatprep.subr.bf16.mxu0 0
    %1665 = vmatpush1.bf16.msra.mxu0 %v595
    %1666 = vmatprep.subr.bf16.mxu0 0
    %1667 = vmatpush1.bf16.msra.mxu0 %v594
    %1668 = vmatprep.subr.bf16.mxu0 0
    %1669 = vmatpush1.bf16.msra.mxu0 %v593
    %1670 = vmatprep.subr.bf16.mxu0 0
    %1671 = vmatpush1.bf16.msra.mxu0 %v592
    %1672 = vmatprep.subr.bf16.mxu0 0
    %1673 = vmatpush1.bf16.msra.mxu0 %v591
    %1674 = vmatprep.subr.bf16.mxu0 0
    %1675 = vmatpush1.bf16.msra.mxu0 %v590
    %1676 = vmatprep.subr.bf16.mxu0 0
    %1677 = vmatpush1.bf16.msra.mxu0 %v589
    %1678 = vmatprep.subr.bf16.mxu0 0
    %1679 = vmatpush1.bf16.msra.mxu0 %v588
    %1680 = vmatprep.subr.bf16.mxu0 0
    %1681 = vmatpush2.bf16.msra.mxu0 0
    %1682 = vmatprep.subr.bf16.mxu0 0
    %1683 = vmatpush2.bf16.msra.mxu0 0
    %1684 = vmatprep.subr.bf16.mxu0 0
    %1685 = vmatpush2.bf16.msra.mxu0 0
    %1686 = vmatprep.subr.bf16.mxu0 0
    %1687 = vmatpush2.bf16.msra.mxu0 0
    %1688 = vmatprep.subr.bf16.mxu0 0
    %1689 = vmatpush2.bf16.msra.mxu0 0
    %1690 = vmatprep.subr.bf16.mxu0 0
    %1691 = vmatpush2.bf16.msra.mxu0 0
    %1692 = vmatprep.subr.bf16.mxu0 0
    %1693 = vmatpush2.bf16.msra.mxu0 0
    %1694 = vmatprep.subr.bf16.mxu0 0
    %1695 = vmatpush2.bf16.msra.mxu0 0
    %1696 = vmatprep.mubr.bf16.mxu0 0
    %1697 = vmatmul.mubr.bf16.gmra.mxu0 %v1663
    %v1698 = vpop.f32.mrf.mxu0
    %v1699 = vadd.f32 %v554, %v1698
    %v1700 = vpop.f32.mrf.mxu0
    %v1701 = vpop.f32.mrf.mxu0
    %v1702 = vpop.f32.mrf.mxu0
    %1703 = vdwg.mxu0
    %s1704 = sld [smem:[#allocation3 + $0x4]]
    %s1705 = sld [smem:[#allocation3 + $0x84]]
    %s1706 = sld [smem:[#allocation3 + $0x104]]
    %v1707 = vstv %s1704
    %v1708 = vmul.f32 %v1707, %v1504
    %v1709 = vstv %s1705
    %v1710 = vmul.f32 %v1709, %v1699
    %v1711 = vsub.f32 %v1708, %v1710
    %s1712 = scalar_lea.vmem %s3, 32
    %v1713 = vld [vmem:[%s1712] sm:$0xff]
    %v1714 = vstv %s1706
    %v1715 = vmul.f32 %v1714, %v1713
    %v1716 = vadd.f32 %v1711, %v1715
    %v1717 = vpack.c.bf16 %v1716, %v1716
    %s1718 = scalar_lea.vmem [#allocation2], 24
    %v1719 = vld [vmem:[%s1718] sm:$0xff]
    %v1721 = vsel %vm230, %v1717, 0
    %1723 = vmatprep.subr.bf16.mxu0 0
    %1724 = vmatpush1.bf16.msra.mxu0 0
    %1725 = vmatprep.subr.bf16.mxu0 0
    %1726 = vmatpush1.bf16.msra.mxu0 0
    %1727 = vmatprep.subr.bf16.mxu0 0
    %1728 = vmatpush1.bf16.msra.mxu0 0
    %1729 = vmatprep.subr.bf16.mxu0 0
    %1730 = vmatpush1.bf16.msra.mxu0 0
    %1731 = vmatprep.subr.bf16.mxu0 0
    %1732 = vmatpush1.bf16.msra.mxu0 0
    %1733 = vmatprep.subr.bf16.mxu0 0
    %1734 = vmatpush1.bf16.msra.mxu0 0
    %1735 = vmatprep.subr.bf16.mxu0 0
    %1736 = vmatpush1.bf16.msra.mxu0 0
    %1737 = vmatprep.subr.bf16.mxu0 0
    %1738 = vmatpush1.bf16.msra.mxu0 %v236
    %1739 = vmatprep.subr.bf16.mxu0 0
    %1740 = vmatpush2.bf16.msra.mxu0 0
    %1741 = vmatprep.subr.bf16.mxu0 0
    %1742 = vmatpush2.bf16.msra.mxu0 0
    %1743 = vmatprep.subr.bf16.mxu0 0
    %1744 = vmatpush2.bf16.msra.mxu0 0
    %1745 = vmatprep.subr.bf16.mxu0 0
    %1746 = vmatpush2.bf16.msra.mxu0 0
    %1747 = vmatprep.subr.bf16.mxu0 0
    %1748 = vmatpush2.bf16.msra.mxu0 0
    %1749 = vmatprep.subr.bf16.mxu0 0
    %1750 = vmatpush2.bf16.msra.mxu0 0
    %1751 = vmatprep.subr.bf16.mxu0 0
    %1752 = vmatpush2.bf16.msra.mxu0 0
    %1753 = vmatprep.subr.bf16.mxu0 0
    %1754 = vmatpush2.bf16.msra.mxu0 0
    %1755 = vmatprep.mubr.bf16.mxu0 0
    %1756 = vmatmul.mubr.bf16.gmra.mxu0 %v1721
    %v1757 = vpop.f32.mrf.mxu0
    %v1758 = vadd.f32 %v1719, %v1757
    %v1759 = vpop.f32.mrf.mxu0
    %v1760 = vpop.f32.mrf.mxu0
    %v1761 = vpop.f32.mrf.mxu0
    %1762 = vdwg.mxu0
    %v1763 = vmin.f32 %v1758, 20.0
    %v1764 = vmul.f32 %v1763, 1.442695
    %v1765 = vpow.pop %v1764
    %v1766 = vadd.f32 %v1765, 1.0
    %v1767 = vmul.f32 %v1766, %v1766
    %v1768 = vsub.f32 %v1767, 1.0
    %v1769 = vmul.f32 %v1758, %v1768
    %v1770 = vadd.f32 %v1767, 1.0
    %v1771 = vrcp.pop %v1770
    %v1772 = vmul.f32 %v1769, %v1771
    %v1773 = vpack.c.bf16 %v1772, %v1772
    %1774 = vmatprep.subr.bf16.mxu0 0
    %1775 = vmatpush1.bf16.msra.mxu0 %v351
    %1776 = vmatprep.subr.bf16.mxu0 0
    %1777 = vmatpush1.bf16.msra.mxu0 %v350
    %1778 = vmatprep.subr.bf16.mxu0 0
    %1779 = vmatpush1.bf16.msra.mxu0 %v349
    %1780 = vmatprep.subr.bf16.mxu0 0
    %1781 = vmatpush1.bf16.msra.mxu0 %v348
    %1782 = vmatprep.subr.bf16.mxu0 0
    %1783 = vmatpush1.bf16.msra.mxu0 %v347
    %1784 = vmatprep.subr.bf16.mxu0 0
    %1785 = vmatpush1.bf16.msra.mxu0 %v346
    %1786 = vmatprep.subr.bf16.mxu0 0
    %1787 = vmatpush1.bf16.msra.mxu0 %v345
    %1788 = vmatprep.subr.bf16.mxu0 0
    %1789 = vmatpush1.bf16.msra.mxu0 %v344
    %1790 = vmatprep.subr.bf16.mxu0 0
    %1791 = vmatpush2.bf16.msra.mxu0 0
    %1792 = vmatprep.subr.bf16.mxu0 0
    %1793 = vmatpush2.bf16.msra.mxu0 0
    %1794 = vmatprep.subr.bf16.mxu0 0
    %1795 = vmatpush2.bf16.msra.mxu0 0
    %1796 = vmatprep.subr.bf16.mxu0 0
    %1797 = vmatpush2.bf16.msra.mxu0 0
    %1798 = vmatprep.subr.bf16.mxu0 0
    %1799 = vmatpush2.bf16.msra.mxu0 0
    %1800 = vmatprep.subr.bf16.mxu0 0
    %1801 = vmatpush2.bf16.msra.mxu0 0
    %1802 = vmatprep.subr.bf16.mxu0 0
    %1803 = vmatpush2.bf16.msra.mxu0 0
    %1804 = vmatprep.subr.bf16.mxu0 0
    %1805 = vmatpush2.bf16.msra.mxu0 0
    %1806 = vmatprep.mubr.bf16.mxu0 0
    %1807 = vmatmul.mubr.bf16.gmra.mxu0 %v1773
    %v1808 = vpop.f32.mrf.mxu0
    %v1809 = vadd.f32 %v310, %v1808
    %v1810 = vpop.f32.mrf.mxu0
    %v1811 = vpop.f32.mrf.mxu0
    %v1812 = vpop.f32.mrf.mxu0
    %1813 = vdwg.mxu0
    %v1814 = vmin.f32 %v1809, 20.0
    %v1815 = vmul.f32 %v1814, 1.442695
    %v1816 = vpow.pop %v1815
    %v1817 = vadd.f32 %v1816, 1.0
    %v1818 = vmul.f32 %v1817, %v1817
    %v1819 = vsub.f32 %v1818, 1.0
    %v1820 = vmul.f32 %v1809, %v1819
    %v1821 = vadd.f32 %v1818, 1.0
    %v1822 = vrcp.pop %v1821
    %v1823 = vmul.f32 %v1820, %v1822
    %v1824 = vpack.c.bf16 %v1823, %v1823
    %1825 = vmatprep.subr.bf16.mxu0 0
    %1826 = vmatpush1.bf16.msra.mxu0 %v473
    %1827 = vmatprep.subr.bf16.mxu0 0
    %1828 = vmatpush1.bf16.msra.mxu0 %v472
    %1829 = vmatprep.subr.bf16.mxu0 0
    %1830 = vmatpush1.bf16.msra.mxu0 %v471
    %1831 = vmatprep.subr.bf16.mxu0 0
    %1832 = vmatpush1.bf16.msra.mxu0 %v470
    %1833 = vmatprep.subr.bf16.mxu0 0
    %1834 = vmatpush1.bf16.msra.mxu0 %v469
    %1835 = vmatprep.subr.bf16.mxu0 0
    %1836 = vmatpush1.bf16.msra.mxu0 %v468
    %1837 = vmatprep.subr.bf16.mxu0 0
    %1838 = vmatpush1.bf16.msra.mxu0 %v467
    %1839 = vmatprep.subr.bf16.mxu0 0
    %1840 = vmatpush1.bf16.msra.mxu0 %v466
    %1841 = vmatprep.subr.bf16.mxu0 0
    %1842 = vmatpush2.bf16.msra.mxu0 0
    %1843 = vmatprep.subr.bf16.mxu0 0
    %1844 = vmatpush2.bf16.msra.mxu0 0
    %1845 = vmatprep.subr.bf16.mxu0 0
    %1846 = vmatpush2.bf16.msra.mxu0 0
    %1847 = vmatprep.subr.bf16.mxu0 0
    %1848 = vmatpush2.bf16.msra.mxu0 0
    %1849 = vmatprep.subr.bf16.mxu0 0
    %1850 = vmatpush2.bf16.msra.mxu0 0
    %1851 = vmatprep.subr.bf16.mxu0 0
    %1852 = vmatpush2.bf16.msra.mxu0 0
    %1853 = vmatprep.subr.bf16.mxu0 0
    %1854 = vmatpush2.bf16.msra.mxu0 0
    %1855 = vmatprep.subr.bf16.mxu0 0
    %1856 = vmatpush2.bf16.msra.mxu0 0
    %1857 = vmatprep.mubr.bf16.mxu0 0
    %1858 = vmatmul.mubr.bf16.gmra.mxu0 %v1824
    %v1859 = vpop.f32.mrf.mxu0
    %v1860 = vadd.f32 %v432, %v1859
    %v1861 = vpop.f32.mrf.mxu0
    %v1862 = vpop.f32.mrf.mxu0
    %v1863 = vpop.f32.mrf.mxu0
    %1864 = vdwg.mxu0
    %v1865 = vmin.f32 %v1860, 20.0
    %v1866 = vmul.f32 %v1865, 1.442695
    %v1867 = vpow.pop %v1866
    %v1868 = vadd.f32 %v1867, 1.0
    %v1869 = vmul.f32 %v1868, %v1868
    %v1870 = vsub.f32 %v1869, 1.0
    %v1871 = vmul.f32 %v1860, %v1870
    %v1872 = vadd.f32 %v1869, 1.0
    %v1873 = vrcp.pop %v1872
    %v1874 = vmul.f32 %v1871, %v1873
    %v1875 = vpack.c.bf16 %v1874, %v1874
    %1876 = vmatprep.subr.bf16.mxu0 0
    %1877 = vmatpush1.bf16.msra.mxu0 %v595
    %1878 = vmatprep.subr.bf16.mxu0 0
    %1879 = vmatpush1.bf16.msra.mxu0 %v594
    %1880 = vmatprep.subr.bf16.mxu0 0
    %1881 = vmatpush1.bf16.msra.mxu0 %v593
    %1882 = vmatprep.subr.bf16.mxu0 0
    %1883 = vmatpush1.bf16.msra.mxu0 %v592
    %1884 = vmatprep.subr.bf16.mxu0 0
    %1885 = vmatpush1.bf16.msra.mxu0 %v591
    %1886 = vmatprep.subr.bf16.mxu0 0
    %1887 = vmatpush1.bf16.msra.mxu0 %v590
    %1888 = vmatprep.subr.bf16.mxu0 0
    %1889 = vmatpush1.bf16.msra.mxu0 %v589
    %1890 = vmatprep.subr.bf16.mxu0 0
    %1891 = vmatpush1.bf16.msra.mxu0 %v588
    %1892 = vmatprep.subr.bf16.mxu0 0
    %1893 = vmatpush2.bf16.msra.mxu0 0
    %1894 = vmatprep.subr.bf16.mxu0 0
    %1895 = vmatpush2.bf16.msra.mxu0 0
    %1896 = vmatprep.subr.bf16.mxu0 0
    %1897 = vmatpush2.bf16.msra.mxu0 0
    %1898 = vmatprep.subr.bf16.mxu0 0
    %1899 = vmatpush2.bf16.msra.mxu0 0
    %1900 = vmatprep.subr.bf16.mxu0 0
    %1901 = vmatpush2.bf16.msra.mxu0 0
    %1902 = vmatprep.subr.bf16.mxu0 0
    %1903 = vmatpush2.bf16.msra.mxu0 0
    %1904 = vmatprep.subr.bf16.mxu0 0
    %1905 = vmatpush2.bf16.msra.mxu0 0
    %1906 = vmatprep.subr.bf16.mxu0 0
    %1907 = vmatpush2.bf16.msra.mxu0 0
    %1908 = vmatprep.mubr.bf16.mxu0 0
    %1909 = vmatmul.mubr.bf16.gmra.mxu0 %v1875
    %v1910 = vpop.f32.mrf.mxu0
    %v1911 = vadd.f32 %v554, %v1910
    %v1912 = vpop.f32.mrf.mxu0
    %v1913 = vpop.f32.mrf.mxu0
    %v1914 = vpop.f32.mrf.mxu0
    %1915 = vdwg.mxu0
    %s1916 = sld [smem:[#allocation3 + $0x3]]
    %s1917 = sld [smem:[#allocation3 + $0x83]]
    %s1918 = sld [smem:[#allocation3 + $0x103]]
    %v1919 = vstv %s1916
    %v1920 = vmul.f32 %v1919, %v1716
    %v1921 = vstv %s1917
    %v1922 = vmul.f32 %v1921, %v1911
    %v1923 = vsub.f32 %v1920, %v1922
    %s1924 = scalar_lea.vmem %s3, 24
    %v1925 = vld [vmem:[%s1924] sm:$0xff]
    %v1926 = vstv %s1918
    %v1927 = vmul.f32 %v1926, %v1925
    %v1928 = vadd.f32 %v1923, %v1927
    %v1929 = vpack.c.bf16 %v1928, %v1928
    %s1930 = scalar_lea.vmem [#allocation2], 16
    %v1931 = vld [vmem:[%s1930] sm:$0xff]
    %v1933 = vsel %vm230, %v1929, 0
    %1935 = vmatprep.subr.bf16.mxu0 0
    %1936 = vmatpush1.bf16.msra.mxu0 0
    %1937 = vmatprep.subr.bf16.mxu0 0
    %1938 = vmatpush1.bf16.msra.mxu0 0
    %1939 = vmatprep.subr.bf16.mxu0 0
    %1940 = vmatpush1.bf16.msra.mxu0 0
    %1941 = vmatprep.subr.bf16.mxu0 0
    %1942 = vmatpush1.bf16.msra.mxu0 0
    %1943 = vmatprep.subr.bf16.mxu0 0
    %1944 = vmatpush1.bf16.msra.mxu0 0
    %1945 = vmatprep.subr.bf16.mxu0 0
    %1946 = vmatpush1.bf16.msra.mxu0 0
    %1947 = vmatprep.subr.bf16.mxu0 0
    %1948 = vmatpush1.bf16.msra.mxu0 0
    %1949 = vmatprep.subr.bf16.mxu0 0
    %1950 = vmatpush1.bf16.msra.mxu0 %v236
    %1951 = vmatprep.subr.bf16.mxu0 0
    %1952 = vmatpush2.bf16.msra.mxu0 0
    %1953 = vmatprep.subr.bf16.mxu0 0
    %1954 = vmatpush2.bf16.msra.mxu0 0
    %1955 = vmatprep.subr.bf16.mxu0 0
    %1956 = vmatpush2.bf16.msra.mxu0 0
    %1957 = vmatprep.subr.bf16.mxu0 0
    %1958 = vmatpush2.bf16.msra.mxu0 0
    %1959 = vmatprep.subr.bf16.mxu0 0
    %1960 = vmatpush2.bf16.msra.mxu0 0
    %1961 = vmatprep.subr.bf16.mxu0 0
    %1962 = vmatpush2.bf16.msra.mxu0 0
    %1963 = vmatprep.subr.bf16.mxu0 0
    %1964 = vmatpush2.bf16.msra.mxu0 0
    %1965 = vmatprep.subr.bf16.mxu0 0
    %1966 = vmatpush2.bf16.msra.mxu0 0
    %1967 = vmatprep.mubr.bf16.mxu0 0
    %1968 = vmatmul.mubr.bf16.gmra.mxu0 %v1933
    %v1969 = vpop.f32.mrf.mxu0
    %v1970 = vadd.f32 %v1931, %v1969
    %v1971 = vpop.f32.mrf.mxu0
    %v1972 = vpop.f32.mrf.mxu0
    %v1973 = vpop.f32.mrf.mxu0
    %1974 = vdwg.mxu0
    %v1975 = vmin.f32 %v1970, 20.0
    %v1976 = vmul.f32 %v1975, 1.442695
    %v1977 = vpow.pop %v1976
    %v1978 = vadd.f32 %v1977, 1.0
    %v1979 = vmul.f32 %v1978, %v1978
    %v1980 = vsub.f32 %v1979, 1.0
    %v1981 = vmul.f32 %v1970, %v1980
    %v1982 = vadd.f32 %v1979, 1.0
    %v1983 = vrcp.pop %v1982
    %v1984 = vmul.f32 %v1981, %v1983
    %v1985 = vpack.c.bf16 %v1984, %v1984
    %1986 = vmatprep.subr.bf16.mxu0 0
    %1987 = vmatpush1.bf16.msra.mxu0 %v351
    %1988 = vmatprep.subr.bf16.mxu0 0
    %1989 = vmatpush1.bf16.msra.mxu0 %v350
    %1990 = vmatprep.subr.bf16.mxu0 0
    %1991 = vmatpush1.bf16.msra.mxu0 %v349
    %1992 = vmatprep.subr.bf16.mxu0 0
    %1993 = vmatpush1.bf16.msra.mxu0 %v348
    %1994 = vmatprep.subr.bf16.mxu0 0
    %1995 = vmatpush1.bf16.msra.mxu0 %v347
    %1996 = vmatprep.subr.bf16.mxu0 0
    %1997 = vmatpush1.bf16.msra.mxu0 %v346
    %1998 = vmatprep.subr.bf16.mxu0 0
    %1999 = vmatpush1.bf16.msra.mxu0 %v345
    %2000 = vmatprep.subr.bf16.mxu0 0
    %2001 = vmatpush1.bf16.msra.mxu0 %v344
    %2002 = vmatprep.subr.bf16.mxu0 0
    %2003 = vmatpush2.bf16.msra.mxu0 0
    %2004 = vmatprep.subr.bf16.mxu0 0
    %2005 = vmatpush2.bf16.msra.mxu0 0
    %2006 = vmatprep.subr.bf16.mxu0 0
    %2007 = vmatpush2.bf16.msra.mxu0 0
    %2008 = vmatprep.subr.bf16.mxu0 0
    %2009 = vmatpush2.bf16.msra.mxu0 0
    %2010 = vmatprep.subr.bf16.mxu0 0
    %2011 = vmatpush2.bf16.msra.mxu0 0
    %2012 = vmatprep.subr.bf16.mxu0 0
    %2013 = vmatpush2.bf16.msra.mxu0 0
    %2014 = vmatprep.subr.bf16.mxu0 0
    %2015 = vmatpush2.bf16.msra.mxu0 0
    %2016 = vmatprep.subr.bf16.mxu0 0
    %2017 = vmatpush2.bf16.msra.mxu0 0
    %2018 = vmatprep.mubr.bf16.mxu0 0
    %2019 = vmatmul.mubr.bf16.gmra.mxu0 %v1985
    %v2020 = vpop.f32.mrf.mxu0
    %v2021 = vadd.f32 %v310, %v2020
    %v2022 = vpop.f32.mrf.mxu0
    %v2023 = vpop.f32.mrf.mxu0
    %v2024 = vpop.f32.mrf.mxu0
    %2025 = vdwg.mxu0
    %v2026 = vmin.f32 %v2021, 20.0
    %v2027 = vmul.f32 %v2026, 1.442695
    %v2028 = vpow.pop %v2027
    %v2029 = vadd.f32 %v2028, 1.0
    %v2030 = vmul.f32 %v2029, %v2029
    %v2031 = vsub.f32 %v2030, 1.0
    %v2032 = vmul.f32 %v2021, %v2031
    %v2033 = vadd.f32 %v2030, 1.0
    %v2034 = vrcp.pop %v2033
    %v2035 = vmul.f32 %v2032, %v2034
    %v2036 = vpack.c.bf16 %v2035, %v2035
    %2037 = vmatprep.subr.bf16.mxu0 0
    %2038 = vmatpush1.bf16.msra.mxu0 %v473
    %2039 = vmatprep.subr.bf16.mxu0 0
    %2040 = vmatpush1.bf16.msra.mxu0 %v472
    %2041 = vmatprep.subr.bf16.mxu0 0
    %2042 = vmatpush1.bf16.msra.mxu0 %v471
    %2043 = vmatprep.subr.bf16.mxu0 0
    %2044 = vmatpush1.bf16.msra.mxu0 %v470
    %2045 = vmatprep.subr.bf16.mxu0 0
    %2046 = vmatpush1.bf16.msra.mxu0 %v469
    %2047 = vmatprep.subr.bf16.mxu0 0
    %2048 = vmatpush1.bf16.msra.mxu0 %v468
    %2049 = vmatprep.subr.bf16.mxu0 0
    %2050 = vmatpush1.bf16.msra.mxu0 %v467
    %2051 = vmatprep.subr.bf16.mxu0 0
    %2052 = vmatpush1.bf16.msra.mxu0 %v466
    %2053 = vmatprep.subr.bf16.mxu0 0
    %2054 = vmatpush2.bf16.msra.mxu0 0
    %2055 = vmatprep.subr.bf16.mxu0 0
    %2056 = vmatpush2.bf16.msra.mxu0 0
    %2057 = vmatprep.subr.bf16.mxu0 0
    %2058 = vmatpush2.bf16.msra.mxu0 0
    %2059 = vmatprep.subr.bf16.mxu0 0
    %2060 = vmatpush2.bf16.msra.mxu0 0
    %2061 = vmatprep.subr.bf16.mxu0 0
    %2062 = vmatpush2.bf16.msra.mxu0 0
    %2063 = vmatprep.subr.bf16.mxu0 0
    %2064 = vmatpush2.bf16.msra.mxu0 0
    %2065 = vmatprep.subr.bf16.mxu0 0
    %2066 = vmatpush2.bf16.msra.mxu0 0
    %2067 = vmatprep.subr.bf16.mxu0 0
    %2068 = vmatpush2.bf16.msra.mxu0 0
    %2069 = vmatprep.mubr.bf16.mxu0 0
    %2070 = vmatmul.mubr.bf16.gmra.mxu0 %v2036
    %v2071 = vpop.f32.mrf.mxu0
    %v2072 = vadd.f32 %v432, %v2071
    %v2073 = vpop.f32.mrf.mxu0
    %v2074 = vpop.f32.mrf.mxu0
    %v2075 = vpop.f32.mrf.mxu0
    %2076 = vdwg.mxu0
    %v2077 = vmin.f32 %v2072, 20.0
    %v2078 = vmul.f32 %v2077, 1.442695
    %v2079 = vpow.pop %v2078
    %v2080 = vadd.f32 %v2079, 1.0
    %v2081 = vmul.f32 %v2080, %v2080
    %v2082 = vsub.f32 %v2081, 1.0
    %v2083 = vmul.f32 %v2072, %v2082
    %v2084 = vadd.f32 %v2081, 1.0
    %v2085 = vrcp.pop %v2084
    %v2086 = vmul.f32 %v2083, %v2085
    %v2087 = vpack.c.bf16 %v2086, %v2086
    %2088 = vmatprep.subr.bf16.mxu0 0
    %2089 = vmatpush1.bf16.msra.mxu0 %v595
    %2090 = vmatprep.subr.bf16.mxu0 0
    %2091 = vmatpush1.bf16.msra.mxu0 %v594
    %2092 = vmatprep.subr.bf16.mxu0 0
    %2093 = vmatpush1.bf16.msra.mxu0 %v593
    %2094 = vmatprep.subr.bf16.mxu0 0
    %2095 = vmatpush1.bf16.msra.mxu0 %v592
    %2096 = vmatprep.subr.bf16.mxu0 0
    %2097 = vmatpush1.bf16.msra.mxu0 %v591
    %2098 = vmatprep.subr.bf16.mxu0 0
    %2099 = vmatpush1.bf16.msra.mxu0 %v590
    %2100 = vmatprep.subr.bf16.mxu0 0
    %2101 = vmatpush1.bf16.msra.mxu0 %v589
    %2102 = vmatprep.subr.bf16.mxu0 0
    %2103 = vmatpush1.bf16.msra.mxu0 %v588
    %2104 = vmatprep.subr.bf16.mxu0 0
    %2105 = vmatpush2.bf16.msra.mxu0 0
    %2106 = vmatprep.subr.bf16.mxu0 0
    %2107 = vmatpush2.bf16.msra.mxu0 0
    %2108 = vmatprep.subr.bf16.mxu0 0
    %2109 = vmatpush2.bf16.msra.mxu0 0
    %2110 = vmatprep.subr.bf16.mxu0 0
    %2111 = vmatpush2.bf16.msra.mxu0 0
    %2112 = vmatprep.subr.bf16.mxu0 0
    %2113 = vmatpush2.bf16.msra.mxu0 0
    %2114 = vmatprep.subr.bf16.mxu0 0
    %2115 = vmatpush2.bf16.msra.mxu0 0
    %2116 = vmatprep.subr.bf16.mxu0 0
    %2117 = vmatpush2.bf16.msra.mxu0 0
    %2118 = vmatprep.subr.bf16.mxu0 0
    %2119 = vmatpush2.bf16.msra.mxu0 0
    %2120 = vmatprep.mubr.bf16.mxu0 0
    %2121 = vmatmul.mubr.bf16.gmra.mxu0 %v2087
    %v2122 = vpop.f32.mrf.mxu0
    %v2123 = vadd.f32 %v554, %v2122
    %v2124 = vpop.f32.mrf.mxu0
    %v2125 = vpop.f32.mrf.mxu0
    %v2126 = vpop.f32.mrf.mxu0
    %2127 = vdwg.mxu0
    %s2128 = sld [smem:[#allocation3 + $0x2]]
    %s2129 = sld [smem:[#allocation3 + $0x82]]
    %s2130 = sld [smem:[#allocation3 + $0x102]]
    %v2131 = vstv %s2128
    %v2132 = vmul.f32 %v2131, %v1928
    %v2133 = vstv %s2129
    %v2134 = vmul.f32 %v2133, %v2123
    %v2135 = vsub.f32 %v2132, %v2134
    %s2136 = scalar_lea.vmem %s3, 16
    %v2137 = vld [vmem:[%s2136] sm:$0xff]
    %v2138 = vstv %s2130
    %v2139 = vmul.f32 %v2138, %v2137
    %v2140 = vadd.f32 %v2135, %v2139
    %v2141 = vpack.c.bf16 %v2140, %v2140
    %s2142 = scalar_lea.vmem [#allocation2], 8
    %v2143 = vld [vmem:[%s2142] sm:$0xff]
    %v2145 = vsel %vm230, %v2141, 0
    %2147 = vmatprep.subr.bf16.mxu0 0
    %2148 = vmatpush1.bf16.msra.mxu0 0
    %2149 = vmatprep.subr.bf16.mxu0 0
    %2150 = vmatpush1.bf16.msra.mxu0 0
    %2151 = vmatprep.subr.bf16.mxu0 0
    %2152 = vmatpush1.bf16.msra.mxu0 0
    %2153 = vmatprep.subr.bf16.mxu0 0
    %2154 = vmatpush1.bf16.msra.mxu0 0
    %2155 = vmatprep.subr.bf16.mxu0 0
    %2156 = vmatpush1.bf16.msra.mxu0 0
    %2157 = vmatprep.subr.bf16.mxu0 0
    %2158 = vmatpush1.bf16.msra.mxu0 0
    %2159 = vmatprep.subr.bf16.mxu0 0
    %2160 = vmatpush1.bf16.msra.mxu0 0
    %2161 = vmatprep.subr.bf16.mxu0 0
    %2162 = vmatpush1.bf16.msra.mxu0 %v236
    %2163 = vmatprep.subr.bf16.mxu0 0
    %2164 = vmatpush2.bf16.msra.mxu0 0
    %2165 = vmatprep.subr.bf16.mxu0 0
    %2166 = vmatpush2.bf16.msra.mxu0 0
    %2167 = vmatprep.subr.bf16.mxu0 0
    %2168 = vmatpush2.bf16.msra.mxu0 0
    %2169 = vmatprep.subr.bf16.mxu0 0
    %2170 = vmatpush2.bf16.msra.mxu0 0
    %2171 = vmatprep.subr.bf16.mxu0 0
    %2172 = vmatpush2.bf16.msra.mxu0 0
    %2173 = vmatprep.subr.bf16.mxu0 0
    %2174 = vmatpush2.bf16.msra.mxu0 0
    %2175 = vmatprep.subr.bf16.mxu0 0
    %2176 = vmatpush2.bf16.msra.mxu0 0
    %2177 = vmatprep.subr.bf16.mxu0 0
    %2178 = vmatpush2.bf16.msra.mxu0 0
    %2179 = vmatprep.mubr.bf16.mxu0 0
    %2180 = vmatmul.mubr.bf16.gmra.mxu0 %v2145
    %v2181 = vpop.f32.mrf.mxu0
    %v2182 = vadd.f32 %v2143, %v2181
    %v2183 = vpop.f32.mrf.mxu0
    %v2184 = vpop.f32.mrf.mxu0
    %v2185 = vpop.f32.mrf.mxu0
    %2186 = vdwg.mxu0
    %v2187 = vmin.f32 %v2182, 20.0
    %v2188 = vmul.f32 %v2187, 1.442695
    %v2189 = vpow.pop %v2188
    %v2190 = vadd.f32 %v2189, 1.0
    %v2191 = vmul.f32 %v2190, %v2190
    %v2192 = vsub.f32 %v2191, 1.0
    %v2193 = vmul.f32 %v2182, %v2192
    %v2194 = vadd.f32 %v2191, 1.0
    %v2195 = vrcp.pop %v2194
    %v2196 = vmul.f32 %v2193, %v2195
    %v2197 = vpack.c.bf16 %v2196, %v2196
    %2198 = vmatprep.subr.bf16.mxu0 0
    %2199 = vmatpush1.bf16.msra.mxu0 %v351
    %2200 = vmatprep.subr.bf16.mxu0 0
    %2201 = vmatpush1.bf16.msra.mxu0 %v350
    %2202 = vmatprep.subr.bf16.mxu0 0
    %2203 = vmatpush1.bf16.msra.mxu0 %v349
    %2204 = vmatprep.subr.bf16.mxu0 0
    %2205 = vmatpush1.bf16.msra.mxu0 %v348
    %2206 = vmatprep.subr.bf16.mxu0 0
    %2207 = vmatpush1.bf16.msra.mxu0 %v347
    %2208 = vmatprep.subr.bf16.mxu0 0
    %2209 = vmatpush1.bf16.msra.mxu0 %v346
    %2210 = vmatprep.subr.bf16.mxu0 0
    %2211 = vmatpush1.bf16.msra.mxu0 %v345
    %2212 = vmatprep.subr.bf16.mxu0 0
    %2213 = vmatpush1.bf16.msra.mxu0 %v344
    %2214 = vmatprep.subr.bf16.mxu0 0
    %2215 = vmatpush2.bf16.msra.mxu0 0
    %2216 = vmatprep.subr.bf16.mxu0 0
    %2217 = vmatpush2.bf16.msra.mxu0 0
    %2218 = vmatprep.subr.bf16.mxu0 0
    %2219 = vmatpush2.bf16.msra.mxu0 0
    %2220 = vmatprep.subr.bf16.mxu0 0
    %2221 = vmatpush2.bf16.msra.mxu0 0
    %2222 = vmatprep.subr.bf16.mxu0 0
    %2223 = vmatpush2.bf16.msra.mxu0 0
    %2224 = vmatprep.subr.bf16.mxu0 0
    %2225 = vmatpush2.bf16.msra.mxu0 0
    %2226 = vmatprep.subr.bf16.mxu0 0
    %2227 = vmatpush2.bf16.msra.mxu0 0
    %2228 = vmatprep.subr.bf16.mxu0 0
    %2229 = vmatpush2.bf16.msra.mxu0 0
    %2230 = vmatprep.mubr.bf16.mxu0 0
    %2231 = vmatmul.mubr.bf16.gmra.mxu0 %v2197
    %v2232 = vpop.f32.mrf.mxu0
    %v2233 = vadd.f32 %v310, %v2232
    %v2234 = vpop.f32.mrf.mxu0
    %v2235 = vpop.f32.mrf.mxu0
    %v2236 = vpop.f32.mrf.mxu0
    %2237 = vdwg.mxu0
    %v2238 = vmin.f32 %v2233, 20.0
    %v2239 = vmul.f32 %v2238, 1.442695
    %v2240 = vpow.pop %v2239
    %v2241 = vadd.f32 %v2240, 1.0
    %v2242 = vmul.f32 %v2241, %v2241
    %v2243 = vsub.f32 %v2242, 1.0
    %v2244 = vmul.f32 %v2233, %v2243
    %v2245 = vadd.f32 %v2242, 1.0
    %v2246 = vrcp.pop %v2245
    %v2247 = vmul.f32 %v2244, %v2246
    %v2248 = vpack.c.bf16 %v2247, %v2247
    %2249 = vmatprep.subr.bf16.mxu0 0
    %2250 = vmatpush1.bf16.msra.mxu0 %v473
    %2251 = vmatprep.subr.bf16.mxu0 0
    %2252 = vmatpush1.bf16.msra.mxu0 %v472
    %2253 = vmatprep.subr.bf16.mxu0 0
    %2254 = vmatpush1.bf16.msra.mxu0 %v471
    %2255 = vmatprep.subr.bf16.mxu0 0
    %2256 = vmatpush1.bf16.msra.mxu0 %v470
    %2257 = vmatprep.subr.bf16.mxu0 0
    %2258 = vmatpush1.bf16.msra.mxu0 %v469
    %2259 = vmatprep.subr.bf16.mxu0 0
    %2260 = vmatpush1.bf16.msra.mxu0 %v468
    %2261 = vmatprep.subr.bf16.mxu0 0
    %2262 = vmatpush1.bf16.msra.mxu0 %v467
    %2263 = vmatprep.subr.bf16.mxu0 0
    %2264 = vmatpush1.bf16.msra.mxu0 %v466
    %2265 = vmatprep.subr.bf16.mxu0 0
    %2266 = vmatpush2.bf16.msra.mxu0 0
    %2267 = vmatprep.subr.bf16.mxu0 0
    %2268 = vmatpush2.bf16.msra.mxu0 0
    %2269 = vmatprep.subr.bf16.mxu0 0
    %2270 = vmatpush2.bf16.msra.mxu0 0
    %2271 = vmatprep.subr.bf16.mxu0 0
    %2272 = vmatpush2.bf16.msra.mxu0 0
    %2273 = vmatprep.subr.bf16.mxu0 0
    %2274 = vmatpush2.bf16.msra.mxu0 0
    %2275 = vmatprep.subr.bf16.mxu0 0
    %2276 = vmatpush2.bf16.msra.mxu0 0
    %2277 = vmatprep.subr.bf16.mxu0 0
    %2278 = vmatpush2.bf16.msra.mxu0 0
    %2279 = vmatprep.subr.bf16.mxu0 0
    %2280 = vmatpush2.bf16.msra.mxu0 0
    %2281 = vmatprep.mubr.bf16.mxu0 0
    %2282 = vmatmul.mubr.bf16.gmra.mxu0 %v2248
    %v2283 = vpop.f32.mrf.mxu0
    %v2284 = vadd.f32 %v432, %v2283
    %v2285 = vpop.f32.mrf.mxu0
    %v2286 = vpop.f32.mrf.mxu0
    %v2287 = vpop.f32.mrf.mxu0
    %2288 = vdwg.mxu0
    %v2289 = vmin.f32 %v2284, 20.0
    %v2290 = vmul.f32 %v2289, 1.442695
    %v2291 = vpow.pop %v2290
    %v2292 = vadd.f32 %v2291, 1.0
    %v2293 = vmul.f32 %v2292, %v2292
    %v2294 = vsub.f32 %v2293, 1.0
    %v2295 = vmul.f32 %v2284, %v2294
    %v2296 = vadd.f32 %v2293, 1.0
    %v2297 = vrcp.pop %v2296
    %v2298 = vmul.f32 %v2295, %v2297
    %v2299 = vpack.c.bf16 %v2298, %v2298
    %2300 = vmatprep.subr.bf16.mxu0 0
    %2301 = vmatpush1.bf16.msra.mxu0 %v595
    %2302 = vmatprep.subr.bf16.mxu0 0
    %2303 = vmatpush1.bf16.msra.mxu0 %v594
    %2304 = vmatprep.subr.bf16.mxu0 0
    %2305 = vmatpush1.bf16.msra.mxu0 %v593
    %2306 = vmatprep.subr.bf16.mxu0 0
    %2307 = vmatpush1.bf16.msra.mxu0 %v592
    %2308 = vmatprep.subr.bf16.mxu0 0
    %2309 = vmatpush1.bf16.msra.mxu0 %v591
    %2310 = vmatprep.subr.bf16.mxu0 0
    %2311 = vmatpush1.bf16.msra.mxu0 %v590
    %2312 = vmatprep.subr.bf16.mxu0 0
    %2313 = vmatpush1.bf16.msra.mxu0 %v589
    %2314 = vmatprep.subr.bf16.mxu0 0
    %2315 = vmatpush1.bf16.msra.mxu0 %v588
    %2316 = vmatprep.subr.bf16.mxu0 0
    %2317 = vmatpush2.bf16.msra.mxu0 0
    %2318 = vmatprep.subr.bf16.mxu0 0
    %2319 = vmatpush2.bf16.msra.mxu0 0
    %2320 = vmatprep.subr.bf16.mxu0 0
    %2321 = vmatpush2.bf16.msra.mxu0 0
    %2322 = vmatprep.subr.bf16.mxu0 0
    %2323 = vmatpush2.bf16.msra.mxu0 0
    %2324 = vmatprep.subr.bf16.mxu0 0
    %2325 = vmatpush2.bf16.msra.mxu0 0
    %2326 = vmatprep.subr.bf16.mxu0 0
    %2327 = vmatpush2.bf16.msra.mxu0 0
    %2328 = vmatprep.subr.bf16.mxu0 0
    %2329 = vmatpush2.bf16.msra.mxu0 0
    %2330 = vmatprep.subr.bf16.mxu0 0
    %2331 = vmatpush2.bf16.msra.mxu0 0
    %2332 = vmatprep.mubr.bf16.mxu0 0
    %2333 = vmatmul.mubr.bf16.gmra.mxu0 %v2299
    %v2334 = vpop.f32.mrf.mxu0
    %v2335 = vadd.f32 %v554, %v2334
    %v2336 = vpop.f32.mrf.mxu0
    %v2337 = vpop.f32.mrf.mxu0
    %v2338 = vpop.f32.mrf.mxu0
    %2339 = vdwg.mxu0
    %s2340 = sld [smem:[#allocation3 + $0x1]]
    %s2341 = sld [smem:[#allocation3 + $0x81]]
    %s2342 = sld [smem:[#allocation3 + $0x101]]
    %v2343 = vstv %s2340
    %v2344 = vmul.f32 %v2343, %v2140
    %v2345 = vstv %s2341
    %v2346 = vmul.f32 %v2345, %v2335
    %v2347 = vsub.f32 %v2344, %v2346
    %s2348 = scalar_lea.vmem %s3, 8
    %v2349 = vld [vmem:[%s2348] sm:$0xff]
    %v2350 = vstv %s2342
    %v2351 = vmul.f32 %v2350, %v2349
    %v2352 = vadd.f32 %v2347, %v2351
    %v2353 = vpack.c.bf16 %v2352, %v2352
    %v2354 = vld [vmem:[#allocation2] sm:$0xff]
    %v2356 = vsel %vm230, %v2353, 0
    %2358 = vmatprep.subr.bf16.mxu0 0
    %2359 = vmatpush1.bf16.msra.mxu0 0
    %2360 = vmatprep.subr.bf16.mxu0 0
    %2361 = vmatpush1.bf16.msra.mxu0 0
    %2362 = vmatprep.subr.bf16.mxu0 0
    %2363 = vmatpush1.bf16.msra.mxu0 0
    %2364 = vmatprep.subr.bf16.mxu0 0
    %2365 = vmatpush1.bf16.msra.mxu0 0
    %2366 = vmatprep.subr.bf16.mxu0 0
    %2367 = vmatpush1.bf16.msra.mxu0 0
    %2368 = vmatprep.subr.bf16.mxu0 0
    %2369 = vmatpush1.bf16.msra.mxu0 0
    %2370 = vmatprep.subr.bf16.mxu0 0
    %2371 = vmatpush1.bf16.msra.mxu0 0
    %2372 = vmatprep.subr.bf16.mxu0 0
    %2373 = vmatpush1.bf16.msra.mxu0 %v236
    %2374 = vmatprep.subr.bf16.mxu0 0
    %2375 = vmatpush2.bf16.msra.mxu0 0
    %2376 = vmatprep.subr.bf16.mxu0 0
    %2377 = vmatpush2.bf16.msra.mxu0 0
    %2378 = vmatprep.subr.bf16.mxu0 0
    %2379 = vmatpush2.bf16.msra.mxu0 0
    %2380 = vmatprep.subr.bf16.mxu0 0
    %2381 = vmatpush2.bf16.msra.mxu0 0
    %2382 = vmatprep.subr.bf16.mxu0 0
    %2383 = vmatpush2.bf16.msra.mxu0 0
    %2384 = vmatprep.subr.bf16.mxu0 0
    %2385 = vmatpush2.bf16.msra.mxu0 0
    %2386 = vmatprep.subr.bf16.mxu0 0
    %2387 = vmatpush2.bf16.msra.mxu0 0
    %2388 = vmatprep.subr.bf16.mxu0 0
    %2389 = vmatpush2.bf16.msra.mxu0 0
    %2390 = vmatprep.mubr.bf16.mxu0 0
    %2391 = vmatmul.mubr.bf16.gmra.mxu0 %v2356
    %v2392 = vpop.f32.mrf.mxu0
    %v2393 = vadd.f32 %v2354, %v2392
    %v2394 = vpop.f32.mrf.mxu0
    %v2395 = vpop.f32.mrf.mxu0
    %v2396 = vpop.f32.mrf.mxu0
    %2397 = vdwg.mxu0
    %v2398 = vmin.f32 %v2393, 20.0
    %v2399 = vmul.f32 %v2398, 1.442695
    %v2400 = vpow.pop %v2399
    %v2401 = vadd.f32 %v2400, 1.0
    %v2402 = vmul.f32 %v2401, %v2401
    %v2403 = vsub.f32 %v2402, 1.0
    %v2404 = vmul.f32 %v2393, %v2403
    %v2405 = vadd.f32 %v2402, 1.0
    %v2406 = vrcp.pop %v2405
    %v2407 = vmul.f32 %v2404, %v2406
    %v2408 = vpack.c.bf16 %v2407, %v2407
    %2409 = vmatprep.subr.bf16.mxu0 0
    %2410 = vmatpush1.bf16.msra.mxu0 %v351
    %2411 = vmatprep.subr.bf16.mxu0 0
    %2412 = vmatpush1.bf16.msra.mxu0 %v350
    %2413 = vmatprep.subr.bf16.mxu0 0
    %2414 = vmatpush1.bf16.msra.mxu0 %v349
    %2415 = vmatprep.subr.bf16.mxu0 0
    %2416 = vmatpush1.bf16.msra.mxu0 %v348
    %2417 = vmatprep.subr.bf16.mxu0 0
    %2418 = vmatpush1.bf16.msra.mxu0 %v347
    %2419 = vmatprep.subr.bf16.mxu0 0
    %2420 = vmatpush1.bf16.msra.mxu0 %v346
    %2421 = vmatprep.subr.bf16.mxu0 0
    %2422 = vmatpush1.bf16.msra.mxu0 %v345
    %2423 = vmatprep.subr.bf16.mxu0 0
    %2424 = vmatpush1.bf16.msra.mxu0 %v344
    %2425 = vmatprep.subr.bf16.mxu0 0
    %2426 = vmatpush2.bf16.msra.mxu0 0
    %2427 = vmatprep.subr.bf16.mxu0 0
    %2428 = vmatpush2.bf16.msra.mxu0 0
    %2429 = vmatprep.subr.bf16.mxu0 0
    %2430 = vmatpush2.bf16.msra.mxu0 0
    %2431 = vmatprep.subr.bf16.mxu0 0
    %2432 = vmatpush2.bf16.msra.mxu0 0
    %2433 = vmatprep.subr.bf16.mxu0 0
    %2434 = vmatpush2.bf16.msra.mxu0 0
    %2435 = vmatprep.subr.bf16.mxu0 0
    %2436 = vmatpush2.bf16.msra.mxu0 0
    %2437 = vmatprep.subr.bf16.mxu0 0
    %2438 = vmatpush2.bf16.msra.mxu0 0
    %2439 = vmatprep.subr.bf16.mxu0 0
    %2440 = vmatpush2.bf16.msra.mxu0 0
    %2441 = vmatprep.mubr.bf16.mxu0 0
    %2442 = vmatmul.mubr.bf16.gmra.mxu0 %v2408
    %v2443 = vpop.f32.mrf.mxu0
    %v2444 = vadd.f32 %v310, %v2443
    %v2445 = vpop.f32.mrf.mxu0
    %v2446 = vpop.f32.mrf.mxu0
    %v2447 = vpop.f32.mrf.mxu0
    %2448 = vdwg.mxu0
    %v2449 = vmin.f32 %v2444, 20.0
    %v2450 = vmul.f32 %v2449, 1.442695
    %v2451 = vpow.pop %v2450
    %v2452 = vadd.f32 %v2451, 1.0
    %v2453 = vmul.f32 %v2452, %v2452
    %v2454 = vsub.f32 %v2453, 1.0
    %v2455 = vmul.f32 %v2444, %v2454
    %v2456 = vadd.f32 %v2453, 1.0
    %v2457 = vrcp.pop %v2456
    %v2458 = vmul.f32 %v2455, %v2457
    %v2459 = vpack.c.bf16 %v2458, %v2458
    %2460 = vmatprep.subr.bf16.mxu0 0
    %2461 = vmatpush1.bf16.msra.mxu0 %v473
    %2462 = vmatprep.subr.bf16.mxu0 0
    %2463 = vmatpush1.bf16.msra.mxu0 %v472
    %2464 = vmatprep.subr.bf16.mxu0 0
    %2465 = vmatpush1.bf16.msra.mxu0 %v471
    %2466 = vmatprep.subr.bf16.mxu0 0
    %2467 = vmatpush1.bf16.msra.mxu0 %v470
    %2468 = vmatprep.subr.bf16.mxu0 0
    %2469 = vmatpush1.bf16.msra.mxu0 %v469
    %2470 = vmatprep.subr.bf16.mxu0 0
    %2471 = vmatpush1.bf16.msra.mxu0 %v468
    %2472 = vmatprep.subr.bf16.mxu0 0
    %2473 = vmatpush1.bf16.msra.mxu0 %v467
    %2474 = vmatprep.subr.bf16.mxu0 0
    %2475 = vmatpush1.bf16.msra.mxu0 %v466
    %2476 = vmatprep.subr.bf16.mxu0 0
    %2477 = vmatpush2.bf16.msra.mxu0 0
    %2478 = vmatprep.subr.bf16.mxu0 0
    %2479 = vmatpush2.bf16.msra.mxu0 0
    %2480 = vmatprep.subr.bf16.mxu0 0
    %2481 = vmatpush2.bf16.msra.mxu0 0
    %2482 = vmatprep.subr.bf16.mxu0 0
    %2483 = vmatpush2.bf16.msra.mxu0 0
    %2484 = vmatprep.subr.bf16.mxu0 0
    %2485 = vmatpush2.bf16.msra.mxu0 0
    %2486 = vmatprep.subr.bf16.mxu0 0
    %2487 = vmatpush2.bf16.msra.mxu0 0
    %2488 = vmatprep.subr.bf16.mxu0 0
    %2489 = vmatpush2.bf16.msra.mxu0 0
    %2490 = vmatprep.subr.bf16.mxu0 0
    %2491 = vmatpush2.bf16.msra.mxu0 0
    %2492 = vmatprep.mubr.bf16.mxu0 0
    %2493 = vmatmul.mubr.bf16.gmra.mxu0 %v2459
    %v2494 = vpop.f32.mrf.mxu0
    %v2495 = vadd.f32 %v432, %v2494
    %v2496 = vpop.f32.mrf.mxu0
    %v2497 = vpop.f32.mrf.mxu0
    %v2498 = vpop.f32.mrf.mxu0
    %2499 = vdwg.mxu0
    %v2500 = vmin.f32 %v2495, 20.0
    %v2501 = vmul.f32 %v2500, 1.442695
    %v2502 = vpow.pop %v2501
    %v2503 = vadd.f32 %v2502, 1.0
    %v2504 = vmul.f32 %v2503, %v2503
    %v2505 = vsub.f32 %v2504, 1.0
    %v2506 = vmul.f32 %v2495, %v2505
    %v2507 = vadd.f32 %v2504, 1.0
    %v2508 = vrcp.pop %v2507
    %v2509 = vmul.f32 %v2506, %v2508
    %v2510 = vpack.c.bf16 %v2509, %v2509
    %2511 = vmatprep.subr.bf16.mxu0 0
    %2512 = vmatpush1.bf16.msra.mxu0 %v595
    %2513 = vmatprep.subr.bf16.mxu0 0
    %2514 = vmatpush1.bf16.msra.mxu0 %v594
    %2515 = vmatprep.subr.bf16.mxu0 0
    %2516 = vmatpush1.bf16.msra.mxu0 %v593
    %2517 = vmatprep.subr.bf16.mxu0 0
    %2518 = vmatpush1.bf16.msra.mxu0 %v592
    %2519 = vmatprep.subr.bf16.mxu0 0
    %2520 = vmatpush1.bf16.msra.mxu0 %v591
    %2521 = vmatprep.subr.bf16.mxu0 0
    %2522 = vmatpush1.bf16.msra.mxu0 %v590
    %2523 = vmatprep.subr.bf16.mxu0 0
    %2524 = vmatpush1.bf16.msra.mxu0 %v589
    %2525 = vmatprep.subr.bf16.mxu0 0
    %2526 = vmatpush1.bf16.msra.mxu0 %v588
    %2527 = vmatprep.subr.bf16.mxu0 0
    %2528 = vmatpush2.bf16.msra.mxu0 0
    %2529 = vmatprep.subr.bf16.mxu0 0
    %2530 = vmatpush2.bf16.msra.mxu0 0
    %2531 = vmatprep.subr.bf16.mxu0 0
    %2532 = vmatpush2.bf16.msra.mxu0 0
    %2533 = vmatprep.subr.bf16.mxu0 0
    %2534 = vmatpush2.bf16.msra.mxu0 0
    %2535 = vmatprep.subr.bf16.mxu0 0
    %2536 = vmatpush2.bf16.msra.mxu0 0
    %2537 = vmatprep.subr.bf16.mxu0 0
    %2538 = vmatpush2.bf16.msra.mxu0 0
    %2539 = vmatprep.subr.bf16.mxu0 0
    %2540 = vmatpush2.bf16.msra.mxu0 0
    %2541 = vmatprep.subr.bf16.mxu0 0
    %2542 = vmatpush2.bf16.msra.mxu0 0
    %2543 = vmatprep.mubr.bf16.mxu0 0
    %2544 = vmatmul.mubr.bf16.gmra.mxu0 %v2510
    %v2545 = vpop.f32.mrf.mxu0
    %v2546 = vadd.f32 %v554, %v2545
    %v2547 = vpop.f32.mrf.mxu0
    %v2548 = vpop.f32.mrf.mxu0
    %v2549 = vpop.f32.mrf.mxu0
    %2550 = vdwg.mxu0
    %s2551 = sld [smem:[#allocation3]]
    %s2552 = sld [smem:[#allocation3 + $0x80]]
    %s2553 = sld [smem:[#allocation3 + $0x100]]
    %v2554 = vstv %s2551
    %v2555 = vmul.f32 %v2554, %v2352
    %v2556 = vstv %s2552
    %v2557 = vmul.f32 %v2556, %v2546
    %v2558 = vsub.f32 %v2555, %v2557
    %v2559 = vld [vmem:[%s3] sm:$0xff]
    %v2560 = vstv %s2553
    %v2561 = vmul.f32 %v2560, %v2559
    %v2562 = vadd.f32 %v2558, %v2561
    %v2563 = vsel %vm230, %v2562, -inf
    %2564 = vmax.xlane.f32.xlu0 %v2563
    %v2565 = vpop.xlane.xlu0 %2564
    %v2566 = vsub.f32 %v2562, %v2565
    %v2567 = vmul.f32 %v2566, 1.442695
    %v2568 = vpow.pop %v2567
    %v2569 = vsel %vm230, %v2568, 0.0
    %2570 = vadd.xlane.f32.xlu0 %v2569
    %v2571 = vpop.xlane.xlu0 %2570
    %v2572 = vrcp.pop %v2571
    %v2573 = vmul.f32 %v2568, %v2572
    %2574 = vst.msk [vmem:[#allocation10] sm:$0xff] %vm230, %v2573
    // Predicated region
    $region66: #{tpu_custom_call.1} parent=1 // pred_check
      _
    $region67: #{tpu_custom_call.1} parent=1 // pred_check_branch
      %2576 = sbr.rel (0) target = $region69
    $region68: #{tpu_custom_call.1} parent=1 // pred_region
      %s2578 = ssub.s32 128, 128
      %2579 = vsyncadd [#allocation5], %s2578
      %s2581 = sshll.u32 [#allocation10], 4
      %s2582 = int_to_ptr.vmem [resolvable:$true] %s2581
      %2584 = dma.vmem_to_hbm [thread:$0]  %s2582, 128, %s13, [#allocation5]
    $region69: #{tpu_custom_call.1} parent=1 // pred_fallthru
      _
    // Predicated region
    $region70: #{tpu_custom_call.1} parent=1 // pred_check
      _
    $region71: #{tpu_custom_call.1} parent=1 // pred_check_branch
      %2586 = sbr.rel (0) target = $region73
    $region72: #{tpu_custom_call.1} parent=1 // pred_region
      %2587 = dma.done [#allocation5], 128
    $region73: #{tpu_custom_call.1} parent=1 // pred_fallthru
      _
    %2588 = vsyncpa [#allocation4], 1
    %2589 = vsyncpa [#allocation9], 1
    %2590 = vsyncpa [#allocation5], 1
    %2591 = vsyncpa [#allocation6], 1

</llo_original>
